<compile_context>
chip_gen: v5e
topology: v5e:2x2
jax: 0.10.0
libtpu: 0.0.40
codegen_flags: <defaults>
</compile_context>

<pallas_src>
import jax
import jax.numpy as jnp
from jax.experimental import pallas as pl
from jax.experimental.pallas import tpu as pltpu


# ----------------------------- helpers ---------------------------------------

def _full_spec(shape):
    nd = len(shape)
    return pl.BlockSpec(shape, lambda *_: (0,) * nd)


def _silu(x):
    return x * jax.nn.sigmoid(x)


def _pad2d(a, rows, cols):
    a = jnp.asarray(a, jnp.float32)
    return jnp.pad(a, ((0, rows - a.shape[0]), (0, cols - a.shape[1])))


# --------------------------- fused forward kernel -----------------------------

def _make_fused_kernel(n_layers, passes, H, widx, bidx, w_shapes, b_cols):
    bf16 = jnp.bfloat16

    def kernel(x_ref, e_ref, src_ref, dest_ref, destr_ref, w_ref, b_ref, out_ref):

        def W(name):
            r, c = w_shapes[name]
            return w_ref[widx[name]][:r, :c]            # bf16 slice of packed slab

        def B(name):
            return b_ref[bidx[name]][:, :b_cols[name]]  # f32 [1, c]

        def dot(a, w):
            # bf16 MXU operands, f32 accumulation.
            return jnp.dot(a.astype(bf16), w, preferred_element_type=jnp.float32)

        def mlp(h, prefix):
            for k in range(n_layers):
                h = dot(h, W(f"{prefix}_w{k}")) + B(f"{prefix}_b{k}")
                if k != n_layers - 1:                   # SiLU between layers only
                    h = _silu(h)
            return h

        def mlp_tail(h, prefix):
            """Layers 1..n_layers-1 (first layer handled via split weights outside)."""
            if n_layers > 1:
                h = _silu(h)
            for k in range(1, n_layers):
                h = dot(h, W(f"{prefix}_w{k}")) + B(f"{prefix}_b{k}")
                if k != n_layers - 1:
                    h = _silu(h)
            return h

        x_raw = x_ref[...]            # [N, d_node_pad] f32
        e_raw = e_ref[...]            # [E, d_edge_pad] f32
        N = x_raw.shape[0]
        E = e_raw.shape[0]

        # ---------------- Encode (globals ‖ node fused block-diagonal MLP) ----------------
        h = mlp(x_raw, "encf")                               # [N, 2H]
        eg = h[:, :H]                                        # encoder_globals branch
        x = h[:, H:2 * H]                                    # encoder_node branch
        f_row = jnp.mean(eg, axis=0, keepdims=True)          # [1, H] encoded global
        e = mlp(e_raw, "ence")                               # [E, H]

        # one-hot gather / scatter matrices, built ONCE, reused across passes (0/1 exact in bf16)
        ids_en = jax.lax.broadcasted_iota(jnp.int32, (E, N), 1)
        g_src = (ids_en == src_ref[...]).astype(bf16)        # [E, N]
        g_dst = (ids_en == dest_ref[...]).astype(bf16)       # [E, N]
        ids_ne = jax.lax.broadcasted_iota(jnp.int32, (N, E), 1)
        g_dst_t = (ids_ne == destr_ref[...]).astype(bf16)    # [N, E] transposed, built directly
        # TODO(synk): dense one-hots are O(E*N); replace with indexed gather/scatter at scale.

        # ---------------- Process ----------------
        for p in range(passes):
            pe = f"p{p}e"
            pn = f"p{p}n"

            # EdgeModel first layer, split weights (no concat):
            #   cat([e, x_src, x_dst]) @ W == e@W_e + gather_src(x@W_s) + gather_dst(x@W_d)
            # W_s|W_d are hstacked host-side -> single [N,H]@[H,2H] projection.
            px = dot(x, W(f"{pe}_w0sd"))                     # [N, 2H]
            h = (dot(e, W(f"{pe}_w0e"))
                 + jnp.dot(g_src, px[:, :H].astype(bf16), preferred_element_type=jnp.float32)
                 + jnp.dot(g_dst, px[:, H:].astype(bf16), preferred_element_type=jnp.float32)
                 + B(f"{pe}_b0"))
            e_new = mlp_tail(h, pe)                          # [E, H]

            # NodeModel: scatter_add(e_new, dest) == g_dst_T @ e_new  (pre-transposed one-hot)
            agg = jnp.dot(g_dst_t, e_new.astype(bf16),
                          preferred_element_type=jnp.float32)          # [N, H]
            # first layer split: cat([x, agg, f]) @ W == x@W[0:H] + agg@W[H:2H] + f@W[2H:3H]
            w_n0 = W(f"{pn}_w0")                             # [3H, H] (dims['f'] == H)
            h = (dot(x, w_n0[:H, :])
                 + dot(agg, w_n0[H:2 * H, :])
                 + dot(f_row, w_n0[2 * H:, :])               # [1,H] broadcast contribution
                 + B(f"{pn}_b0"))
            x_new = mlp_tail(h, pn)                          # [N, H]

            # residual updates (f32)
            x = x + x_new
            e = e + e_new

        # ---------------- Decode ---------------- (H-wide, last-layer cols zero-padded)
        out_ref[...] = mlp(x, "dec")

    return kernel


# ------------------------------- wrapper --------------------------------------

def node_movement_global_n_forward(params, q_0, n, t, edge_index):
    src = edge_index[0].astype(jnp.int32)
    dest = edge_index[1].astype(jnp.int32)

    n_layers = len(params['encoder_node'])
    passes = len(params['processor'])
    H = params['encoder_node'][-1][0].shape[1]
    F = params['processor'][0][1][0][0].shape[0] - 2 * H     # dims['f']
    out_dim = params['decoder_node'][-1][0].shape[1]
    assert F == H, "dims['f'] must equal dim_hidden for this model"
    assert H % 8 == 0 and out_dim <= H

    # JAX-side glue (runs once): raw node / edge features, zero-padded to 8-col alignment
    x_raw = jnp.concatenate([n, t], axis=1)                       # [N, dims['n']+1]
    u = q_0[src] - q_0[dest]
    e_raw = jnp.concatenate([u, jnp.linalg.norm(u, axis=1, keepdims=True)], axis=1)

    def pad_cols8(a):
        c = a.shape[1]
        cp = ((c + 7) // 8) * 8
        return jnp.pad(a, ((0, 0), (0, cp - c)))

    x_raw_p = pad_cols8(x_raw)                                    # [N, d_node_pad]
    e_raw_p = pad_cols8(e_raw)                                    # [E, d_edge_pad]
    d_node_p = x_raw_p.shape[1]
    d_edge_p = e_raw_p.shape[1]

    src_col = src.reshape(-1, 1)
    dest_col = dest.reshape(-1, 1)
    dest_row = dest.reshape(1, -1)

    # ---- pack all weights / biases into two slabs ----
    widx, w_entries, w_shapes = {}, [], {}
    bidx, b_entries, b_cols = {}, [], {}

    def add_w(name, arr):
        arr = jnp.asarray(arr, jnp.float32)
        widx[name] = len(w_entries)
        w_entries.append(arr)
        w_shapes[name] = tuple(arr.shape)

    def add_b(name, arr):
        arr = jnp.asarray(arr, jnp.float32).reshape(1, -1)
        bidx[name] = len(b_entries)
        b_entries.append(arr)
        b_cols[name] = arr.shape[1]

    # fused encoder (globals ‖ node): layer0 hstack, hidden layers block-diagonal
    for k in range(n_layers):
        wg, bg = params['encoder_globals'][k]
        wn, bn = params['encoder_node'][k]
        if k == 0:
            w = jnp.concatenate([_pad2d(wg, d_node_p, H), _pad2d(wn, d_node_p, H)], axis=1)
        else:
            z = jnp.zeros((H, H), jnp.float32)
            w = jnp.concatenate([jnp.concatenate([wg, z], axis=1),
                                 jnp.concatenate([z, wn], axis=1)], axis=0)
        add_w(f"encf_w{k}", w)
        add_b(f"encf_b{k}", jnp.concatenate([jnp.reshape(bg, (1, -1)),
                                             jnp.reshape(bn, (1, -1))], axis=1))

    # edge encoder
    for k in range(n_layers):
        w, b = params['encoder_edge'][k]
        if k == 0:
            w = _pad2d(w, d_edge_p, H)
        add_w(f"ence_w{k}", w)
        add_b(f"ence_b{k}", b)

    # processor
    for p in range(passes):
        edge_p, node_p = params['processor'][p]
        pe, pn = f"p{p}e", f"p{p}n"
        w0, b0 = edge_p[0]                                       # [3H, H]
        add_w(f"{pe}_w0e", w0[:H, :])
        add_w(f"{pe}_w0sd", jnp.concatenate([w0[H:2 * H, :], w0[2 * H:3 * H, :]], axis=1))
        add_b(f"{pe}_b0", b0)
        for k in range(1, n_layers):
            w, b = edge_p[k]
            add_w(f"{pe}_w{k}", w)
            add_b(f"{pe}_b{k}", b)
        w0, b0 = node_p[0]                                       # [2H+F, H]
        add_w(f"{pn}_w0", w0)
        add_b(f"{pn}_b0", b0)
        for k in range(1, n_layers):
            w, b = node_p[k]
            add_w(f"{pn}_w{k}", w)
            add_b(f"{pn}_b{k}", b)

    # decoder (last layer zero-padded to H columns -> lane-padded output, sliced below)
    for k in range(n_layers):
        w, b = params['decoder_node'][k]
        if k == n_layers - 1:
            w = _pad2d(w, w.shape[0], H)
            b = _pad2d(jnp.reshape(b, (1, -1)), 1, H)
        add_w(f"dec_w{k}", w)
        add_b(f"dec_b{k}", b)

    R_pad = max(s[0] for s in w_shapes.values())
    R_pad = ((R_pad + 7) // 8) * 8
    C_pad = max(max(s[1] for s in w_shapes.values()), max(b_cols.values()))

    W_all = jnp.stack([_pad2d(w, R_pad, C_pad) for w in w_entries]).astype(jnp.bfloat16)
    B_all = jnp.stack([_pad2d(b, 1, C_pad) for b in b_entries])          # f32

    N = x_raw_p.shape[0]
    out_shape = (N, H)

    in_arrays = (x_raw_p, e_raw_p, src_col, dest_col, dest_row, W_all, B_all)
    in_specs = [_full_spec(a.shape) for a in in_arrays]

    out = pl.pallas_call(
        _make_fused_kernel(n_layers, passes, H, widx, bidx, w_shapes, b_cols),
        out_shape=jax.ShapeDtypeStruct(out_shape, jnp.float32),
        grid=(1,),
        in_specs=in_specs,
        out_specs=_full_spec(out_shape),
        compiler_params=pltpu.CompilerParams(
            dimension_semantics=("arbitrary",),
            vmem_limit_bytes=48 * 1024 * 1024,      # above v5e 16 MiB scoped default
        ),
    )(*in_arrays)

    return out[:, :out_dim]


# --------------------------- pure-JAX reference -------------------------------

def _ref_mlp(x, params):
    for k, (w, b) in enumerate(params):
        x = x @ w + b
        if k != len(params) - 1:
            x = x * jax.nn.sigmoid(x)
    return x


def ref_forward(params, q_0, n, t, edge_index):
    src, dest = edge_index[0], edge_index[1]
    x = jnp.concatenate([n, t], axis=1)
    u = q_0[src] - q_0[dest]
    edge_attr = jnp.concatenate([u, jnp.linalg.norm(u, axis=1, keepdims=True)], axis=1)
    f = jnp.tile(_ref_mlp(x, params['encoder_globals']).mean(0)[None, :], (x.shape[0], 1))
    x = _ref_mlp(x, params['encoder_node'])
    edge_attr = _ref_mlp(edge_attr, params['encoder_edge'])
    N = x.shape[0]
    for edge_p, node_p in params['processor']:
        e_new = _ref_mlp(jnp.concatenate([edge_attr, x[src], x[dest]], axis=1), edge_p)
        agg = jax.ops.segment_sum(e_new, dest, num_segments=N)
        x_new = _ref_mlp(jnp.concatenate([x, agg, f], axis=1), node_p)
        x = x + x_new
        edge_attr = edge_attr + e_new
    return _ref_mlp(x, params['decoder_node'])


# ------------------------------ init & main -----------------------------------

def init_mlp(key, layer_vec):
    params = []
    for k in range(len(layer_vec) - 1):
        key, kw, kb = jax.random.split(key, 3)
        fan_in = layer_vec[k]
        bound = 1.0 / float(fan_in) ** 0.5
        w = jax.random.uniform(kw, (layer_vec[k], layer_vec[k + 1]), jnp.float32,
                               -bound, bound)
        b = jax.random.uniform(kb, (1, layer_vec[k + 1]), jnp.float32, -bound, bound)
        params.append((w, b))
    return key, params


if __name__ == "__main__":
    key = jax.random.PRNGKey(0)

    # args / dims
    passes, n_hidden, dim_hidden = 2, 2, 32
    dims = {'n': 3, 'q_0': 2, 'f': dim_hidden}   # dims['f'] must equal dim_hidden
    N_nodes, N_edges = 16, 40
    dim_node = dims['n'] + 1
    dim_edge = dims['q_0'] + 1

    key, enc_node = init_mlp(key, [dim_node] + n_hidden * [dim_hidden] + [dim_hidden])
    key, enc_edge = init_mlp(key, [dim_edge] + n_hidden * [dim_hidden] + [dim_hidden])
    key, enc_glob = init_mlp(key, [dim_node] + n_hidden * [dim_hidden] + [dim_hidden])
    processor = []
    for _ in range(passes):
        key, edge_p = init_mlp(key, [3 * dim_hidden] + n_hidden * [dim_hidden] + [dim_hidden])
        key, node_p = init_mlp(key, [2 * dim_hidden + dims['f']] + n_hidden * [dim_hidden] + [dim_hidden])
        processor.append((edge_p, node_p))
    key, dec = init_mlp(key, [dim_hidden] + n_hidden * [dim_hidden] + [dims['q_0']])
    params = {'encoder_node': enc_node, 'encoder_edge': enc_edge,
              'encoder_globals': enc_glob, 'processor': processor, 'decoder_node': dec}

    key, k1, k2, k3 = jax.random.split(key, 4)
    q_0 = jax.random.normal(k1, (N_nodes, dims['q_0']), jnp.float32)
    n_feat = jax.random.normal(k2, (N_nodes, dims['n']), jnp.float32)
    t = jax.random.normal(k3, (N_nodes, 1), jnp.float32)
    src = jnp.arange(N_edges, dtype=jnp.int32) % N_nodes
    dest = (3 * jnp.arange(N_edges, dtype=jnp.int32) + 1) % N_nodes
    edge_index = jnp.stack([src, dest], axis=0)

    out = node_movement_global_n_forward(params, q_0, n_feat, t, edge_index)
    out = jax.block_until_ready(out)

    ref = ref_forward(params, q_0, n_feat, t, edge_index)
    assert out.shape == (N_nodes, dims['q_0'])
    # Tolerance relaxed vs. the pure-f32 version: MXU operands are bf16 (f32 accumulation).
    err = float(jnp.max(jnp.abs(out - ref)))
    assert jnp.allclose(out, ref, rtol=5e-2, atol=5e-2), f"max abs err {err}"
    print("KERNEL_OK")
</pallas_src>

<mosaic_0001>
module attributes {stable_mosaic.version = 11 : i64} {
  func.func @kernel(%arg0: i32, %arg1: memref<16x8xf32, #tpu.memory_space<vmem>>, %arg2: memref<40x8xf32, #tpu.memory_space<vmem>>, %arg3: memref<40x1xi32, #tpu.memory_space<vmem>>, %arg4: memref<40x1xi32, #tpu.memory_space<vmem>>, %arg5: memref<1x40xi32, #tpu.memory_space<vmem>>, %arg6: memref<23x96x64xbf16, #tpu.memory_space<vmem>>, %arg7: memref<21x1x64xf32, #tpu.memory_space<vmem>>, %arg8: memref<16x32xf32, #tpu.memory_space<vmem>>) attributes {dimension_semantics = [#tpu.dimension_semantics<arbitrary>], iteration_bounds = array<i64: 1>, scalar_prefetch = 0 : i64, scratch_operands = 0 : i64, tpu.core_type = #tpu.core_type<tc>, window_params = [{pipeline_mode = #tpu.pipeline_mode<synchronous>, transform_indices = @transform_0, window_bounds = array<i64: 16, 8>}, {pipeline_mode = #tpu.pipeline_mode<synchronous>, transform_indices = @transform_1, window_bounds = array<i64: 40, 8>}, {pipeline_mode = #tpu.pipeline_mode<synchronous>, transform_indices = @transform_2, window_bounds = array<i64: 40, 1>}, {pipeline_mode = #tpu.pipeline_mode<synchronous>, transform_indices = @transform_3, window_bounds = array<i64: 40, 1>}, {pipeline_mode = #tpu.pipeline_mode<synchronous>, transform_indices = @transform_4, window_bounds = array<i64: 1, 40>}, {pipeline_mode = #tpu.pipeline_mode<synchronous>, transform_indices = @transform_5, window_bounds = array<i64: 23, 96, 64>}, {pipeline_mode = #tpu.pipeline_mode<synchronous>, transform_indices = @transform_6, window_bounds = array<i64: 21, 1, 64>}, {pipeline_mode = #tpu.pipeline_mode<synchronous>, transform_indices = @transform_7, window_bounds = array<i64: 16, 32>}]} {
    %c0 = arith.constant 0 : index
    %c0_0 = arith.constant 0 : index
    %0 = vector.load %arg1[%c0, %c0_0] : memref<16x8xf32, #tpu.memory_space<vmem>>, vector<16x8xf32>
    %c0_1 = arith.constant 0 : index
    %c0_2 = arith.constant 0 : index
    %1 = vector.load %arg2[%c0_1, %c0_2] : memref<40x8xf32, #tpu.memory_space<vmem>>, vector<40x8xf32>
    %c0_3 = arith.constant 0 : index
    %c0_4 = arith.constant 0 : index
    %c0_5 = arith.constant 0 : index
    %2 = vector.load %arg6[%c0_3, %c0_4, %c0_5] : memref<23x96x64xbf16, #tpu.memory_space<vmem>>, vector<1x96x64xbf16>
    %3 = vector.shape_cast %2 : vector<1x96x64xbf16> to vector<96x64xbf16>
    %4 = vector.extract_strided_slice %3 {offsets = [0, 0], sizes = [8, 64], strides = [1, 1]} : vector<96x64xbf16> to vector<8x64xbf16>
    %5 = arith.truncf %0 : vector<16x8xf32> to vector<16x8xbf16>
    %cst = arith.constant dense<0.000000e+00> : vector<16x64xf32>
    %6 = tpu.matmul %5, %4, %cst {dimension_numbers = #tpu.dot_dimension_numbers<[1], [0], [0], [1], [0, 0, 1, 1], [], []>} : vector<16x8xbf16>, vector<8x64xbf16>, vector<16x64xf32> -> vector<16x64xf32>
    %c0_6 = arith.constant 0 : index
    %c0_7 = arith.constant 0 : index
    %c0_8 = arith.constant 0 : index
    %7 = vector.load %arg7[%c0_6, %c0_7, %c0_8] : memref<21x1x64xf32, #tpu.memory_space<vmem>>, vector<1x1x64xf32>
    %8 = vector.shape_cast %7 : vector<1x1x64xf32> to vector<1x64xf32>
    %9 = vector.broadcast %8 : vector<1x64xf32> to vector<16x64xf32>
    %10 = arith.addf %6, %9 : vector<16x64xf32>
    %11 = arith.negf %10 : vector<16x64xf32>
    %12 = math.exp %11 : vector<16x64xf32>
    %cst_9 = arith.constant 1.000000e+00 : f32
    %13 = vector.broadcast %cst_9 : f32 to vector<16x64xf32>
    %14 = arith.addf %13, %12 : vector<16x64xf32>
    %15 = arith.divf %13, %14 : vector<16x64xf32>
    %16 = arith.mulf %10, %15 : vector<16x64xf32>
    %c1 = arith.constant 1 : index
    %c0_10 = arith.constant 0 : index
    %c0_11 = arith.constant 0 : index
    %17 = vector.load %arg6[%c1, %c0_10, %c0_11] : memref<23x96x64xbf16, #tpu.memory_space<vmem>>, vector<1x96x64xbf16>
    %18 = vector.shape_cast %17 : vector<1x96x64xbf16> to vector<96x64xbf16>
    %19 = vector.extract_strided_slice %18 {offsets = [0, 0], sizes = [64, 64], strides = [1, 1]} : vector<96x64xbf16> to vector<64x64xbf16>
    %20 = arith.truncf %16 : vector<16x64xf32> to vector<16x64xbf16>
    %cst_12 = arith.constant dense<0.000000e+00> : vector<16x64xf32>
    %21 = tpu.matmul %20, %19, %cst_12 {dimension_numbers = #tpu.dot_dimension_numbers<[1], [0], [0], [1], [0, 0, 1, 1], [], []>} : vector<16x64xbf16>, vector<64x64xbf16>, vector<16x64xf32> -> vector<16x64xf32>
    %c1_13 = arith.constant 1 : index
    %c0_14 = arith.constant 0 : index
    %c0_15 = arith.constant 0 : index
    %22 = vector.load %arg7[%c1_13, %c0_14, %c0_15] : memref<21x1x64xf32, #tpu.memory_space<vmem>>, vector<1x1x64xf32>
    %23 = vector.shape_cast %22 : vector<1x1x64xf32> to vector<1x64xf32>
    %24 = vector.broadcast %23 : vector<1x64xf32> to vector<16x64xf32>
    %25 = arith.addf %21, %24 : vector<16x64xf32>
    %26 = arith.negf %25 : vector<16x64xf32>
    %27 = math.exp %26 : vector<16x64xf32>
    %cst_16 = arith.constant 1.000000e+00 : f32
    %28 = vector.broadcast %cst_16 : f32 to vector<16x64xf32>
    %29 = arith.addf %28, %27 : vector<16x64xf32>
    %30 = arith.divf %28, %29 : vector<16x64xf32>
    %31 = arith.mulf %25, %30 : vector<16x64xf32>
    %c2 = arith.constant 2 : index
    %c0_17 = arith.constant 0 : index
    %c0_18 = arith.constant 0 : index
    %32 = vector.load %arg6[%c2, %c0_17, %c0_18] : memref<23x96x64xbf16, #tpu.memory_space<vmem>>, vector<1x96x64xbf16>
    %33 = vector.shape_cast %32 : vector<1x96x64xbf16> to vector<96x64xbf16>
    %34 = vector.extract_strided_slice %33 {offsets = [0, 0], sizes = [64, 64], strides = [1, 1]} : vector<96x64xbf16> to vector<64x64xbf16>
    %35 = arith.truncf %31 : vector<16x64xf32> to vector<16x64xbf16>
    %cst_19 = arith.constant dense<0.000000e+00> : vector<16x64xf32>
    %36 = tpu.matmul %35, %34, %cst_19 {dimension_numbers = #tpu.dot_dimension_numbers<[1], [0], [0], [1], [0, 0, 1, 1], [], []>} : vector<16x64xbf16>, vector<64x64xbf16>, vector<16x64xf32> -> vector<16x64xf32>
    %c2_20 = arith.constant 2 : index
    %c0_21 = arith.constant 0 : index
    %c0_22 = arith.constant 0 : index
    %37 = vector.load %arg7[%c2_20, %c0_21, %c0_22] : memref<21x1x64xf32, #tpu.memory_space<vmem>>, vector<1x1x64xf32>
    %38 = vector.shape_cast %37 : vector<1x1x64xf32> to vector<1x64xf32>
    %39 = vector.broadcast %38 : vector<1x64xf32> to vector<16x64xf32>
    %40 = arith.addf %36, %39 : vector<16x64xf32>
    %41 = vector.extract_strided_slice %40 {offsets = [0, 0], sizes = [16, 32], strides = [1, 1]} : vector<16x64xf32> to vector<16x32xf32>
    %42 = vector.extract_strided_slice %40 {offsets = [0, 32], sizes = [16, 32], strides = [1, 1]} : vector<16x64xf32> to vector<16x32xf32>
    %cst_23 = arith.constant dense<0.000000e+00> : vector<32xf32>
    %43 = vector.multi_reduction <add>, %41, %cst_23 [0] : vector<16x32xf32> to vector<32xf32>
    %44 = vector.shape_cast %43 : vector<32xf32> to vector<1x32xf32>
    %cst_24 = arith.constant 1.600000e+01 : f32
    %45 = vector.broadcast %cst_24 : f32 to vector<1x32xf32>
    %46 = arith.divf %44, %45 : vector<1x32xf32>
    %c3 = arith.constant 3 : index
    %c0_25 = arith.constant 0 : index
    %c0_26 = arith.constant 0 : index
    %47 = vector.load %arg6[%c3, %c0_25, %c0_26] : memref<23x96x64xbf16, #tpu.memory_space<vmem>>, vector<1x96x64xbf16>
    %48 = vector.shape_cast %47 : vector<1x96x64xbf16> to vector<96x64xbf16>
    %49 = vector.extract_strided_slice %48 {offsets = [0, 0], sizes = [8, 32], strides = [1, 1]} : vector<96x64xbf16> to vector<8x32xbf16>
    %50 = arith.truncf %1 : vector<40x8xf32> to vector<40x8xbf16>
    %cst_27 = arith.constant dense<0.000000e+00> : vector<40x32xf32>
    %51 = tpu.matmul %50, %49, %cst_27 {dimension_numbers = #tpu.dot_dimension_numbers<[1], [0], [0], [1], [0, 0, 1, 1], [], []>} : vector<40x8xbf16>, vector<8x32xbf16>, vector<40x32xf32> -> vector<40x32xf32>
    %c3_28 = arith.constant 3 : index
    %c0_29 = arith.constant 0 : index
    %c0_30 = arith.constant 0 : index
    %52 = vector.load %arg7[%c3_28, %c0_29, %c0_30] : memref<21x1x64xf32, #tpu.memory_space<vmem>>, vector<1x1x64xf32>
    %53 = vector.shape_cast %52 : vector<1x1x64xf32> to vector<1x64xf32>
    %54 = vector.extract_strided_slice %53 {offsets = [0, 0], sizes = [1, 32], strides = [1, 1]} : vector<1x64xf32> to vector<1x32xf32>
    %55 = vector.broadcast %54 : vector<1x32xf32> to vector<40x32xf32>
    %56 = arith.addf %51, %55 : vector<40x32xf32>
    %57 = arith.negf %56 : vector<40x32xf32>
    %58 = math.exp %57 : vector<40x32xf32>
    %cst_31 = arith.constant 1.000000e+00 : f32
    %59 = vector.broadcast %cst_31 : f32 to vector<40x32xf32>
    %60 = arith.addf %59, %58 : vector<40x32xf32>
    %61 = arith.divf %59, %60 : vector<40x32xf32>
    %62 = arith.mulf %56, %61 : vector<40x32xf32>
    %c4 = arith.constant 4 : index
    %c0_32 = arith.constant 0 : index
    %c0_33 = arith.constant 0 : index
    %63 = vector.load %arg6[%c4, %c0_32, %c0_33] : memref<23x96x64xbf16, #tpu.memory_space<vmem>>, vector<1x96x64xbf16>
    %64 = vector.shape_cast %63 : vector<1x96x64xbf16> to vector<96x64xbf16>
    %65 = vector.extract_strided_slice %64 {offsets = [0, 0], sizes = [32, 32], strides = [1, 1]} : vector<96x64xbf16> to vector<32x32xbf16>
    %66 = arith.truncf %62 : vector<40x32xf32> to vector<40x32xbf16>
    %cst_34 = arith.constant dense<0.000000e+00> : vector<40x32xf32>
    %67 = tpu.matmul %66, %65, %cst_34 {dimension_numbers = #tpu.dot_dimension_numbers<[1], [0], [0], [1], [0, 0, 1, 1], [], []>} : vector<40x32xbf16>, vector<32x32xbf16>, vector<40x32xf32> -> vector<40x32xf32>
    %c4_35 = arith.constant 4 : index
    %c0_36 = arith.constant 0 : index
    %c0_37 = arith.constant 0 : index
    %68 = vector.load %arg7[%c4_35, %c0_36, %c0_37] : memref<21x1x64xf32, #tpu.memory_space<vmem>>, vector<1x1x64xf32>
    %69 = vector.shape_cast %68 : vector<1x1x64xf32> to vector<1x64xf32>
    %70 = vector.extract_strided_slice %69 {offsets = [0, 0], sizes = [1, 32], strides = [1, 1]} : vector<1x64xf32> to vector<1x32xf32>
    %71 = vector.broadcast %70 : vector<1x32xf32> to vector<40x32xf32>
    %72 = arith.addf %67, %71 : vector<40x32xf32>
    %73 = arith.negf %72 : vector<40x32xf32>
    %74 = math.exp %73 : vector<40x32xf32>
    %cst_38 = arith.constant 1.000000e+00 : f32
    %75 = vector.broadcast %cst_38 : f32 to vector<40x32xf32>
    %76 = arith.addf %75, %74 : vector<40x32xf32>
    %77 = arith.divf %75, %76 : vector<40x32xf32>
    %78 = arith.mulf %72, %77 : vector<40x32xf32>
    %c5 = arith.constant 5 : index
    %c0_39 = arith.constant 0 : index
    %c0_40 = arith.constant 0 : index
    %79 = vector.load %arg6[%c5, %c0_39, %c0_40] : memref<23x96x64xbf16, #tpu.memory_space<vmem>>, vector<1x96x64xbf16>
    %80 = vector.shape_cast %79 : vector<1x96x64xbf16> to vector<96x64xbf16>
    %81 = vector.extract_strided_slice %80 {offsets = [0, 0], sizes = [32, 32], strides = [1, 1]} : vector<96x64xbf16> to vector<32x32xbf16>
    %82 = arith.truncf %78 : vector<40x32xf32> to vector<40x32xbf16>
    %cst_41 = arith.constant dense<0.000000e+00> : vector<40x32xf32>
    %83 = tpu.matmul %82, %81, %cst_41 {dimension_numbers = #tpu.dot_dimension_numbers<[1], [0], [0], [1], [0, 0, 1, 1], [], []>} : vector<40x32xbf16>, vector<32x32xbf16>, vector<40x32xf32> -> vector<40x32xf32>
    %c5_42 = arith.constant 5 : index
    %c0_43 = arith.constant 0 : index
    %c0_44 = arith.constant 0 : index
    %84 = vector.load %arg7[%c5_42, %c0_43, %c0_44] : memref<21x1x64xf32, #tpu.memory_space<vmem>>, vector<1x1x64xf32>
    %85 = vector.shape_cast %84 : vector<1x1x64xf32> to vector<1x64xf32>
    %86 = vector.extract_strided_slice %85 {offsets = [0, 0], sizes = [1, 32], strides = [1, 1]} : vector<1x64xf32> to vector<1x32xf32>
    %87 = vector.broadcast %86 : vector<1x32xf32> to vector<40x32xf32>
    %88 = arith.addf %83, %87 : vector<40x32xf32>
    %89 = tpu.iota {dimensions = array<i32: 1>} : vector<40x16xi32>
    %c0_45 = arith.constant 0 : index
    %c0_46 = arith.constant 0 : index
    %90 = vector.load %arg3[%c0_45, %c0_46] : memref<40x1xi32, #tpu.memory_space<vmem>>, vector<40x1xi32>
    %91 = vector.broadcast %90 : vector<40x1xi32> to vector<40x16xi32>
    %92 = arith.cmpi eq, %89, %91 : vector<40x16xi32>
    %93 = arith.extui %92 : vector<40x16xi1> to vector<40x16xi32>
    %94 = arith.sitofp %93 : vector<40x16xi32> to vector<40x16xf32>
    %95 = arith.truncf %94 : vector<40x16xf32> to vector<40x16xbf16>
    %c0_47 = arith.constant 0 : index
    %c0_48 = arith.constant 0 : index
    %96 = vector.load %arg4[%c0_47, %c0_48] : memref<40x1xi32, #tpu.memory_space<vmem>>, vector<40x1xi32>
    %97 = vector.broadcast %96 : vector<40x1xi32> to vector<40x16xi32>
    %98 = arith.cmpi eq, %89, %97 : vector<40x16xi32>
    %99 = arith.extui %98 : vector<40x16xi1> to vector<40x16xi32>
    %100 = arith.sitofp %99 : vector<40x16xi32> to vector<40x16xf32>
    %101 = arith.truncf %100 : vector<40x16xf32> to vector<40x16xbf16>
    %102 = tpu.iota {dimensions = array<i32: 1>} : vector<16x40xi32>
    %c0_49 = arith.constant 0 : index
    %c0_50 = arith.constant 0 : index
    %103 = vector.load %arg5[%c0_49, %c0_50] : memref<1x40xi32, #tpu.memory_space<vmem>>, vector<1x40xi32>
    %104 = vector.broadcast %103 : vector<1x40xi32> to vector<16x40xi32>
    %105 = arith.cmpi eq, %102, %104 : vector<16x40xi32>
    %106 = arith.extui %105 : vector<16x40xi1> to vector<16x40xi32>
    %107 = arith.sitofp %106 : vector<16x40xi32> to vector<16x40xf32>
    %108 = arith.truncf %107 : vector<16x40xf32> to vector<16x40xbf16>
    %c7 = arith.constant 7 : index
    %c0_51 = arith.constant 0 : index
    %c0_52 = arith.constant 0 : index
    %109 = vector.load %arg6[%c7, %c0_51, %c0_52] : memref<23x96x64xbf16, #tpu.memory_space<vmem>>, vector<1x96x64xbf16>
    %110 = vector.shape_cast %109 : vector<1x96x64xbf16> to vector<96x64xbf16>
    %111 = vector.extract_strided_slice %110 {offsets = [0, 0], sizes = [32, 64], strides = [1, 1]} : vector<96x64xbf16> to vector<32x64xbf16>
    %112 = arith.truncf %42 : vector<16x32xf32> to vector<16x32xbf16>
    %cst_53 = arith.constant dense<0.000000e+00> : vector<16x64xf32>
    %113 = tpu.matmul %112, %111, %cst_53 {dimension_numbers = #tpu.dot_dimension_numbers<[1], [0], [0], [1], [0, 0, 1, 1], [], []>} : vector<16x32xbf16>, vector<32x64xbf16>, vector<16x64xf32> -> vector<16x64xf32>
    %c6 = arith.constant 6 : index
    %c0_54 = arith.constant 0 : index
    %c0_55 = arith.constant 0 : index
    %114 = vector.load %arg6[%c6, %c0_54, %c0_55] : memref<23x96x64xbf16, #tpu.memory_space<vmem>>, vector<1x96x64xbf16>
    %115 = vector.shape_cast %114 : vector<1x96x64xbf16> to vector<96x64xbf16>
    %116 = vector.extract_strided_slice %115 {offsets = [0, 0], sizes = [32, 32], strides = [1, 1]} : vector<96x64xbf16> to vector<32x32xbf16>
    %117 = arith.truncf %88 : vector<40x32xf32> to vector<40x32xbf16>
    %cst_56 = arith.constant dense<0.000000e+00> : vector<40x32xf32>
    %118 = tpu.matmul %117, %116, %cst_56 {dimension_numbers = #tpu.dot_dimension_numbers<[1], [0], [0], [1], [0, 0, 1, 1], [], []>} : vector<40x32xbf16>, vector<32x32xbf16>, vector<40x32xf32> -> vector<40x32xf32>
    %119 = vector.extract_strided_slice %113 {offsets = [0, 0], sizes = [16, 32], strides = [1, 1]} : vector<16x64xf32> to vector<16x32xf32>
    %120 = arith.truncf %119 : vector<16x32xf32> to vector<16x32xbf16>
    %cst_57 = arith.constant dense<0.000000e+00> : vector<40x32xf32>
    %121 = tpu.matmul %95, %120, %cst_57 {dimension_numbers = #tpu.dot_dimension_numbers<[1], [0], [0], [1], [0, 0, 1, 1], [], []>} : vector<40x16xbf16>, vector<16x32xbf16>, vector<40x32xf32> -> vector<40x32xf32>
    %122 = arith.addf %118, %121 : vector<40x32xf32>
    %123 = vector.extract_strided_slice %113 {offsets = [0, 32], sizes = [16, 32], strides = [1, 1]} : vector<16x64xf32> to vector<16x32xf32>
    %124 = arith.truncf %123 : vector<16x32xf32> to vector<16x32xbf16>
    %cst_58 = arith.constant dense<0.000000e+00> : vector<40x32xf32>
    %125 = tpu.matmul %101, %124, %cst_58 {dimension_numbers = #tpu.dot_dimension_numbers<[1], [0], [0], [1], [0, 0, 1, 1], [], []>} : vector<40x16xbf16>, vector<16x32xbf16>, vector<40x32xf32> -> vector<40x32xf32>
    %126 = arith.addf %122, %125 : vector<40x32xf32>
    %c6_59 = arith.constant 6 : index
    %c0_60 = arith.constant 0 : index
    %c0_61 = arith.constant 0 : index
    %127 = vector.load %arg7[%c6_59, %c0_60, %c0_61] : memref<21x1x64xf32, #tpu.memory_space<vmem>>, vector<1x1x64xf32>
    %128 = vector.shape_cast %127 : vector<1x1x64xf32> to vector<1x64xf32>
    %129 = vector.extract_strided_slice %128 {offsets = [0, 0], sizes = [1, 32], strides = [1, 1]} : vector<1x64xf32> to vector<1x32xf32>
    %130 = vector.broadcast %129 : vector<1x32xf32> to vector<40x32xf32>
    %131 = arith.addf %126, %130 : vector<40x32xf32>
    %132 = arith.negf %131 : vector<40x32xf32>
    %133 = math.exp %132 : vector<40x32xf32>
    %cst_62 = arith.constant 1.000000e+00 : f32
    %134 = vector.broadcast %cst_62 : f32 to vector<40x32xf32>
    %135 = arith.addf %134, %133 : vector<40x32xf32>
    %136 = arith.divf %134, %135 : vector<40x32xf32>
    %137 = arith.mulf %131, %136 : vector<40x32xf32>
    %c8 = arith.constant 8 : index
    %c0_63 = arith.constant 0 : index
    %c0_64 = arith.constant 0 : index
    %138 = vector.load %arg6[%c8, %c0_63, %c0_64] : memref<23x96x64xbf16, #tpu.memory_space<vmem>>, vector<1x96x64xbf16>
    %139 = vector.shape_cast %138 : vector<1x96x64xbf16> to vector<96x64xbf16>
    %140 = vector.extract_strided_slice %139 {offsets = [0, 0], sizes = [32, 32], strides = [1, 1]} : vector<96x64xbf16> to vector<32x32xbf16>
    %141 = arith.truncf %137 : vector<40x32xf32> to vector<40x32xbf16>
    %cst_65 = arith.constant dense<0.000000e+00> : vector<40x32xf32>
    %142 = tpu.matmul %141, %140, %cst_65 {dimension_numbers = #tpu.dot_dimension_numbers<[1], [0], [0], [1], [0, 0, 1, 1], [], []>} : vector<40x32xbf16>, vector<32x32xbf16>, vector<40x32xf32> -> vector<40x32xf32>
    %c7_66 = arith.constant 7 : index
    %c0_67 = arith.constant 0 : index
    %c0_68 = arith.constant 0 : index
    %143 = vector.load %arg7[%c7_66, %c0_67, %c0_68] : memref<21x1x64xf32, #tpu.memory_space<vmem>>, vector<1x1x64xf32>
    %144 = vector.shape_cast %143 : vector<1x1x64xf32> to vector<1x64xf32>
    %145 = vector.extract_strided_slice %144 {offsets = [0, 0], sizes = [1, 32], strides = [1, 1]} : vector<1x64xf32> to vector<1x32xf32>
    %146 = vector.broadcast %145 : vector<1x32xf32> to vector<40x32xf32>
    %147 = arith.addf %142, %146 : vector<40x32xf32>
    %148 = arith.negf %147 : vector<40x32xf32>
    %149 = math.exp %148 : vector<40x32xf32>
    %cst_69 = arith.constant 1.000000e+00 : f32
    %150 = vector.broadcast %cst_69 : f32 to vector<40x32xf32>
    %151 = arith.addf %150, %149 : vector<40x32xf32>
    %152 = arith.divf %150, %151 : vector<40x32xf32>
    %153 = arith.mulf %147, %152 : vector<40x32xf32>
    %c9 = arith.constant 9 : index
    %c0_70 = arith.constant 0 : index
    %c0_71 = arith.constant 0 : index
    %154 = vector.load %arg6[%c9, %c0_70, %c0_71] : memref<23x96x64xbf16, #tpu.memory_space<vmem>>, vector<1x96x64xbf16>
    %155 = vector.shape_cast %154 : vector<1x96x64xbf16> to vector<96x64xbf16>
    %156 = vector.extract_strided_slice %155 {offsets = [0, 0], sizes = [32, 32], strides = [1, 1]} : vector<96x64xbf16> to vector<32x32xbf16>
    %157 = arith.truncf %153 : vector<40x32xf32> to vector<40x32xbf16>
    %cst_72 = arith.constant dense<0.000000e+00> : vector<40x32xf32>
    %158 = tpu.matmul %157, %156, %cst_72 {dimension_numbers = #tpu.dot_dimension_numbers<[1], [0], [0], [1], [0, 0, 1, 1], [], []>} : vector<40x32xbf16>, vector<32x32xbf16>, vector<40x32xf32> -> vector<40x32xf32>
    %c8_73 = arith.constant 8 : index
    %c0_74 = arith.constant 0 : index
    %c0_75 = arith.constant 0 : index
    %159 = vector.load %arg7[%c8_73, %c0_74, %c0_75] : memref<21x1x64xf32, #tpu.memory_space<vmem>>, vector<1x1x64xf32>
    %160 = vector.shape_cast %159 : vector<1x1x64xf32> to vector<1x64xf32>
    %161 = vector.extract_strided_slice %160 {offsets = [0, 0], sizes = [1, 32], strides = [1, 1]} : vector<1x64xf32> to vector<1x32xf32>
    %162 = vector.broadcast %161 : vector<1x32xf32> to vector<40x32xf32>
    %163 = arith.addf %158, %162 : vector<40x32xf32>
    %164 = arith.truncf %163 : vector<40x32xf32> to vector<40x32xbf16>
    %cst_76 = arith.constant dense<0.000000e+00> : vector<16x32xf32>
    %165 = tpu.matmul %108, %164, %cst_76 {dimension_numbers = #tpu.dot_dimension_numbers<[1], [0], [0], [1], [0, 0, 1, 1], [], []>} : vector<16x40xbf16>, vector<40x32xbf16>, vector<16x32xf32> -> vector<16x32xf32>
    %c10 = arith.constant 10 : index
    %c0_77 = arith.constant 0 : index
    %c0_78 = arith.constant 0 : index
    %166 = vector.load %arg6[%c10, %c0_77, %c0_78] : memref<23x96x64xbf16, #tpu.memory_space<vmem>>, vector<1x96x64xbf16>
    %167 = vector.shape_cast %166 : vector<1x96x64xbf16> to vector<96x64xbf16>
    %168 = vector.extract_strided_slice %167 {offsets = [0, 0], sizes = [96, 32], strides = [1, 1]} : vector<96x64xbf16> to vector<96x32xbf16>
    %169 = vector.extract_strided_slice %168 {offsets = [0, 0], sizes = [32, 32], strides = [1, 1]} : vector<96x32xbf16> to vector<32x32xbf16>
    %170 = arith.truncf %42 : vector<16x32xf32> to vector<16x32xbf16>
    %cst_79 = arith.constant dense<0.000000e+00> : vector<16x32xf32>
    %171 = tpu.matmul %170, %169, %cst_79 {dimension_numbers = #tpu.dot_dimension_numbers<[1], [0], [0], [1], [0, 0, 1, 1], [], []>} : vector<16x32xbf16>, vector<32x32xbf16>, vector<16x32xf32> -> vector<16x32xf32>
    %172 = vector.extract_strided_slice %168 {offsets = [32, 0], sizes = [32, 32], strides = [1, 1]} : vector<96x32xbf16> to vector<32x32xbf16>
    %173 = arith.truncf %165 : vector<16x32xf32> to vector<16x32xbf16>
    %cst_80 = arith.constant dense<0.000000e+00> : vector<16x32xf32>
    %174 = tpu.matmul %173, %172, %cst_80 {dimension_numbers = #tpu.dot_dimension_numbers<[1], [0], [0], [1], [0, 0, 1, 1], [], []>} : vector<16x32xbf16>, vector<32x32xbf16>, vector<16x32xf32> -> vector<16x32xf32>
    %175 = arith.addf %171, %174 : vector<16x32xf32>
    %176 = vector.extract_strided_slice %168 {offsets = [64, 0], sizes = [32, 32], strides = [1, 1]} : vector<96x32xbf16> to vector<32x32xbf16>
    %177 = arith.truncf %46 : vector<1x32xf32> to vector<1x32xbf16>
    %cst_81 = arith.constant dense<0.000000e+00> : vector<1x32xf32>
    %178 = tpu.matmul %177, %176, %cst_81 {dimension_numbers = #tpu.dot_dimension_numbers<[1], [0], [0], [1], [0, 0, 1, 1], [], []>} : vector<1x32xbf16>, vector<32x32xbf16>, vector<1x32xf32> -> vector<1x32xf32>
    %179 = vector.broadcast %178 : vector<1x32xf32> to vector<16x32xf32>
    %180 = arith.addf %175, %179 : vector<16x32xf32>
    %c9_82 = arith.constant 9 : index
    %c0_83 = arith.constant 0 : index
    %c0_84 = arith.constant 0 : index
    %181 = vector.load %arg7[%c9_82, %c0_83, %c0_84] : memref<21x1x64xf32, #tpu.memory_space<vmem>>, vector<1x1x64xf32>
    %182 = vector.shape_cast %181 : vector<1x1x64xf32> to vector<1x64xf32>
    %183 = vector.extract_strided_slice %182 {offsets = [0, 0], sizes = [1, 32], strides = [1, 1]} : vector<1x64xf32> to vector<1x32xf32>
    %184 = vector.broadcast %183 : vector<1x32xf32> to vector<16x32xf32>
    %185 = arith.addf %180, %184 : vector<16x32xf32>
    %186 = arith.negf %185 : vector<16x32xf32>
    %187 = math.exp %186 : vector<16x32xf32>
    %cst_85 = arith.constant 1.000000e+00 : f32
    %188 = vector.broadcast %cst_85 : f32 to vector<16x32xf32>
    %189 = arith.addf %188, %187 : vector<16x32xf32>
    %190 = arith.divf %188, %189 : vector<16x32xf32>
    %191 = arith.mulf %185, %190 : vector<16x32xf32>
    %c11 = arith.constant 11 : index
    %c0_86 = arith.constant 0 : index
    %c0_87 = arith.constant 0 : index
    %192 = vector.load %arg6[%c11, %c0_86, %c0_87] : memref<23x96x64xbf16, #tpu.memory_space<vmem>>, vector<1x96x64xbf16>
    %193 = vector.shape_cast %192 : vector<1x96x64xbf16> to vector<96x64xbf16>
    %194 = vector.extract_strided_slice %193 {offsets = [0, 0], sizes = [32, 32], strides = [1, 1]} : vector<96x64xbf16> to vector<32x32xbf16>
    %195 = arith.truncf %191 : vector<16x32xf32> to vector<16x32xbf16>
    %cst_88 = arith.constant dense<0.000000e+00> : vector<16x32xf32>
    %196 = tpu.matmul %195, %194, %cst_88 {dimension_numbers = #tpu.dot_dimension_numbers<[1], [0], [0], [1], [0, 0, 1, 1], [], []>} : vector<16x32xbf16>, vector<32x32xbf16>, vector<16x32xf32> -> vector<16x32xf32>
    %c10_89 = arith.constant 10 : index
    %c0_90 = arith.constant 0 : index
    %c0_91 = arith.constant 0 : index
    %197 = vector.load %arg7[%c10_89, %c0_90, %c0_91] : memref<21x1x64xf32, #tpu.memory_space<vmem>>, vector<1x1x64xf32>
    %198 = vector.shape_cast %197 : vector<1x1x64xf32> to vector<1x64xf32>
    %199 = vector.extract_strided_slice %198 {offsets = [0, 0], sizes = [1, 32], strides = [1, 1]} : vector<1x64xf32> to vector<1x32xf32>
    %200 = vector.broadcast %199 : vector<1x32xf32> to vector<16x32xf32>
    %201 = arith.addf %196, %200 : vector<16x32xf32>
    %202 = arith.negf %201 : vector<16x32xf32>
    %203 = math.exp %202 : vector<16x32xf32>
    %cst_92 = arith.constant 1.000000e+00 : f32
    %204 = vector.broadcast %cst_92 : f32 to vector<16x32xf32>
    %205 = arith.addf %204, %203 : vector<16x32xf32>
    %206 = arith.divf %204, %205 : vector<16x32xf32>
    %207 = arith.mulf %201, %206 : vector<16x32xf32>
    %c12 = arith.constant 12 : index
    %c0_93 = arith.constant 0 : index
    %c0_94 = arith.constant 0 : index
    %208 = vector.load %arg6[%c12, %c0_93, %c0_94] : memref<23x96x64xbf16, #tpu.memory_space<vmem>>, vector<1x96x64xbf16>
    %209 = vector.shape_cast %208 : vector<1x96x64xbf16> to vector<96x64xbf16>
    %210 = vector.extract_strided_slice %209 {offsets = [0, 0], sizes = [32, 32], strides = [1, 1]} : vector<96x64xbf16> to vector<32x32xbf16>
    %211 = arith.truncf %207 : vector<16x32xf32> to vector<16x32xbf16>
    %cst_95 = arith.constant dense<0.000000e+00> : vector<16x32xf32>
    %212 = tpu.matmul %211, %210, %cst_95 {dimension_numbers = #tpu.dot_dimension_numbers<[1], [0], [0], [1], [0, 0, 1, 1], [], []>} : vector<16x32xbf16>, vector<32x32xbf16>, vector<16x32xf32> -> vector<16x32xf32>
    %c11_96 = arith.constant 11 : index
    %c0_97 = arith.constant 0 : index
    %c0_98 = arith.constant 0 : index
    %213 = vector.load %arg7[%c11_96, %c0_97, %c0_98] : memref<21x1x64xf32, #tpu.memory_space<vmem>>, vector<1x1x64xf32>
    %214 = vector.shape_cast %213 : vector<1x1x64xf32> to vector<1x64xf32>
    %215 = vector.extract_strided_slice %214 {offsets = [0, 0], sizes = [1, 32], strides = [1, 1]} : vector<1x64xf32> to vector<1x32xf32>
    %216 = vector.broadcast %215 : vector<1x32xf32> to vector<16x32xf32>
    %217 = arith.addf %212, %216 : vector<16x32xf32>
    %218 = arith.addf %42, %217 : vector<16x32xf32>
    %219 = arith.addf %88, %163 : vector<40x32xf32>
    %c14 = arith.constant 14 : index
    %c0_99 = arith.constant 0 : index
    %c0_100 = arith.constant 0 : index
    %220 = vector.load %arg6[%c14, %c0_99, %c0_100] : memref<23x96x64xbf16, #tpu.memory_space<vmem>>, vector<1x96x64xbf16>
    %221 = vector.shape_cast %220 : vector<1x96x64xbf16> to vector<96x64xbf16>
    %222 = vector.extract_strided_slice %221 {offsets = [0, 0], sizes = [32, 64], strides = [1, 1]} : vector<96x64xbf16> to vector<32x64xbf16>
    %223 = arith.truncf %218 : vector<16x32xf32> to vector<16x32xbf16>
    %cst_101 = arith.constant dense<0.000000e+00> : vector<16x64xf32>
    %224 = tpu.matmul %223, %222, %cst_101 {dimension_numbers = #tpu.dot_dimension_numbers<[1], [0], [0], [1], [0, 0, 1, 1], [], []>} : vector<16x32xbf16>, vector<32x64xbf16>, vector<16x64xf32> -> vector<16x64xf32>
    %c13 = arith.constant 13 : index
    %c0_102 = arith.constant 0 : index
    %c0_103 = arith.constant 0 : index
    %225 = vector.load %arg6[%c13, %c0_102, %c0_103] : memref<23x96x64xbf16, #tpu.memory_space<vmem>>, vector<1x96x64xbf16>
    %226 = vector.shape_cast %225 : vector<1x96x64xbf16> to vector<96x64xbf16>
    %227 = vector.extract_strided_slice %226 {offsets = [0, 0], sizes = [32, 32], strides = [1, 1]} : vector<96x64xbf16> to vector<32x32xbf16>
    %228 = arith.truncf %219 : vector<40x32xf32> to vector<40x32xbf16>
    %cst_104 = arith.constant dense<0.000000e+00> : vector<40x32xf32>
    %229 = tpu.matmul %228, %227, %cst_104 {dimension_numbers = #tpu.dot_dimension_numbers<[1], [0], [0], [1], [0, 0, 1, 1], [], []>} : vector<40x32xbf16>, vector<32x32xbf16>, vector<40x32xf32> -> vector<40x32xf32>
    %230 = vector.extract_strided_slice %224 {offsets = [0, 0], sizes = [16, 32], strides = [1, 1]} : vector<16x64xf32> to vector<16x32xf32>
    %231 = arith.truncf %230 : vector<16x32xf32> to vector<16x32xbf16>
    %cst_105 = arith.constant dense<0.000000e+00> : vector<40x32xf32>
    %232 = tpu.matmul %95, %231, %cst_105 {dimension_numbers = #tpu.dot_dimension_numbers<[1], [0], [0], [1], [0, 0, 1, 1], [], []>} : vector<40x16xbf16>, vector<16x32xbf16>, vector<40x32xf32> -> vector<40x32xf32>
    %233 = arith.addf %229, %232 : vector<40x32xf32>
    %234 = vector.extract_strided_slice %224 {offsets = [0, 32], sizes = [16, 32], strides = [1, 1]} : vector<16x64xf32> to vector<16x32xf32>
    %235 = arith.truncf %234 : vector<16x32xf32> to vector<16x32xbf16>
    %cst_106 = arith.constant dense<0.000000e+00> : vector<40x32xf32>
    %236 = tpu.matmul %101, %235, %cst_106 {dimension_numbers = #tpu.dot_dimension_numbers<[1], [0], [0], [1], [0, 0, 1, 1], [], []>} : vector<40x16xbf16>, vector<16x32xbf16>, vector<40x32xf32> -> vector<40x32xf32>
    %237 = arith.addf %233, %236 : vector<40x32xf32>
    %c12_107 = arith.constant 12 : index
    %c0_108 = arith.constant 0 : index
    %c0_109 = arith.constant 0 : index
    %238 = vector.load %arg7[%c12_107, %c0_108, %c0_109] : memref<21x1x64xf32, #tpu.memory_space<vmem>>, vector<1x1x64xf32>
    %239 = vector.shape_cast %238 : vector<1x1x64xf32> to vector<1x64xf32>
    %240 = vector.extract_strided_slice %239 {offsets = [0, 0], sizes = [1, 32], strides = [1, 1]} : vector<1x64xf32> to vector<1x32xf32>
    %241 = vector.broadcast %240 : vector<1x32xf32> to vector<40x32xf32>
    %242 = arith.addf %237, %241 : vector<40x32xf32>
    %243 = arith.negf %242 : vector<40x32xf32>
    %244 = math.exp %243 : vector<40x32xf32>
    %cst_110 = arith.constant 1.000000e+00 : f32
    %245 = vector.broadcast %cst_110 : f32 to vector<40x32xf32>
    %246 = arith.addf %245, %244 : vector<40x32xf32>
    %247 = arith.divf %245, %246 : vector<40x32xf32>
    %248 = arith.mulf %242, %247 : vector<40x32xf32>
    %c15 = arith.constant 15 : index
    %c0_111 = arith.constant 0 : index
    %c0_112 = arith.constant 0 : index
    %249 = vector.load %arg6[%c15, %c0_111, %c0_112] : memref<23x96x64xbf16, #tpu.memory_space<vmem>>, vector<1x96x64xbf16>
    %250 = vector.shape_cast %249 : vector<1x96x64xbf16> to vector<96x64xbf16>
    %251 = vector.extract_strided_slice %250 {offsets = [0, 0], sizes = [32, 32], strides = [1, 1]} : vector<96x64xbf16> to vector<32x32xbf16>
    %252 = arith.truncf %248 : vector<40x32xf32> to vector<40x32xbf16>
    %cst_113 = arith.constant dense<0.000000e+00> : vector<40x32xf32>
    %253 = tpu.matmul %252, %251, %cst_113 {dimension_numbers = #tpu.dot_dimension_numbers<[1], [0], [0], [1], [0, 0, 1, 1], [], []>} : vector<40x32xbf16>, vector<32x32xbf16>, vector<40x32xf32> -> vector<40x32xf32>
    %c13_114 = arith.constant 13 : index
    %c0_115 = arith.constant 0 : index
    %c0_116 = arith.constant 0 : index
    %254 = vector.load %arg7[%c13_114, %c0_115, %c0_116] : memref<21x1x64xf32, #tpu.memory_space<vmem>>, vector<1x1x64xf32>
    %255 = vector.shape_cast %254 : vector<1x1x64xf32> to vector<1x64xf32>
    %256 = vector.extract_strided_slice %255 {offsets = [0, 0], sizes = [1, 32], strides = [1, 1]} : vector<1x64xf32> to vector<1x32xf32>
    %257 = vector.broadcast %256 : vector<1x32xf32> to vector<40x32xf32>
    %258 = arith.addf %253, %257 : vector<40x32xf32>
    %259 = arith.negf %258 : vector<40x32xf32>
    %260 = math.exp %259 : vector<40x32xf32>
    %cst_117 = arith.constant 1.000000e+00 : f32
    %261 = vector.broadcast %cst_117 : f32 to vector<40x32xf32>
    %262 = arith.addf %261, %260 : vector<40x32xf32>
    %263 = arith.divf %261, %262 : vector<40x32xf32>
    %264 = arith.mulf %258, %263 : vector<40x32xf32>
    %c16 = arith.constant 16 : index
    %c0_118 = arith.constant 0 : index
    %c0_119 = arith.constant 0 : index
    %265 = vector.load %arg6[%c16, %c0_118, %c0_119] : memref<23x96x64xbf16, #tpu.memory_space<vmem>>, vector<1x96x64xbf16>
    %266 = vector.shape_cast %265 : vector<1x96x64xbf16> to vector<96x64xbf16>
    %267 = vector.extract_strided_slice %266 {offsets = [0, 0], sizes = [32, 32], strides = [1, 1]} : vector<96x64xbf16> to vector<32x32xbf16>
    %268 = arith.truncf %264 : vector<40x32xf32> to vector<40x32xbf16>
    %cst_120 = arith.constant dense<0.000000e+00> : vector<40x32xf32>
    %269 = tpu.matmul %268, %267, %cst_120 {dimension_numbers = #tpu.dot_dimension_numbers<[1], [0], [0], [1], [0, 0, 1, 1], [], []>} : vector<40x32xbf16>, vector<32x32xbf16>, vector<40x32xf32> -> vector<40x32xf32>
    %c14_121 = arith.constant 14 : index
    %c0_122 = arith.constant 0 : index
    %c0_123 = arith.constant 0 : index
    %270 = vector.load %arg7[%c14_121, %c0_122, %c0_123] : memref<21x1x64xf32, #tpu.memory_space<vmem>>, vector<1x1x64xf32>
    %271 = vector.shape_cast %270 : vector<1x1x64xf32> to vector<1x64xf32>
    %272 = vector.extract_strided_slice %271 {offsets = [0, 0], sizes = [1, 32], strides = [1, 1]} : vector<1x64xf32> to vector<1x32xf32>
    %273 = vector.broadcast %272 : vector<1x32xf32> to vector<40x32xf32>
    %274 = arith.addf %269, %273 : vector<40x32xf32>
    %275 = arith.truncf %274 : vector<40x32xf32> to vector<40x32xbf16>
    %cst_124 = arith.constant dense<0.000000e+00> : vector<16x32xf32>
    %276 = tpu.matmul %108, %275, %cst_124 {dimension_numbers = #tpu.dot_dimension_numbers<[1], [0], [0], [1], [0, 0, 1, 1], [], []>} : vector<16x40xbf16>, vector<40x32xbf16>, vector<16x32xf32> -> vector<16x32xf32>
    %c17 = arith.constant 17 : index
    %c0_125 = arith.constant 0 : index
    %c0_126 = arith.constant 0 : index
    %277 = vector.load %arg6[%c17, %c0_125, %c0_126] : memref<23x96x64xbf16, #tpu.memory_space<vmem>>, vector<1x96x64xbf16>
    %278 = vector.shape_cast %277 : vector<1x96x64xbf16> to vector<96x64xbf16>
    %279 = vector.extract_strided_slice %278 {offsets = [0, 0], sizes = [96, 32], strides = [1, 1]} : vector<96x64xbf16> to vector<96x32xbf16>
    %280 = vector.extract_strided_slice %279 {offsets = [0, 0], sizes = [32, 32], strides = [1, 1]} : vector<96x32xbf16> to vector<32x32xbf16>
    %281 = arith.truncf %218 : vector<16x32xf32> to vector<16x32xbf16>
    %cst_127 = arith.constant dense<0.000000e+00> : vector<16x32xf32>
    %282 = tpu.matmul %281, %280, %cst_127 {dimension_numbers = #tpu.dot_dimension_numbers<[1], [0], [0], [1], [0, 0, 1, 1], [], []>} : vector<16x32xbf16>, vector<32x32xbf16>, vector<16x32xf32> -> vector<16x32xf32>
    %283 = vector.extract_strided_slice %279 {offsets = [32, 0], sizes = [32, 32], strides = [1, 1]} : vector<96x32xbf16> to vector<32x32xbf16>
    %284 = arith.truncf %276 : vector<16x32xf32> to vector<16x32xbf16>
    %cst_128 = arith.constant dense<0.000000e+00> : vector<16x32xf32>
    %285 = tpu.matmul %284, %283, %cst_128 {dimension_numbers = #tpu.dot_dimension_numbers<[1], [0], [0], [1], [0, 0, 1, 1], [], []>} : vector<16x32xbf16>, vector<32x32xbf16>, vector<16x32xf32> -> vector<16x32xf32>
    %286 = arith.addf %282, %285 : vector<16x32xf32>
    %287 = vector.extract_strided_slice %279 {offsets = [64, 0], sizes = [32, 32], strides = [1, 1]} : vector<96x32xbf16> to vector<32x32xbf16>
    %288 = arith.truncf %46 : vector<1x32xf32> to vector<1x32xbf16>
    %cst_129 = arith.constant dense<0.000000e+00> : vector<1x32xf32>
    %289 = tpu.matmul %288, %287, %cst_129 {dimension_numbers = #tpu.dot_dimension_numbers<[1], [0], [0], [1], [0, 0, 1, 1], [], []>} : vector<1x32xbf16>, vector<32x32xbf16>, vector<1x32xf32> -> vector<1x32xf32>
    %290 = vector.broadcast %289 : vector<1x32xf32> to vector<16x32xf32>
    %291 = arith.addf %286, %290 : vector<16x32xf32>
    %c15_130 = arith.constant 15 : index
    %c0_131 = arith.constant 0 : index
    %c0_132 = arith.constant 0 : index
    %292 = vector.load %arg7[%c15_130, %c0_131, %c0_132] : memref<21x1x64xf32, #tpu.memory_space<vmem>>, vector<1x1x64xf32>
    %293 = vector.shape_cast %292 : vector<1x1x64xf32> to vector<1x64xf32>
    %294 = vector.extract_strided_slice %293 {offsets = [0, 0], sizes = [1, 32], strides = [1, 1]} : vector<1x64xf32> to vector<1x32xf32>
    %295 = vector.broadcast %294 : vector<1x32xf32> to vector<16x32xf32>
    %296 = arith.addf %291, %295 : vector<16x32xf32>
    %297 = arith.negf %296 : vector<16x32xf32>
    %298 = math.exp %297 : vector<16x32xf32>
    %cst_133 = arith.constant 1.000000e+00 : f32
    %299 = vector.broadcast %cst_133 : f32 to vector<16x32xf32>
    %300 = arith.addf %299, %298 : vector<16x32xf32>
    %301 = arith.divf %299, %300 : vector<16x32xf32>
    %302 = arith.mulf %296, %301 : vector<16x32xf32>
    %c18 = arith.constant 18 : index
    %c0_134 = arith.constant 0 : index
    %c0_135 = arith.constant 0 : index
    %303 = vector.load %arg6[%c18, %c0_134, %c0_135] : memref<23x96x64xbf16, #tpu.memory_space<vmem>>, vector<1x96x64xbf16>
    %304 = vector.shape_cast %303 : vector<1x96x64xbf16> to vector<96x64xbf16>
    %305 = vector.extract_strided_slice %304 {offsets = [0, 0], sizes = [32, 32], strides = [1, 1]} : vector<96x64xbf16> to vector<32x32xbf16>
    %306 = arith.truncf %302 : vector<16x32xf32> to vector<16x32xbf16>
    %cst_136 = arith.constant dense<0.000000e+00> : vector<16x32xf32>
    %307 = tpu.matmul %306, %305, %cst_136 {dimension_numbers = #tpu.dot_dimension_numbers<[1], [0], [0], [1], [0, 0, 1, 1], [], []>} : vector<16x32xbf16>, vector<32x32xbf16>, vector<16x32xf32> -> vector<16x32xf32>
    %c16_137 = arith.constant 16 : index
    %c0_138 = arith.constant 0 : index
    %c0_139 = arith.constant 0 : index
    %308 = vector.load %arg7[%c16_137, %c0_138, %c0_139] : memref<21x1x64xf32, #tpu.memory_space<vmem>>, vector<1x1x64xf32>
    %309 = vector.shape_cast %308 : vector<1x1x64xf32> to vector<1x64xf32>
    %310 = vector.extract_strided_slice %309 {offsets = [0, 0], sizes = [1, 32], strides = [1, 1]} : vector<1x64xf32> to vector<1x32xf32>
    %311 = vector.broadcast %310 : vector<1x32xf32> to vector<16x32xf32>
    %312 = arith.addf %307, %311 : vector<16x32xf32>
    %313 = arith.negf %312 : vector<16x32xf32>
    %314 = math.exp %313 : vector<16x32xf32>
    %cst_140 = arith.constant 1.000000e+00 : f32
    %315 = vector.broadcast %cst_140 : f32 to vector<16x32xf32>
    %316 = arith.addf %315, %314 : vector<16x32xf32>
    %317 = arith.divf %315, %316 : vector<16x32xf32>
    %318 = arith.mulf %312, %317 : vector<16x32xf32>
    %c19 = arith.constant 19 : index
    %c0_141 = arith.constant 0 : index
    %c0_142 = arith.constant 0 : index
    %319 = vector.load %arg6[%c19, %c0_141, %c0_142] : memref<23x96x64xbf16, #tpu.memory_space<vmem>>, vector<1x96x64xbf16>
    %320 = vector.shape_cast %319 : vector<1x96x64xbf16> to vector<96x64xbf16>
    %321 = vector.extract_strided_slice %320 {offsets = [0, 0], sizes = [32, 32], strides = [1, 1]} : vector<96x64xbf16> to vector<32x32xbf16>
    %322 = arith.truncf %318 : vector<16x32xf32> to vector<16x32xbf16>
    %cst_143 = arith.constant dense<0.000000e+00> : vector<16x32xf32>
    %323 = tpu.matmul %322, %321, %cst_143 {dimension_numbers = #tpu.dot_dimension_numbers<[1], [0], [0], [1], [0, 0, 1, 1], [], []>} : vector<16x32xbf16>, vector<32x32xbf16>, vector<16x32xf32> -> vector<16x32xf32>
    %c17_144 = arith.constant 17 : index
    %c0_145 = arith.constant 0 : index
    %c0_146 = arith.constant 0 : index
    %324 = vector.load %arg7[%c17_144, %c0_145, %c0_146] : memref<21x1x64xf32, #tpu.memory_space<vmem>>, vector<1x1x64xf32>
    %325 = vector.shape_cast %324 : vector<1x1x64xf32> to vector<1x64xf32>
    %326 = vector.extract_strided_slice %325 {offsets = [0, 0], sizes = [1, 32], strides = [1, 1]} : vector<1x64xf32> to vector<1x32xf32>
    %327 = vector.broadcast %326 : vector<1x32xf32> to vector<16x32xf32>
    %328 = arith.addf %323, %327 : vector<16x32xf32>
    %329 = arith.addf %218, %328 : vector<16x32xf32>
    %c20 = arith.constant 20 : index
    %c0_147 = arith.constant 0 : index
    %c0_148 = arith.constant 0 : index
    %330 = vector.load %arg6[%c20, %c0_147, %c0_148] : memref<23x96x64xbf16, #tpu.memory_space<vmem>>, vector<1x96x64xbf16>
    %331 = vector.shape_cast %330 : vector<1x96x64xbf16> to vector<96x64xbf16>
    %332 = vector.extract_strided_slice %331 {offsets = [0, 0], sizes = [32, 32], strides = [1, 1]} : vector<96x64xbf16> to vector<32x32xbf16>
    %333 = arith.truncf %329 : vector<16x32xf32> to vector<16x32xbf16>
    %cst_149 = arith.constant dense<0.000000e+00> : vector<16x32xf32>
    %334 = tpu.matmul %333, %332, %cst_149 {dimension_numbers = #tpu.dot_dimension_numbers<[1], [0], [0], [1], [0, 0, 1, 1], [], []>} : vector<16x32xbf16>, vector<32x32xbf16>, vector<16x32xf32> -> vector<16x32xf32>
    %c18_150 = arith.constant 18 : index
    %c0_151 = arith.constant 0 : index
    %c0_152 = arith.constant 0 : index
    %335 = vector.load %arg7[%c18_150, %c0_151, %c0_152] : memref<21x1x64xf32, #tpu.memory_space<vmem>>, vector<1x1x64xf32>
    %336 = vector.shape_cast %335 : vector<1x1x64xf32> to vector<1x64xf32>
    %337 = vector.extract_strided_slice %336 {offsets = [0, 0], sizes = [1, 32], strides = [1, 1]} : vector<1x64xf32> to vector<1x32xf32>
    %338 = vector.broadcast %337 : vector<1x32xf32> to vector<16x32xf32>
    %339 = arith.addf %334, %338 : vector<16x32xf32>
    %340 = arith.negf %339 : vector<16x32xf32>
    %341 = math.exp %340 : vector<16x32xf32>
    %cst_153 = arith.constant 1.000000e+00 : f32
    %342 = vector.broadcast %cst_153 : f32 to vector<16x32xf32>
    %343 = arith.addf %342, %341 : vector<16x32xf32>
    %344 = arith.divf %342, %343 : vector<16x32xf32>
    %345 = arith.mulf %339, %344 : vector<16x32xf32>
    %c21 = arith.constant 21 : index
    %c0_154 = arith.constant 0 : index
    %c0_155 = arith.constant 0 : index
    %346 = vector.load %arg6[%c21, %c0_154, %c0_155] : memref<23x96x64xbf16, #tpu.memory_space<vmem>>, vector<1x96x64xbf16>
    %347 = vector.shape_cast %346 : vector<1x96x64xbf16> to vector<96x64xbf16>
    %348 = vector.extract_strided_slice %347 {offsets = [0, 0], sizes = [32, 32], strides = [1, 1]} : vector<96x64xbf16> to vector<32x32xbf16>
    %349 = arith.truncf %345 : vector<16x32xf32> to vector<16x32xbf16>
    %cst_156 = arith.constant dense<0.000000e+00> : vector<16x32xf32>
    %350 = tpu.matmul %349, %348, %cst_156 {dimension_numbers = #tpu.dot_dimension_numbers<[1], [0], [0], [1], [0, 0, 1, 1], [], []>} : vector<16x32xbf16>, vector<32x32xbf16>, vector<16x32xf32> -> vector<16x32xf32>
    %c19_157 = arith.constant 19 : index
    %c0_158 = arith.constant 0 : index
    %c0_159 = arith.constant 0 : index
    %351 = vector.load %arg7[%c19_157, %c0_158, %c0_159] : memref<21x1x64xf32, #tpu.memory_space<vmem>>, vector<1x1x64xf32>
    %352 = vector.shape_cast %351 : vector<1x1x64xf32> to vector<1x64xf32>
    %353 = vector.extract_strided_slice %352 {offsets = [0, 0], sizes = [1, 32], strides = [1, 1]} : vector<1x64xf32> to vector<1x32xf32>
    %354 = vector.broadcast %353 : vector<1x32xf32> to vector<16x32xf32>
    %355 = arith.addf %350, %354 : vector<16x32xf32>
    %356 = arith.negf %355 : vector<16x32xf32>
    %357 = math.exp %356 : vector<16x32xf32>
    %cst_160 = arith.constant 1.000000e+00 : f32
    %358 = vector.broadcast %cst_160 : f32 to vector<16x32xf32>
    %359 = arith.addf %358, %357 : vector<16x32xf32>
    %360 = arith.divf %358, %359 : vector<16x32xf32>
    %361 = arith.mulf %355, %360 : vector<16x32xf32>
    %c22 = arith.constant 22 : index
    %c0_161 = arith.constant 0 : index
    %c0_162 = arith.constant 0 : index
    %362 = vector.load %arg6[%c22, %c0_161, %c0_162] : memref<23x96x64xbf16, #tpu.memory_space<vmem>>, vector<1x96x64xbf16>
    %363 = vector.shape_cast %362 : vector<1x96x64xbf16> to vector<96x64xbf16>
    %364 = vector.extract_strided_slice %363 {offsets = [0, 0], sizes = [32, 32], strides = [1, 1]} : vector<96x64xbf16> to vector<32x32xbf16>
    %365 = arith.truncf %361 : vector<16x32xf32> to vector<16x32xbf16>
    %cst_163 = arith.constant dense<0.000000e+00> : vector<16x32xf32>
    %366 = tpu.matmul %365, %364, %cst_163 {dimension_numbers = #tpu.dot_dimension_numbers<[1], [0], [0], [1], [0, 0, 1, 1], [], []>} : vector<16x32xbf16>, vector<32x32xbf16>, vector<16x32xf32> -> vector<16x32xf32>
    %c20_164 = arith.constant 20 : index
    %c0_165 = arith.constant 0 : index
    %c0_166 = arith.constant 0 : index
    %367 = vector.load %arg7[%c20_164, %c0_165, %c0_166] : memref<21x1x64xf32, #tpu.memory_space<vmem>>, vector<1x1x64xf32>
    %368 = vector.shape_cast %367 : vector<1x1x64xf32> to vector<1x64xf32>
    %369 = vector.extract_strided_slice %368 {offsets = [0, 0], sizes = [1, 32], strides = [1, 1]} : vector<1x64xf32> to vector<1x32xf32>
    %370 = vector.broadcast %369 : vector<1x32xf32> to vector<16x32xf32>
    %371 = arith.addf %366, %370 : vector<16x32xf32>
    %c0_167 = arith.constant 0 : index
    %c0_168 = arith.constant 0 : index
    %372 = vector.load %arg8[%c0_167, %c0_168] : memref<16x32xf32, #tpu.memory_space<vmem>>, vector<16x32xf32>
    tpu.vector_store %arg8[%c0_167, %c0_168], %371 {strides = array<i32>} : memref<16x32xf32, #tpu.memory_space<vmem>>, vector<16x32xf32>,
    return
  }
  func.func @transform_0(%arg0: i32) -> (i32, i32) {
    %c0_i32 = arith.constant 0 : i32
    %c0_i32_0 = arith.constant 0 : i32
    %c0_i32_1 = arith.constant 0 : i32
    return %c0_i32, %c0_i32_0 : i32, i32
  }
  func.func @transform_1(%arg0: i32) -> (i32, i32) {
    %c0_i32 = arith.constant 0 : i32
    %c0_i32_0 = arith.constant 0 : i32
    %c0_i32_1 = arith.constant 0 : i32
    return %c0_i32, %c0_i32_0 : i32, i32
  }
  func.func @transform_2(%arg0: i32) -> (i32, i32) {
    %c0_i32 = arith.constant 0 : i32
    %c0_i32_0 = arith.constant 0 : i32
    %c0_i32_1 = arith.constant 0 : i32
    return %c0_i32, %c0_i32_0 : i32, i32
  }
  func.func @transform_3(%arg0: i32) -> (i32, i32) {
    %c0_i32 = arith.constant 0 : i32
    %c0_i32_0 = arith.constant 0 : i32
    %c0_i32_1 = arith.constant 0 : i32
    return %c0_i32, %c0_i32_0 : i32, i32
  }
  func.func @transform_4(%arg0: i32) -> (i32, i32) {
    %c0_i32 = arith.constant 0 : i32
    %c0_i32_0 = arith.constant 0 : i32
    %c0_i32_1 = arith.constant 0 : i32
    return %c0_i32, %c0_i32_0 : i32, i32
  }
  func.func @transform_5(%arg0: i32) -> (i32, i32, i32) {
    %c0_i32 = arith.constant 0 : i32
    %c0_i32_0 = arith.constant 0 : i32
    %c0_i32_1 = arith.constant 0 : i32
    %c0_i32_2 = arith.constant 0 : i32
    return %c0_i32, %c0_i32_0, %c0_i32_1 : i32, i32, i32
  }
  func.func @transform_6(%arg0: i32) -> (i32, i32, i32) {
    %c0_i32 = arith.constant 0 : i32
    %c0_i32_0 = arith.constant 0 : i32
    %c0_i32_1 = arith.constant 0 : i32
    %c0_i32_2 = arith.constant 0 : i32
    return %c0_i32, %c0_i32_0, %c0_i32_1 : i32, i32, i32
  }
  func.func @transform_7(%arg0: i32) -> (i32, i32) {
    %c0_i32 = arith.constant 0 : i32
    %c0_i32_0 = arith.constant 0 : i32
    %c0_i32_1 = arith.constant 0 : i32
    return %c0_i32, %c0_i32_0 : i32, i32
  }
}

</mosaic_0001>

<llo_original>
// kernel: tpu_custom_call.1
$region0: #{tpu_custom_call.1}
  #allocation0 [shape = 'u32[]', space=smem, size = 0x4, offset = 0x4, fixed_abs, tag = 'smem constant byte address 0x4 - core index']
  #allocation1 [shape = 'u32[72,128]{1,0:T(1,128)}', space=vmem, size = 0x9000, scoped, tag = 'internal scratch']
  %s0 = inlined_call_operand.vmem [shape: f32[16,8], index: 0, kind: input, shape index: {}]
  %s1 = inlined_call_operand.vmem [shape: f32[40,8], index: 1, kind: input, shape index: {}]
  %s2 = inlined_call_operand.vmem [shape: s32[40,1], index: 2, kind: input, shape index: {}]
  %s3 = inlined_call_operand.vmem [shape: s32[40,1], index: 3, kind: input, shape index: {}]
  %s4 = inlined_call_operand.vmem [shape: s32[1,40], index: 4, kind: input, shape index: {}]
  %s5 = inlined_call_operand.vmem [shape: bf16[23,96,64], index: 5, kind: input, shape index: {}]
  %s6 = inlined_call_operand.vmem [shape: f32[21,1,64], index: 6, kind: input, shape index: {}]
  %s7 = inlined_call_operand.hbm [shape: f32[16,32], index: 7, kind: output, shape index: {}]
  %s8 = sld [smem:[#allocation0]]
  $region38: #{tpu_custom_call.1} parent=0
    _
  %s10 = ssub.s32 1, %s8
  %s11 = scalar_select 0, %s10, %s8
  $region1: #{tpu_custom_call.1} parent=0
    #allocation2 [shape = 'u8[8192]{0}', space=vmem, size = 0x2000, scoped, tag = 'output window, operand 0, single buffered']
    #allocation3 [shape = 's32[1]{0}', space=sflag, size = 0x4, scoped, tag = 'scoped memory for tpu_custom_call.1']
    %12 = vsyncpa [#allocation3], 0
    // Predicated region
    $region2: #{tpu_custom_call.1} parent=1 // pred_check
      _
    $region3: #{tpu_custom_call.1} parent=1 // pred_check_branch
      %14 = sbr.rel (0) target = $region5
    $region4: #{tpu_custom_call.1} parent=1 // pred_region
      _
    $region5: #{tpu_custom_call.1} parent=1 // pred_fallthru
      _
    // Predicated region
    $region6: #{tpu_custom_call.1} parent=1 // pred_check
      _
    $region7: #{tpu_custom_call.1} parent=1 // pred_check_branch
      %16 = sbr.rel (0) target = $region9
    $region8: #{tpu_custom_call.1} parent=1 // pred_region
      _
    $region9: #{tpu_custom_call.1} parent=1 // pred_fallthru
      _
    // Predicated region
    $region10: #{tpu_custom_call.1} parent=1 // pred_check
      _
    $region11: #{tpu_custom_call.1} parent=1 // pred_check_branch
      %18 = sbr.rel (0) target = $region13
    $region12: #{tpu_custom_call.1} parent=1 // pred_region
      _
    $region13: #{tpu_custom_call.1} parent=1 // pred_fallthru
      _
    // Predicated region
    $region14: #{tpu_custom_call.1} parent=1 // pred_check
      _
    $region15: #{tpu_custom_call.1} parent=1 // pred_check_branch
      %20 = sbr.rel (0) target = $region17
    $region16: #{tpu_custom_call.1} parent=1 // pred_region
      _
    $region17: #{tpu_custom_call.1} parent=1 // pred_fallthru
      _
    // Predicated region
    $region18: #{tpu_custom_call.1} parent=1 // pred_check
      _
    $region19: #{tpu_custom_call.1} parent=1 // pred_check_branch
      %22 = sbr.rel (0) target = $region21
    $region20: #{tpu_custom_call.1} parent=1 // pred_region
      _
    $region21: #{tpu_custom_call.1} parent=1 // pred_fallthru
      _
    // Predicated region
    $region22: #{tpu_custom_call.1} parent=1 // pred_check
      _
    $region23: #{tpu_custom_call.1} parent=1 // pred_check_branch
      %24 = sbr.rel (0) target = $region25
    $region24: #{tpu_custom_call.1} parent=1 // pred_region
      _
    $region25: #{tpu_custom_call.1} parent=1 // pred_fallthru
      _
    // Predicated region
    $region26: #{tpu_custom_call.1} parent=1 // pred_check
      _
    $region27: #{tpu_custom_call.1} parent=1 // pred_check_branch
      %26 = sbr.rel (0) target = $region29
    $region28: #{tpu_custom_call.1} parent=1 // pred_region
      _
    $region29: #{tpu_custom_call.1} parent=1 // pred_fallthru
      _
    %v28 = vld [vmem:[%s0] sm:$0xff]
    %v29 = vld [vmem:[%s0 + $0x8] sm:$0xff]
    %v30 = vld [vmem:[%s1] sm:$0xff]
    %v31 = vld [vmem:[%s1 + $0x8] sm:$0xff]
    %v32 = vld [vmem:[%s1 + $0x10] sm:$0xff]
    %v33 = vld [vmem:[%s1 + $0x18] sm:$0xff]
    %v34 = vld [vmem:[%s1 + $0x20] sm:$0xff]
    %v35 = vld [vmem:[%s5] sm:$0xf]
    %v36 = vpack.c.bf16 %v29, %v28
    %v37 = vld [vmem:[%s6] sm:$0x1]
    %v39 = vperm.slane %v37, 0
    %vm41 = vcmask 64512
    %v43 = vsel %vm41, %v36, 0
    %vm45 = vcmask 1043456
    %v47 = vsel %vm45, %v35, 0
    %49 = vmatpush.bf16.msra.mxu0 0
    %50 = vmatpush.bf16.msra.mxu0 0
    %51 = vmatpush.bf16.msra.mxu0 0
    %52 = vmatpush.bf16.msra.mxu0 0
    %53 = vmatpush.bf16.msra.mxu0 0
    %54 = vmatpush.bf16.msra.mxu0 0
    %55 = vmatpush.bf16.msra.mxu0 0
    %56 = vmatpush.bf16.msra.mxu0 %v47
    %57 = vmatmul.bf16.gmra.mxu0 %v43
    %v58 = vpop.f32.mrf.mxu0
    %v59 = vadd.f32 %v39, %v58
    %v60 = vpop.f32.mrf.mxu0
    %v61 = vadd.f32 %v39, %v60
    %62 = vdwg.mxu0
    %v63 = vxor.u32 %v59, 2147483648
    %v64 = vxor.u32 %v61, 2147483648
    %v65 = vmul.f32 %v63, 1.442695
    %v66 = vpow.pop %v65
    %v67 = vmul.f32 %v64, 1.442695
    %v68 = vpow.pop %v67
    %v69 = vadd.f32 %v66, 1.0
    %v70 = vadd.f32 %v68, 1.0
    %v71 = vrcp.pop %v69
    %v72 = vmul.f32 %v69, %v71
    %v73 = vsub.f32 1.0, %v72
    %v74 = vmul.f32 %v71, %v73
    %v75 = vadd.f32 %v71, %v74
    %vm76 = vweird.f32 %v69
    %vm77 = vweird.f32 %v71
    %vm78 = vmor %vm76, %vm77
    %v79 = vsel %vm78, %v71, %v75
    %v80 = vand.u32 2147483647, %v69
    %vm81 = vcmp.eq.f32.partialorder %v80, 8.507059e+37
    %v82 = vand.u32 %v69, 2147483648
    %v83 = vor.u32 1.1754944e-38, %v82
    %v84 = vsel %vm81, %v83, %v79
    %v85 = vmul.f32 1.0, %v84
    %v86 = vrcp.pop %v70
    %v87 = vmul.f32 %v70, %v86
    %v88 = vsub.f32 1.0, %v87
    %v89 = vmul.f32 %v86, %v88
    %v90 = vadd.f32 %v86, %v89
    %vm91 = vweird.f32 %v70
    %vm92 = vweird.f32 %v86
    %vm93 = vmor %vm91, %vm92
    %v94 = vsel %vm93, %v86, %v90
    %v95 = vand.u32 2147483647, %v70
    %vm96 = vcmp.eq.f32.partialorder %v95, 8.507059e+37
    %v97 = vand.u32 %v70, 2147483648
    %v98 = vor.u32 1.1754944e-38, %v97
    %v99 = vsel %vm96, %v98, %v94
    %v100 = vmul.f32 1.0, %v99
    %v101 = vmul.f32 %v59, %v85
    %v102 = vmul.f32 %v61, %v100
    %s103 = scalar_lea.vmem %s5, 48
    %v104 = vld [vmem:[%s103] sm:$0xf]
    %v105 = vld [vmem:[%s103 + $0x4] sm:$0xf]
    %v106 = vld [vmem:[%s103 + $0x8] sm:$0xf]
    %v107 = vld [vmem:[%s103 + $0xc] sm:$0xf]
    %v108 = vld [vmem:[%s103 + $0x10] sm:$0xf]
    %v109 = vld [vmem:[%s103 + $0x14] sm:$0xf]
    %v110 = vld [vmem:[%s103 + $0x18] sm:$0xf]
    %v111 = vld [vmem:[%s103 + $0x1c] sm:$0xf]
    %v112 = vpack.c.bf16 %v102, %v101
    %s113 = scalar_lea.vmem %s6, 1
    %v114 = vld [vmem:[%s113] sm:$0x1]
    %v116 = vperm.slane %v114, 0
    %v126 = vunpack.c.l.b16 %v104
    %v127 = vunpack.c.l.b16 %v105
    %v128 = vunpack.c.l.b16 %v106
    %v129 = vunpack.c.l.b16 %v107
    %v130 = vunpack.c.l.b16 %v108
    %v131 = vunpack.c.l.b16 %v109
    %v132 = vunpack.c.l.b16 %v110
    %v133 = vunpack.c.l.b16 %v111
    %v134 = vpack.c.b16 %v127, %v126
    %v135 = vpack.c.b16 %v129, %v128
    %v136 = vpack.c.b16 %v131, %v130
    %v137 = vpack.c.b16 %v133, %v132
    %vm142 = vcmask 523264
    %v144 = vsel %vm142, %v112, 0
    %146 = vmatpush.bf16.msra.mxu0 0
    %147 = vmatpush.bf16.msra.mxu0 0
    %148 = vmatpush.bf16.msra.mxu0 0
    %149 = vmatpush.bf16.msra.mxu0 0
    %150 = vmatpush.bf16.msra.mxu0 %v137
    %151 = vmatpush.bf16.msra.mxu0 %v136
    %152 = vmatpush.bf16.msra.mxu0 %v135
    %153 = vmatpush.bf16.msra.mxu0 %v134
    %154 = vmatmul.bf16.gmra.mxu0 %v144
    %v155 = vpop.f32.mrf.mxu0
    %v156 = vadd.f32 %v116, %v155
    %v157 = vpop.f32.mrf.mxu0
    %v158 = vadd.f32 %v116, %v157
    %159 = vdwg.mxu0
    %v160 = vxor.u32 %v156, 2147483648
    %v161 = vxor.u32 %v158, 2147483648
    %v162 = vmul.f32 %v160, 1.442695
    %v163 = vpow.pop %v162
    %v164 = vmul.f32 %v161, 1.442695
    %v165 = vpow.pop %v164
    %v166 = vadd.f32 %v163, 1.0
    %v167 = vadd.f32 %v165, 1.0
    %v168 = vrcp.pop %v166
    %v169 = vmul.f32 %v166, %v168
    %v170 = vsub.f32 1.0, %v169
    %v171 = vmul.f32 %v168, %v170
    %v172 = vadd.f32 %v168, %v171
    %vm173 = vweird.f32 %v166
    %vm174 = vweird.f32 %v168
    %vm175 = vmor %vm173, %vm174
    %v176 = vsel %vm175, %v168, %v172
    %v177 = vand.u32 2147483647, %v166
    %vm178 = vcmp.eq.f32.partialorder %v177, 8.507059e+37
    %v179 = vand.u32 %v166, 2147483648
    %v180 = vor.u32 1.1754944e-38, %v179
    %v181 = vsel %vm178, %v180, %v176
    %v182 = vmul.f32 1.0, %v181
    %v183 = vrcp.pop %v167
    %v184 = vmul.f32 %v167, %v183
    %v185 = vsub.f32 1.0, %v184
    %v186 = vmul.f32 %v183, %v185
    %v187 = vadd.f32 %v183, %v186
    %vm188 = vweird.f32 %v167
    %vm189 = vweird.f32 %v183
    %vm190 = vmor %vm188, %vm189
    %v191 = vsel %vm190, %v183, %v187
    %v192 = vand.u32 2147483647, %v167
    %vm193 = vcmp.eq.f32.partialorder %v192, 8.507059e+37
    %v194 = vand.u32 %v167, 2147483648
    %v195 = vor.u32 1.1754944e-38, %v194
    %v196 = vsel %vm193, %v195, %v191
    %v197 = vmul.f32 1.0, %v196
    %v198 = vmul.f32 %v156, %v182
    %v199 = vmul.f32 %v158, %v197
    %s200 = scalar_lea.vmem %s5, 96
    %v201 = vld [vmem:[%s200] sm:$0xf]
    %v202 = vld [vmem:[%s200 + $0x4] sm:$0xf]
    %v203 = vld [vmem:[%s200 + $0x8] sm:$0xf]
    %v204 = vld [vmem:[%s200 + $0xc] sm:$0xf]
    %v205 = vld [vmem:[%s200 + $0x10] sm:$0xf]
    %v206 = vld [vmem:[%s200 + $0x14] sm:$0xf]
    %v207 = vld [vmem:[%s200 + $0x18] sm:$0xf]
    %v208 = vld [vmem:[%s200 + $0x1c] sm:$0xf]
    %v209 = vpack.c.bf16 %v199, %v198
    %s210 = scalar_lea.vmem %s6, 2
    %v211 = vld [vmem:[%s210] sm:$0x1]
    %v213 = vperm.slane %v211, 0
    %v223 = vunpack.c.l.b16 %v201
    %v224 = vunpack.c.l.b16 %v202
    %v225 = vunpack.c.l.b16 %v203
    %v226 = vunpack.c.l.b16 %v204
    %v227 = vunpack.c.l.b16 %v205
    %v228 = vunpack.c.l.b16 %v206
    %v229 = vunpack.c.l.b16 %v207
    %v230 = vunpack.c.l.b16 %v208
    %v231 = vpack.c.b16 %v224, %v223
    %v232 = vpack.c.b16 %v226, %v225
    %v233 = vpack.c.b16 %v228, %v227
    %v234 = vpack.c.b16 %v230, %v229
    %v240 = vsel %vm142, %v209, 0
    %242 = vmatpush.bf16.msra.mxu0 0
    %243 = vmatpush.bf16.msra.mxu0 0
    %244 = vmatpush.bf16.msra.mxu0 0
    %245 = vmatpush.bf16.msra.mxu0 0
    %246 = vmatpush.bf16.msra.mxu0 %v234
    %247 = vmatpush.bf16.msra.mxu0 %v233
    %248 = vmatpush.bf16.msra.mxu0 %v232
    %249 = vmatpush.bf16.msra.mxu0 %v231
    %250 = vmatmul.bf16.gmra.mxu0 %v240
    %v251 = vpop.f32.mrf.mxu0
    %v252 = vadd.f32 %v213, %v251
    %v253 = vpop.f32.mrf.mxu0
    %v254 = vadd.f32 %v213, %v253
    %255 = vdwg.mxu0
    %vm256 = vcmask 261120
    %v257 = vsel %vm256, %v252, 0.0
    %v258 = vsel %vm256, %v254, 0.0
    %v259 = vadd.f32 %v257, %v258
    %v260 = vrot.slane %v259, 4
    %v261 = vadd.f32 %v259, %v260
    %v262 = vrot.slane %v261, 2
    %v263 = vadd.f32 %v261, %v262
    %v264 = vrot.slane %v263, 1
    %v265 = vadd.f32 %v263, %v264
    %v266 = vrcp.pop 16.0
    %v267 = vmul.f32 16.0, %v266
    %v268 = vsub.f32 1.0, %v267
    %v269 = vmul.f32 %v266, %v268
    %v270 = vadd.f32 %v266, %v269
    %vm271 = vweird.f32 %v266
    %v272 = vsel %vm271, %v266, %v270
    %v273 = vmul.f32 %v265, %v272
    %s274 = scalar_lea.vmem %s5, 144
    %v275 = vld [vmem:[%s274] sm:$0xf]
    %v276 = vpack.c.bf16 %v31, %v30
    %v277 = vpack.c.bf16 %v33, %v32
    %v278 = vpack.c.bf16 %v34, %v34
    %s279 = scalar_lea.vmem %s6, 3
    %v280 = vld [vmem:[%s279] sm:$0x1]
    %v282 = vperm.slane %v280, 0
    %v285 = vsel %vm41, %v276, 0
    %v288 = vsel %vm41, %v277, 0
    %v291 = vsel %vm41, %v278, 0
    %v294 = vsel %vm45, %v275, 0
    %296 = vmatpush.bf16.msra.mxu0 0
    %297 = vmatpush.bf16.msra.mxu0 0
    %298 = vmatpush.bf16.msra.mxu0 0
    %299 = vmatpush.bf16.msra.mxu0 0
    %300 = vmatpush.bf16.msra.mxu0 0
    %301 = vmatpush.bf16.msra.mxu0 0
    %302 = vmatpush.bf16.msra.mxu0 0
    %303 = vmatpush.bf16.msra.mxu0 %v294
    %304 = vmatmul.bf16.gmra.mxu0 %v285
    %v305 = vpop.f32.mrf.mxu0
    %v306 = vadd.f32 %v282, %v305
    %v307 = vpop.f32.mrf.mxu0
    %v308 = vadd.f32 %v282, %v307
    %309 = vmatmul.bf16.gmra.mxu0 %v288
    %v310 = vpop.f32.mrf.mxu0
    %v311 = vadd.f32 %v282, %v310
    %v312 = vpop.f32.mrf.mxu0
    %v313 = vadd.f32 %v282, %v312
    %314 = vmatmul.bf16.gmra.mxu0 %v291
    %v315 = vpop.f32.mrf.mxu0
    %v316 = vadd.f32 %v282, %v315
    %v317 = vpop.f32.mrf.mxu0
    %318 = vdwg.mxu0
    %v319 = vxor.u32 %v306, 2147483648
    %v320 = vxor.u32 %v308, 2147483648
    %v321 = vxor.u32 %v311, 2147483648
    %v322 = vxor.u32 %v313, 2147483648
    %v323 = vxor.u32 %v316, 2147483648
    %v324 = vmul.f32 %v319, 1.442695
    %v325 = vpow.pop %v324
    %v326 = vmul.f32 %v320, 1.442695
    %v327 = vpow.pop %v326
    %v328 = vmul.f32 %v321, 1.442695
    %v329 = vpow.pop %v328
    %v330 = vmul.f32 %v322, 1.442695
    %v331 = vpow.pop %v330
    %v332 = vmul.f32 %v323, 1.442695
    %v333 = vpow.pop %v332
    %v334 = vadd.f32 %v325, 1.0
    %v335 = vadd.f32 %v327, 1.0
    %v336 = vadd.f32 %v329, 1.0
    %v337 = vadd.f32 %v331, 1.0
    %v338 = vadd.f32 %v333, 1.0
    %v339 = vrcp.pop %v334
    %v340 = vmul.f32 %v334, %v339
    %v341 = vsub.f32 1.0, %v340
    %v342 = vmul.f32 %v339, %v341
    %v343 = vadd.f32 %v339, %v342
    %vm344 = vweird.f32 %v334
    %vm345 = vweird.f32 %v339
    %vm346 = vmor %vm344, %vm345
    %v347 = vsel %vm346, %v339, %v343
    %v348 = vand.u32 2147483647, %v334
    %vm349 = vcmp.eq.f32.partialorder %v348, 8.507059e+37
    %v350 = vand.u32 %v334, 2147483648
    %v351 = vor.u32 1.1754944e-38, %v350
    %v352 = vsel %vm349, %v351, %v347
    %v353 = vmul.f32 1.0, %v352
    %v354 = vrcp.pop %v335
    %v355 = vmul.f32 %v335, %v354
    %v356 = vsub.f32 1.0, %v355
    %v357 = vmul.f32 %v354, %v356
    %v358 = vadd.f32 %v354, %v357
    %vm359 = vweird.f32 %v335
    %vm360 = vweird.f32 %v354
    %vm361 = vmor %vm359, %vm360
    %v362 = vsel %vm361, %v354, %v358
    %v363 = vand.u32 2147483647, %v335
    %vm364 = vcmp.eq.f32.partialorder %v363, 8.507059e+37
    %v365 = vand.u32 %v335, 2147483648
    %v366 = vor.u32 1.1754944e-38, %v365
    %v367 = vsel %vm364, %v366, %v362
    %v368 = vmul.f32 1.0, %v367
    %v369 = vrcp.pop %v336
    %v370 = vmul.f32 %v336, %v369
    %v371 = vsub.f32 1.0, %v370
    %v372 = vmul.f32 %v369, %v371
    %v373 = vadd.f32 %v369, %v372
    %vm374 = vweird.f32 %v336
    %vm375 = vweird.f32 %v369
    %vm376 = vmor %vm374, %vm375
    %v377 = vsel %vm376, %v369, %v373
    %v378 = vand.u32 2147483647, %v336
    %vm379 = vcmp.eq.f32.partialorder %v378, 8.507059e+37
    %v380 = vand.u32 %v336, 2147483648
    %v381 = vor.u32 1.1754944e-38, %v380
    %v382 = vsel %vm379, %v381, %v377
    %v383 = vmul.f32 1.0, %v382
    %v384 = vrcp.pop %v337
    %v385 = vmul.f32 %v337, %v384
    %v386 = vsub.f32 1.0, %v385
    %v387 = vmul.f32 %v384, %v386
    %v388 = vadd.f32 %v384, %v387
    %vm389 = vweird.f32 %v337
    %vm390 = vweird.f32 %v384
    %vm391 = vmor %vm389, %vm390
    %v392 = vsel %vm391, %v384, %v388
    %v393 = vand.u32 2147483647, %v337
    %vm394 = vcmp.eq.f32.partialorder %v393, 8.507059e+37
    %v395 = vand.u32 %v337, 2147483648
    %v396 = vor.u32 1.1754944e-38, %v395
    %v397 = vsel %vm394, %v396, %v392
    %v398 = vmul.f32 1.0, %v397
    %v399 = vrcp.pop %v338
    %v400 = vmul.f32 %v338, %v399
    %v401 = vsub.f32 1.0, %v400
    %v402 = vmul.f32 %v399, %v401
    %v403 = vadd.f32 %v399, %v402
    %vm404 = vweird.f32 %v338
    %vm405 = vweird.f32 %v399
    %vm406 = vmor %vm404, %vm405
    %v407 = vsel %vm406, %v399, %v403
    %v408 = vand.u32 2147483647, %v338
    %vm409 = vcmp.eq.f32.partialorder %v408, 8.507059e+37
    %v410 = vand.u32 %v338, 2147483648
    %v411 = vor.u32 1.1754944e-38, %v410
    %v412 = vsel %vm409, %v411, %v407
    %v413 = vmul.f32 1.0, %v412
    %v414 = vmul.f32 %v306, %v353
    %v415 = vmul.f32 %v308, %v368
    %v416 = vmul.f32 %v311, %v383
    %v417 = vmul.f32 %v313, %v398
    %v418 = vmul.f32 %v316, %v413
    %s419 = scalar_lea.vmem %s5, 192
    %v420 = vld [vmem:[%s419] sm:$0xf]
    %v421 = vld [vmem:[%s419 + $0x4] sm:$0xf]
    %v422 = vld [vmem:[%s419 + $0x8] sm:$0xf]
    %v423 = vld [vmem:[%s419 + $0xc] sm:$0xf]
    %v424 = vpack.c.bf16 %v415, %v414
    %v425 = vpack.c.bf16 %v417, %v416
    %v426 = vpack.c.bf16 %v418, %v418
    %s427 = scalar_lea.vmem %s6, 4
    %v428 = vld [vmem:[%s427] sm:$0x1]
    %v430 = vperm.slane %v428, 0
    %v436 = vunpack.c.l.b16 %v420
    %v437 = vunpack.c.l.b16 %v421
    %v438 = vunpack.c.l.b16 %v422
    %v439 = vunpack.c.l.b16 %v423
    %v440 = vpack.c.b16 %v437, %v436
    %v441 = vpack.c.b16 %v439, %v438
    %v445 = vsel %vm256, %v424, 0
    %v448 = vsel %vm256, %v425, 0
    %v451 = vsel %vm256, %v426, 0
    %453 = vmatpush.bf16.msra.mxu0 0
    %454 = vmatpush.bf16.msra.mxu0 0
    %455 = vmatpush.bf16.msra.mxu0 0
    %456 = vmatpush.bf16.msra.mxu0 0
    %457 = vmatpush.bf16.msra.mxu0 0
    %458 = vmatpush.bf16.msra.mxu0 0
    %459 = vmatpush.bf16.msra.mxu0 %v441
    %460 = vmatpush.bf16.msra.mxu0 %v440
    %461 = vmatmul.bf16.gmra.mxu0 %v445
    %v462 = vpop.f32.mrf.mxu0
    %v463 = vadd.f32 %v430, %v462
    %v464 = vpop.f32.mrf.mxu0
    %v465 = vadd.f32 %v430, %v464
    %466 = vmatmul.bf16.gmra.mxu0 %v448
    %v467 = vpop.f32.mrf.mxu0
    %v468 = vadd.f32 %v430, %v467
    %v469 = vpop.f32.mrf.mxu0
    %v470 = vadd.f32 %v430, %v469
    %471 = vmatmul.bf16.gmra.mxu0 %v451
    %v472 = vpop.f32.mrf.mxu0
    %v473 = vadd.f32 %v430, %v472
    %v474 = vpop.f32.mrf.mxu0
    %475 = vdwg.mxu0
    %v476 = vxor.u32 %v463, 2147483648
    %v477 = vxor.u32 %v465, 2147483648
    %v478 = vxor.u32 %v468, 2147483648
    %v479 = vxor.u32 %v470, 2147483648
    %v480 = vxor.u32 %v473, 2147483648
    %v481 = vmul.f32 %v476, 1.442695
    %v482 = vpow.pop %v481
    %v483 = vmul.f32 %v477, 1.442695
    %v484 = vpow.pop %v483
    %v485 = vmul.f32 %v478, 1.442695
    %v486 = vpow.pop %v485
    %v487 = vmul.f32 %v479, 1.442695
    %v488 = vpow.pop %v487
    %v489 = vmul.f32 %v480, 1.442695
    %v490 = vpow.pop %v489
    %v491 = vadd.f32 %v482, 1.0
    %v492 = vadd.f32 %v484, 1.0
    %v493 = vadd.f32 %v486, 1.0
    %v494 = vadd.f32 %v488, 1.0
    %v495 = vadd.f32 %v490, 1.0
    %v496 = vrcp.pop %v491
    %v497 = vmul.f32 %v491, %v496
    %v498 = vsub.f32 1.0, %v497
    %v499 = vmul.f32 %v496, %v498
    %v500 = vadd.f32 %v496, %v499
    %vm501 = vweird.f32 %v491
    %vm502 = vweird.f32 %v496
    %vm503 = vmor %vm501, %vm502
    %v504 = vsel %vm503, %v496, %v500
    %v505 = vand.u32 2147483647, %v491
    %vm506 = vcmp.eq.f32.partialorder %v505, 8.507059e+37
    %v507 = vand.u32 %v491, 2147483648
    %v508 = vor.u32 1.1754944e-38, %v507
    %v509 = vsel %vm506, %v508, %v504
    %v510 = vmul.f32 1.0, %v509
    %v511 = vrcp.pop %v492
    %v512 = vmul.f32 %v492, %v511
    %v513 = vsub.f32 1.0, %v512
    %v514 = vmul.f32 %v511, %v513
    %v515 = vadd.f32 %v511, %v514
    %vm516 = vweird.f32 %v492
    %vm517 = vweird.f32 %v511
    %vm518 = vmor %vm516, %vm517
    %v519 = vsel %vm518, %v511, %v515
    %v520 = vand.u32 2147483647, %v492
    %vm521 = vcmp.eq.f32.partialorder %v520, 8.507059e+37
    %v522 = vand.u32 %v492, 2147483648
    %v523 = vor.u32 1.1754944e-38, %v522
    %v524 = vsel %vm521, %v523, %v519
    %v525 = vmul.f32 1.0, %v524
    %v526 = vrcp.pop %v493
    %v527 = vmul.f32 %v493, %v526
    %v528 = vsub.f32 1.0, %v527
    %v529 = vmul.f32 %v526, %v528
    %v530 = vadd.f32 %v526, %v529
    %vm531 = vweird.f32 %v493
    %vm532 = vweird.f32 %v526
    %vm533 = vmor %vm531, %vm532
    %v534 = vsel %vm533, %v526, %v530
    %v535 = vand.u32 2147483647, %v493
    %vm536 = vcmp.eq.f32.partialorder %v535, 8.507059e+37
    %v537 = vand.u32 %v493, 2147483648
    %v538 = vor.u32 1.1754944e-38, %v537
    %v539 = vsel %vm536, %v538, %v534
    %v540 = vmul.f32 1.0, %v539
    %v541 = vrcp.pop %v494
    %v542 = vmul.f32 %v494, %v541
    %v543 = vsub.f32 1.0, %v542
    %v544 = vmul.f32 %v541, %v543
    %v545 = vadd.f32 %v541, %v544
    %vm546 = vweird.f32 %v494
    %vm547 = vweird.f32 %v541
    %vm548 = vmor %vm546, %vm547
    %v549 = vsel %vm548, %v541, %v545
    %v550 = vand.u32 2147483647, %v494
    %vm551 = vcmp.eq.f32.partialorder %v550, 8.507059e+37
    %v552 = vand.u32 %v494, 2147483648
    %v553 = vor.u32 1.1754944e-38, %v552
    %v554 = vsel %vm551, %v553, %v549
    %v555 = vmul.f32 1.0, %v554
    %v556 = vrcp.pop %v495
    %v557 = vmul.f32 %v495, %v556
    %v558 = vsub.f32 1.0, %v557
    %v559 = vmul.f32 %v556, %v558
    %v560 = vadd.f32 %v556, %v559
    %vm561 = vweird.f32 %v495
    %vm562 = vweird.f32 %v556
    %vm563 = vmor %vm561, %vm562
    %v564 = vsel %vm563, %v556, %v560
    %v565 = vand.u32 2147483647, %v495
    %vm566 = vcmp.eq.f32.partialorder %v565, 8.507059e+37
    %v567 = vand.u32 %v495, 2147483648
    %v568 = vor.u32 1.1754944e-38, %v567
    %v569 = vsel %vm566, %v568, %v564
    %v570 = vmul.f32 1.0, %v569
    %v571 = vmul.f32 %v463, %v510
    %v572 = vmul.f32 %v465, %v525
    %v573 = vmul.f32 %v468, %v540
    %v574 = vmul.f32 %v470, %v555
    %v575 = vmul.f32 %v473, %v570
    %s576 = scalar_lea.vmem %s5, 240
    %v577 = vld [vmem:[%s576] sm:$0xf]
    %v578 = vld [vmem:[%s576 + $0x4] sm:$0xf]
    %v579 = vld [vmem:[%s576 + $0x8] sm:$0xf]
    %v580 = vld [vmem:[%s576 + $0xc] sm:$0xf]
    %v581 = vpack.c.bf16 %v572, %v571
    %v582 = vpack.c.bf16 %v574, %v573
    %v583 = vpack.c.bf16 %v575, %v575
    %s584 = scalar_lea.vmem %s6, 5
    %v585 = vld [vmem:[%s584] sm:$0x1]
    %v587 = vperm.slane %v585, 0
    %v593 = vunpack.c.l.b16 %v577
    %v594 = vunpack.c.l.b16 %v578
    %v595 = vunpack.c.l.b16 %v579
    %v596 = vunpack.c.l.b16 %v580
    %v597 = vpack.c.b16 %v594, %v593
    %v598 = vpack.c.b16 %v596, %v595
    %v602 = vsel %vm256, %v581, 0
    %v605 = vsel %vm256, %v582, 0
    %v608 = vsel %vm256, %v583, 0
    %610 = vmatpush.bf16.msra.mxu0 0
    %611 = vmatpush.bf16.msra.mxu0 0
    %612 = vmatpush.bf16.msra.mxu0 0
    %613 = vmatpush.bf16.msra.mxu0 0
    %614 = vmatpush.bf16.msra.mxu0 0
    %615 = vmatpush.bf16.msra.mxu0 0
    %616 = vmatpush.bf16.msra.mxu0 %v598
    %617 = vmatpush.bf16.msra.mxu0 %v597
    %618 = vmatmul.bf16.gmra.mxu0 %v602
    %v619 = vpop.f32.mrf.mxu0
    %v620 = vadd.f32 %v587, %v619
    %v621 = vpop.f32.mrf.mxu0
    %v622 = vadd.f32 %v587, %v621
    %623 = vmatmul.bf16.gmra.mxu0 %v605
    %v624 = vpop.f32.mrf.mxu0
    %v625 = vadd.f32 %v587, %v624
    %v626 = vpop.f32.mrf.mxu0
    %v627 = vadd.f32 %v587, %v626
    %628 = vmatmul.bf16.gmra.mxu0 %v608
    %v629 = vpop.f32.mrf.mxu0
    %v630 = vadd.f32 %v587, %v629
    %v631 = vpop.f32.mrf.mxu0
    %632 = vdwg.mxu0
    %v633 = vlaneseq
    %v634 = vand.u32 %v633, 127
    %v635 = vld [vmem:[%s2] sm:$0xff]
    %v636 = vld [vmem:[%s2 + $0x8] sm:$0xff]
    %v637 = vld [vmem:[%s2 + $0x10] sm:$0xff]
    %v638 = vld [vmem:[%s2 + $0x18] sm:$0xff]
    %v639 = vld [vmem:[%s2 + $0x20] sm:$0xff]
    %640 = vset.pattern.permute.xlu0 0
    %641 = vperm.xlu0 %640, %v635
    %v642 = vpop.permute.xlu0 %641
    %643 = vset.pattern.permute.xlu0 0
    %644 = vperm.xlu0 %643, %v636
    %v645 = vpop.permute.xlu0 %644
    %646 = vset.pattern.permute.xlu0 0
    %647 = vperm.xlu0 %646, %v637
    %v648 = vpop.permute.xlu0 %647
    %649 = vset.pattern.permute.xlu0 0
    %650 = vperm.xlu0 %649, %v638
    %v651 = vpop.permute.xlu0 %650
    %652 = vset.pattern.permute.xlu0 0
    %653 = vperm.xlu0 %652, %v639
    %v654 = vpop.permute.xlu0 %653
    %vm655 = vcmp.eq.s32.totalorder %v634, %v642
    %vm656 = vcmp.eq.s32.totalorder %v634, %v645
    %vm657 = vcmp.eq.s32.totalorder %v634, %v648
    %vm658 = vcmp.eq.s32.totalorder %v634, %v651
    %vm659 = vcmp.eq.s32.totalorder %v634, %v654
    %v660 = vsel %vm655, 1, 0
    %v661 = vsel %vm656, 1, 0
    %v662 = vsel %vm657, 1, 0
    %v663 = vsel %vm658, 1, 0
    %v664 = vsel %vm659, 1, 0
    %v665 = vcvt.s32.f32 %v660
    %v666 = vcvt.s32.f32 %v661
    %v667 = vcvt.s32.f32 %v662
    %v668 = vcvt.s32.f32 %v663
    %v669 = vcvt.s32.f32 %v664
    %v670 = vpack.c.bf16 %v666, %v665
    %v671 = vpack.c.bf16 %v668, %v667
    %v672 = vpack.c.bf16 %v669, %v669
    %v673 = vld [vmem:[%s3] sm:$0xff]
    %v674 = vld [vmem:[%s3 + $0x8] sm:$0xff]
    %v675 = vld [vmem:[%s3 + $0x10] sm:$0xff]
    %v676 = vld [vmem:[%s3 + $0x18] sm:$0xff]
    %v677 = vld [vmem:[%s3 + $0x20] sm:$0xff]
    %678 = vset.pattern.permute.xlu0 0
    %679 = vperm.xlu0 %678, %v673
    %v680 = vpop.permute.xlu0 %679
    %681 = vset.pattern.permute.xlu0 0
    %682 = vperm.xlu0 %681, %v674
    %v683 = vpop.permute.xlu0 %682
    %684 = vset.pattern.permute.xlu0 0
    %685 = vperm.xlu0 %684, %v675
    %v686 = vpop.permute.xlu0 %685
    %687 = vset.pattern.permute.xlu0 0
    %688 = vperm.xlu0 %687, %v676
    %v689 = vpop.permute.xlu0 %688
    %690 = vset.pattern.permute.xlu0 0
    %691 = vperm.xlu0 %690, %v677
    %v692 = vpop.permute.xlu0 %691
    %vm693 = vcmp.eq.s32.totalorder %v634, %v680
    %vm694 = vcmp.eq.s32.totalorder %v634, %v683
    %vm695 = vcmp.eq.s32.totalorder %v634, %v686
    %vm696 = vcmp.eq.s32.totalorder %v634, %v689
    %vm697 = vcmp.eq.s32.totalorder %v634, %v692
    %v698 = vsel %vm693, 1, 0
    %v699 = vsel %vm694, 1, 0
    %v700 = vsel %vm695, 1, 0
    %v701 = vsel %vm696, 1, 0
    %v702 = vsel %vm697, 1, 0
    %v703 = vcvt.s32.f32 %v698
    %v704 = vcvt.s32.f32 %v699
    %v705 = vcvt.s32.f32 %v700
    %v706 = vcvt.s32.f32 %v701
    %v707 = vcvt.s32.f32 %v702
    %v708 = vpack.c.bf16 %v704, %v703
    %v709 = vpack.c.bf16 %v706, %v705
    %v710 = vpack.c.bf16 %v707, %v707
    %v711 = vld [vmem:[%s4] sm:$0x1]
    %v712 = vperm.slane %v711, 0
    %vm713 = vcmp.eq.s32.totalorder %v634, %v712
    %v714 = vsel %vm713, 1, 0
    %v715 = vcvt.s32.f32 %v714
    %v716 = vpack.c.bf16 %v715, %v715
    %s717 = scalar_lea.vmem %s5, 336
    %v718 = vld [vmem:[%s717] sm:$0xf]
    %v719 = vld [vmem:[%s717 + $0x4] sm:$0xf]
    %v720 = vld [vmem:[%s717 + $0x8] sm:$0xf]
    %v721 = vld [vmem:[%s717 + $0xc] sm:$0xf]
    %v722 = vpack.c.bf16 %v254, %v252
    %724 = vrot.lane.b32.xlu0 %v722, 96
    %v725 = vpop.permute.xlu0 %724
    %v730 = vunpack.c.l.b16 %v718
    %v731 = vunpack.c.l.b16 %v719
    %v732 = vunpack.c.l.b16 %v720
    %v733 = vunpack.c.l.b16 %v721
    %v734 = vpack.c.b16 %v731, %v730
    %v735 = vpack.c.b16 %v733, %v732
    %v739 = vsel %vm256, %v725, 0
    %741 = vmatpush.bf16.msra.mxu0 0
    %742 = vmatpush.bf16.msra.mxu0 0
    %743 = vmatpush.bf16.msra.mxu0 0
    %744 = vmatpush.bf16.msra.mxu0 0
    %745 = vmatpush.bf16.msra.mxu0 0
    %746 = vmatpush.bf16.msra.mxu0 0
    %747 = vmatpush.bf16.msra.mxu0 %v735
    %748 = vmatpush.bf16.msra.mxu0 %v734
    %749 = vmatmul.bf16.gmra.mxu0 %v739
    %v750 = vpop.f32.mrf.mxu0
    %v751 = vadd.f32 0.0, %v750
    %v752 = vpop.f32.mrf.mxu0
    %v753 = vadd.f32 0.0, %v752
    %754 = vdwg.mxu0
    %s755 = scalar_lea.vmem %s5, 288
    %v756 = vld [vmem:[%s755] sm:$0xf]
    %v757 = vld [vmem:[%s755 + $0x4] sm:$0xf]
    %v758 = vld [vmem:[%s755 + $0x8] sm:$0xf]
    %v759 = vld [vmem:[%s755 + $0xc] sm:$0xf]
    %v760 = vpack.c.bf16 %v622, %v620
    %v761 = vpack.c.bf16 %v627, %v625
    %v762 = vpack.c.bf16 %v630, %v630
    %v763 = vpack.c.bf16 %v753, %v751
    %vm764 = vcmask 130048
    %v766 = vsel %vm764, %v670, 0
    %v769 = vsel %vm764, %v671, 0
    %v772 = vsel %vm764, %v672, 0
    %774 = vmatpush.bf16.msra.mxu0 0
    %775 = vmatpush.bf16.msra.mxu0 0
    %776 = vmatpush.bf16.msra.mxu0 0
    %777 = vmatpush.bf16.msra.mxu0 0
    %778 = vmatpush.bf16.msra.mxu0 0
    %779 = vmatpush.bf16.msra.mxu0 0
    %780 = vmatpush.bf16.msra.mxu0 0
    %781 = vmatpush.bf16.msra.mxu0 %v763
    %782 = vmatmul.bf16.gmra.mxu0 %v766
    %v783 = vpop.f32.mrf.mxu0
    %v784 = vadd.f32 0.0, %v783
    %v785 = vpop.f32.mrf.mxu0
    %v786 = vadd.f32 0.0, %v785
    %787 = vmatmul.bf16.gmra.mxu0 %v769
    %v788 = vpop.f32.mrf.mxu0
    %v789 = vadd.f32 0.0, %v788
    %v790 = vpop.f32.mrf.mxu0
    %v791 = vadd.f32 0.0, %v790
    %792 = vmatmul.bf16.gmra.mxu0 %v772
    %v793 = vpop.f32.mrf.mxu0
    %v794 = vadd.f32 0.0, %v793
    %v795 = vpop.f32.mrf.mxu0
    %796 = vdwg.mxu0
    %v801 = vunpack.c.l.b16 %v756
    %v802 = vunpack.c.l.b16 %v757
    %v803 = vunpack.c.l.b16 %v758
    %v804 = vunpack.c.l.b16 %v759
    %v805 = vpack.c.b16 %v802, %v801
    %v806 = vpack.c.b16 %v804, %v803
    %v810 = vsel %vm256, %v760, 0
    %v813 = vsel %vm256, %v761, 0
    %v816 = vsel %vm256, %v762, 0
    %818 = vmatpush.bf16.msra.mxu0 0
    %819 = vmatpush.bf16.msra.mxu0 0
    %820 = vmatpush.bf16.msra.mxu0 0
    %821 = vmatpush.bf16.msra.mxu0 0
    %822 = vmatpush.bf16.msra.mxu0 0
    %823 = vmatpush.bf16.msra.mxu0 0
    %824 = vmatpush.bf16.msra.mxu0 %v806
    %825 = vmatpush.bf16.msra.mxu0 %v805
    %826 = vmatmul.bf16.gmra.mxu0 %v810
    %v827 = vpop.f32.mrf.mxu0
    %v828 = vadd.f32 %v784, %v827
    %v829 = vpop.f32.mrf.mxu0
    %v830 = vadd.f32 %v786, %v829
    %831 = vmatmul.bf16.gmra.mxu0 %v813
    %v832 = vpop.f32.mrf.mxu0
    %v833 = vadd.f32 %v789, %v832
    %v834 = vpop.f32.mrf.mxu0
    %v835 = vadd.f32 %v791, %v834
    %836 = vmatmul.bf16.gmra.mxu0 %v816
    %v837 = vpop.f32.mrf.mxu0
    %v838 = vadd.f32 %v794, %v837
    %v839 = vpop.f32.mrf.mxu0
    %840 = vdwg.mxu0
    %842 = vrot.lane.b32.xlu0 %v763, 96
    %v843 = vpop.permute.xlu0 %842
    %v846 = vsel %vm764, %v708, 0
    %v849 = vsel %vm764, %v709, 0
    %v852 = vsel %vm764, %v710, 0
    %854 = vmatpush.bf16.msra.mxu0 0
    %855 = vmatpush.bf16.msra.mxu0 0
    %856 = vmatpush.bf16.msra.mxu0 0
    %857 = vmatpush.bf16.msra.mxu0 0
    %858 = vmatpush.bf16.msra.mxu0 0
    %859 = vmatpush.bf16.msra.mxu0 0
    %860 = vmatpush.bf16.msra.mxu0 0
    %861 = vmatpush.bf16.msra.mxu0 %v843
    %862 = vmatmul.bf16.gmra.mxu0 %v846
    %v863 = vpop.f32.mrf.mxu0
    %v864 = vadd.f32 0.0, %v863
    %v865 = vpop.f32.mrf.mxu0
    %v866 = vadd.f32 0.0, %v865
    %867 = vmatmul.bf16.gmra.mxu0 %v849
    %v868 = vpop.f32.mrf.mxu0
    %v869 = vadd.f32 0.0, %v868
    %v870 = vpop.f32.mrf.mxu0
    %v871 = vadd.f32 0.0, %v870
    %872 = vmatmul.bf16.gmra.mxu0 %v852
    %v873 = vpop.f32.mrf.mxu0
    %v874 = vadd.f32 0.0, %v873
    %v875 = vpop.f32.mrf.mxu0
    %876 = vdwg.mxu0
    %v877 = vadd.f32 %v828, %v864
    %v878 = vadd.f32 %v830, %v866
    %v879 = vadd.f32 %v833, %v869
    %v880 = vadd.f32 %v835, %v871
    %v881 = vadd.f32 %v838, %v874
    %s882 = scalar_lea.vmem %s6, 6
    %v883 = vld [vmem:[%s882] sm:$0x1]
    %v885 = vperm.slane %v883, 0
    %v887 = vadd.f32 %v877, %v885
    %v888 = vadd.f32 %v878, %v885
    %v889 = vadd.f32 %v879, %v885
    %v890 = vadd.f32 %v880, %v885
    %v891 = vadd.f32 %v881, %v885
    %v892 = vxor.u32 %v887, 2147483648
    %v893 = vxor.u32 %v888, 2147483648
    %v894 = vxor.u32 %v889, 2147483648
    %v895 = vxor.u32 %v890, 2147483648
    %v896 = vxor.u32 %v891, 2147483648
    %v897 = vmul.f32 %v892, 1.442695
    %v898 = vpow.pop %v897
    %v899 = vmul.f32 %v893, 1.442695
    %v900 = vpow.pop %v899
    %v901 = vmul.f32 %v894, 1.442695
    %v902 = vpow.pop %v901
    %v903 = vmul.f32 %v895, 1.442695
    %v904 = vpow.pop %v903
    %v905 = vmul.f32 %v896, 1.442695
    %v906 = vpow.pop %v905
    %v907 = vadd.f32 %v898, 1.0
    %v908 = vadd.f32 %v900, 1.0
    %v909 = vadd.f32 %v902, 1.0
    %v910 = vadd.f32 %v904, 1.0
    %v911 = vadd.f32 %v906, 1.0
    %v912 = vrcp.pop %v907
    %v913 = vmul.f32 %v907, %v912
    %v914 = vsub.f32 1.0, %v913
    %v915 = vmul.f32 %v912, %v914
    %v916 = vadd.f32 %v912, %v915
    %vm917 = vweird.f32 %v907
    %vm918 = vweird.f32 %v912
    %vm919 = vmor %vm917, %vm918
    %v920 = vsel %vm919, %v912, %v916
    %v921 = vand.u32 2147483647, %v907
    %vm922 = vcmp.eq.f32.partialorder %v921, 8.507059e+37
    %v923 = vand.u32 %v907, 2147483648
    %v924 = vor.u32 1.1754944e-38, %v923
    %v925 = vsel %vm922, %v924, %v920
    %v926 = vmul.f32 1.0, %v925
    %v927 = vrcp.pop %v908
    %v928 = vmul.f32 %v908, %v927
    %v929 = vsub.f32 1.0, %v928
    %v930 = vmul.f32 %v927, %v929
    %v931 = vadd.f32 %v927, %v930
    %vm932 = vweird.f32 %v908
    %vm933 = vweird.f32 %v927
    %vm934 = vmor %vm932, %vm933
    %v935 = vsel %vm934, %v927, %v931
    %v936 = vand.u32 2147483647, %v908
    %vm937 = vcmp.eq.f32.partialorder %v936, 8.507059e+37
    %v938 = vand.u32 %v908, 2147483648
    %v939 = vor.u32 1.1754944e-38, %v938
    %v940 = vsel %vm937, %v939, %v935
    %v941 = vmul.f32 1.0, %v940
    %v942 = vrcp.pop %v909
    %v943 = vmul.f32 %v909, %v942
    %v944 = vsub.f32 1.0, %v943
    %v945 = vmul.f32 %v942, %v944
    %v946 = vadd.f32 %v942, %v945
    %vm947 = vweird.f32 %v909
    %vm948 = vweird.f32 %v942
    %vm949 = vmor %vm947, %vm948
    %v950 = vsel %vm949, %v942, %v946
    %v951 = vand.u32 2147483647, %v909
    %vm952 = vcmp.eq.f32.partialorder %v951, 8.507059e+37
    %v953 = vand.u32 %v909, 2147483648
    %v954 = vor.u32 1.1754944e-38, %v953
    %v955 = vsel %vm952, %v954, %v950
    %v956 = vmul.f32 1.0, %v955
    %v957 = vrcp.pop %v910
    %v958 = vmul.f32 %v910, %v957
    %v959 = vsub.f32 1.0, %v958
    %v960 = vmul.f32 %v957, %v959
    %v961 = vadd.f32 %v957, %v960
    %vm962 = vweird.f32 %v910
    %vm963 = vweird.f32 %v957
    %vm964 = vmor %vm962, %vm963
    %v965 = vsel %vm964, %v957, %v961
    %v966 = vand.u32 2147483647, %v910
    %vm967 = vcmp.eq.f32.partialorder %v966, 8.507059e+37
    %v968 = vand.u32 %v910, 2147483648
    %v969 = vor.u32 1.1754944e-38, %v968
    %v970 = vsel %vm967, %v969, %v965
    %v971 = vmul.f32 1.0, %v970
    %v972 = vrcp.pop %v911
    %v973 = vmul.f32 %v911, %v972
    %v974 = vsub.f32 1.0, %v973
    %v975 = vmul.f32 %v972, %v974
    %v976 = vadd.f32 %v972, %v975
    %vm977 = vweird.f32 %v911
    %vm978 = vweird.f32 %v972
    %vm979 = vmor %vm977, %vm978
    %v980 = vsel %vm979, %v972, %v976
    %v981 = vand.u32 2147483647, %v911
    %vm982 = vcmp.eq.f32.partialorder %v981, 8.507059e+37
    %v983 = vand.u32 %v911, 2147483648
    %v984 = vor.u32 1.1754944e-38, %v983
    %v985 = vsel %vm982, %v984, %v980
    %v986 = vmul.f32 1.0, %v985
    %v987 = vmul.f32 %v887, %v926
    %v988 = vmul.f32 %v888, %v941
    %v989 = vmul.f32 %v889, %v956
    %v990 = vmul.f32 %v890, %v971
    %v991 = vmul.f32 %v891, %v986
    %s992 = scalar_lea.vmem %s5, 384
    %v993 = vld [vmem:[%s992] sm:$0xf]
    %v994 = vld [vmem:[%s992 + $0x4] sm:$0xf]
    %v995 = vld [vmem:[%s992 + $0x8] sm:$0xf]
    %v996 = vld [vmem:[%s992 + $0xc] sm:$0xf]
    %v997 = vpack.c.bf16 %v988, %v987
    %v998 = vpack.c.bf16 %v990, %v989
    %v999 = vpack.c.bf16 %v991, %v991
    %s1000 = scalar_lea.vmem %s6, 7
    %v1001 = vld [vmem:[%s1000] sm:$0x1]
    %v1003 = vperm.slane %v1001, 0
    %v1009 = vunpack.c.l.b16 %v993
    %v1010 = vunpack.c.l.b16 %v994
    %v1011 = vunpack.c.l.b16 %v995
    %v1012 = vunpack.c.l.b16 %v996
    %v1013 = vpack.c.b16 %v1010, %v1009
    %v1014 = vpack.c.b16 %v1012, %v1011
    %v1018 = vsel %vm256, %v997, 0
    %v1021 = vsel %vm256, %v998, 0
    %v1024 = vsel %vm256, %v999, 0
    %1026 = vmatpush.bf16.msra.mxu0 0
    %1027 = vmatpush.bf16.msra.mxu0 0
    %1028 = vmatpush.bf16.msra.mxu0 0
    %1029 = vmatpush.bf16.msra.mxu0 0
    %1030 = vmatpush.bf16.msra.mxu0 0
    %1031 = vmatpush.bf16.msra.mxu0 0
    %1032 = vmatpush.bf16.msra.mxu0 %v1014
    %1033 = vmatpush.bf16.msra.mxu0 %v1013
    %1034 = vmatmul.bf16.gmra.mxu0 %v1018
    %v1035 = vpop.f32.mrf.mxu0
    %v1036 = vadd.f32 %v1003, %v1035
    %v1037 = vpop.f32.mrf.mxu0
    %v1038 = vadd.f32 %v1003, %v1037
    %1039 = vmatmul.bf16.gmra.mxu0 %v1021
    %v1040 = vpop.f32.mrf.mxu0
    %v1041 = vadd.f32 %v1003, %v1040
    %v1042 = vpop.f32.mrf.mxu0
    %v1043 = vadd.f32 %v1003, %v1042
    %1044 = vmatmul.bf16.gmra.mxu0 %v1024
    %v1045 = vpop.f32.mrf.mxu0
    %v1046 = vadd.f32 %v1003, %v1045
    %v1047 = vpop.f32.mrf.mxu0
    %1048 = vdwg.mxu0
    %v1049 = vxor.u32 %v1036, 2147483648
    %v1050 = vxor.u32 %v1038, 2147483648
    %v1051 = vxor.u32 %v1041, 2147483648
    %v1052 = vxor.u32 %v1043, 2147483648
    %v1053 = vxor.u32 %v1046, 2147483648
    %v1054 = vmul.f32 %v1049, 1.442695
    %v1055 = vpow.pop %v1054
    %v1056 = vmul.f32 %v1050, 1.442695
    %v1057 = vpow.pop %v1056
    %v1058 = vmul.f32 %v1051, 1.442695
    %v1059 = vpow.pop %v1058
    %v1060 = vmul.f32 %v1052, 1.442695
    %v1061 = vpow.pop %v1060
    %v1062 = vmul.f32 %v1053, 1.442695
    %v1063 = vpow.pop %v1062
    %v1064 = vadd.f32 %v1055, 1.0
    %v1065 = vadd.f32 %v1057, 1.0
    %v1066 = vadd.f32 %v1059, 1.0
    %v1067 = vadd.f32 %v1061, 1.0
    %v1068 = vadd.f32 %v1063, 1.0
    %v1069 = vrcp.pop %v1064
    %v1070 = vmul.f32 %v1064, %v1069
    %v1071 = vsub.f32 1.0, %v1070
    %v1072 = vmul.f32 %v1069, %v1071
    %v1073 = vadd.f32 %v1069, %v1072
    %vm1074 = vweird.f32 %v1064
    %vm1075 = vweird.f32 %v1069
    %vm1076 = vmor %vm1074, %vm1075
    %v1077 = vsel %vm1076, %v1069, %v1073
    %v1078 = vand.u32 2147483647, %v1064
    %vm1079 = vcmp.eq.f32.partialorder %v1078, 8.507059e+37
    %v1080 = vand.u32 %v1064, 2147483648
    %v1081 = vor.u32 1.1754944e-38, %v1080
    %v1082 = vsel %vm1079, %v1081, %v1077
    %v1083 = vmul.f32 1.0, %v1082
    %v1084 = vrcp.pop %v1065
    %v1085 = vmul.f32 %v1065, %v1084
    %v1086 = vsub.f32 1.0, %v1085
    %v1087 = vmul.f32 %v1084, %v1086
    %v1088 = vadd.f32 %v1084, %v1087
    %vm1089 = vweird.f32 %v1065
    %vm1090 = vweird.f32 %v1084
    %vm1091 = vmor %vm1089, %vm1090
    %v1092 = vsel %vm1091, %v1084, %v1088
    %v1093 = vand.u32 2147483647, %v1065
    %vm1094 = vcmp.eq.f32.partialorder %v1093, 8.507059e+37
    %v1095 = vand.u32 %v1065, 2147483648
    %v1096 = vor.u32 1.1754944e-38, %v1095
    %v1097 = vsel %vm1094, %v1096, %v1092
    %v1098 = vmul.f32 1.0, %v1097
    %v1099 = vrcp.pop %v1066
    %v1100 = vmul.f32 %v1066, %v1099
    %v1101 = vsub.f32 1.0, %v1100
    %v1102 = vmul.f32 %v1099, %v1101
    %v1103 = vadd.f32 %v1099, %v1102
    %vm1104 = vweird.f32 %v1066
    %vm1105 = vweird.f32 %v1099
    %vm1106 = vmor %vm1104, %vm1105
    %v1107 = vsel %vm1106, %v1099, %v1103
    %v1108 = vand.u32 2147483647, %v1066
    %vm1109 = vcmp.eq.f32.partialorder %v1108, 8.507059e+37
    %v1110 = vand.u32 %v1066, 2147483648
    %v1111 = vor.u32 1.1754944e-38, %v1110
    %v1112 = vsel %vm1109, %v1111, %v1107
    %v1113 = vmul.f32 1.0, %v1112
    %v1114 = vrcp.pop %v1067
    %v1115 = vmul.f32 %v1067, %v1114
    %v1116 = vsub.f32 1.0, %v1115
    %v1117 = vmul.f32 %v1114, %v1116
    %v1118 = vadd.f32 %v1114, %v1117
    %vm1119 = vweird.f32 %v1067
    %vm1120 = vweird.f32 %v1114
    %vm1121 = vmor %vm1119, %vm1120
    %v1122 = vsel %vm1121, %v1114, %v1118
    %v1123 = vand.u32 2147483647, %v1067
    %vm1124 = vcmp.eq.f32.partialorder %v1123, 8.507059e+37
    %v1125 = vand.u32 %v1067, 2147483648
    %v1126 = vor.u32 1.1754944e-38, %v1125
    %v1127 = vsel %vm1124, %v1126, %v1122
    %v1128 = vmul.f32 1.0, %v1127
    %v1129 = vrcp.pop %v1068
    %v1130 = vmul.f32 %v1068, %v1129
    %v1131 = vsub.f32 1.0, %v1130
    %v1132 = vmul.f32 %v1129, %v1131
    %v1133 = vadd.f32 %v1129, %v1132
    %vm1134 = vweird.f32 %v1068
    %vm1135 = vweird.f32 %v1129
    %vm1136 = vmor %vm1134, %vm1135
    %v1137 = vsel %vm1136, %v1129, %v1133
    %v1138 = vand.u32 2147483647, %v1068
    %vm1139 = vcmp.eq.f32.partialorder %v1138, 8.507059e+37
    %v1140 = vand.u32 %v1068, 2147483648
    %v1141 = vor.u32 1.1754944e-38, %v1140
    %v1142 = vsel %vm1139, %v1141, %v1137
    %v1143 = vmul.f32 1.0, %v1142
    %v1144 = vmul.f32 %v1036, %v1083
    %v1145 = vmul.f32 %v1038, %v1098
    %v1146 = vmul.f32 %v1041, %v1113
    %v1147 = vmul.f32 %v1043, %v1128
    %v1148 = vmul.f32 %v1046, %v1143
    %s1149 = scalar_lea.vmem %s5, 432
    %v1150 = vld [vmem:[%s1149] sm:$0xf]
    %v1151 = vld [vmem:[%s1149 + $0x4] sm:$0xf]
    %v1152 = vld [vmem:[%s1149 + $0x8] sm:$0xf]
    %v1153 = vld [vmem:[%s1149 + $0xc] sm:$0xf]
    %v1154 = vpack.c.bf16 %v1145, %v1144
    %v1155 = vpack.c.bf16 %v1147, %v1146
    %v1156 = vpack.c.bf16 %v1148, %v1148
    %s1157 = scalar_lea.vmem %s6, 8
    %v1158 = vld [vmem:[%s1157] sm:$0x1]
    %v1160 = vperm.slane %v1158, 0
    %v1166 = vunpack.c.l.b16 %v1150
    %v1167 = vunpack.c.l.b16 %v1151
    %v1168 = vunpack.c.l.b16 %v1152
    %v1169 = vunpack.c.l.b16 %v1153
    %v1170 = vpack.c.b16 %v1167, %v1166
    %v1171 = vpack.c.b16 %v1169, %v1168
    %v1175 = vsel %vm256, %v1154, 0
    %v1178 = vsel %vm256, %v1155, 0
    %v1181 = vsel %vm256, %v1156, 0
    %1183 = vmatpush.bf16.msra.mxu0 0
    %1184 = vmatpush.bf16.msra.mxu0 0
    %1185 = vmatpush.bf16.msra.mxu0 0
    %1186 = vmatpush.bf16.msra.mxu0 0
    %1187 = vmatpush.bf16.msra.mxu0 0
    %1188 = vmatpush.bf16.msra.mxu0 0
    %1189 = vmatpush.bf16.msra.mxu0 %v1171
    %1190 = vmatpush.bf16.msra.mxu0 %v1170
    %1191 = vmatmul.bf16.gmra.mxu0 %v1175
    %v1192 = vpop.f32.mrf.mxu0
    %v1193 = vadd.f32 %v1160, %v1192
    %v1194 = vpop.f32.mrf.mxu0
    %v1195 = vadd.f32 %v1160, %v1194
    %1196 = vmatmul.bf16.gmra.mxu0 %v1178
    %v1197 = vpop.f32.mrf.mxu0
    %v1198 = vadd.f32 %v1160, %v1197
    %v1199 = vpop.f32.mrf.mxu0
    %v1200 = vadd.f32 %v1160, %v1199
    %1201 = vmatmul.bf16.gmra.mxu0 %v1181
    %v1202 = vpop.f32.mrf.mxu0
    %v1203 = vadd.f32 %v1160, %v1202
    %v1204 = vpop.f32.mrf.mxu0
    %1205 = vdwg.mxu0
    %v1206 = vpack.c.bf16 %v1195, %v1193
    %v1207 = vpack.c.bf16 %v1200, %v1198
    %v1208 = vpack.c.bf16 %v1203, %v1203
    %vm1209 = vcmask 326656
    %v1211 = vsel %vm1209, %v716, 0
    %v1214 = vsel %vm45, %v1208, 0
    %1216 = vmatpush.bf16.msra.mxu0 0
    %1217 = vmatpush.bf16.msra.mxu0 0
    %1218 = vmatpush.bf16.msra.mxu0 0
    %1219 = vmatpush.bf16.msra.mxu0 0
    %1220 = vmatpush.bf16.msra.mxu0 0
    %1221 = vmatpush.bf16.msra.mxu0 %v1214
    %1222 = vmatpush.bf16.msra.mxu0 %v1207
    %1223 = vmatpush.bf16.msra.mxu0 %v1206
    %1224 = vmatmul.bf16.gmra.mxu0 %v1211
    %v1225 = vpop.f32.mrf.mxu0
    %v1226 = vadd.f32 0.0, %v1225
    %v1227 = vpop.f32.mrf.mxu0
    %v1228 = vadd.f32 0.0, %v1227
    %1229 = vdwg.mxu0
    %s1230 = scalar_lea.vmem %s5, 480
    %v1231 = vld [vmem:[%s1230] sm:$0xf]
    %v1232 = vld [vmem:[%s1230 + $0x4] sm:$0xf]
    %v1233 = vld [vmem:[%s1230 + $0x8] sm:$0xf]
    %v1234 = vld [vmem:[%s1230 + $0xc] sm:$0xf]
    %v1235 = vld [vmem:[%s1230 + $0x10] sm:$0xf]
    %v1236 = vld [vmem:[%s1230 + $0x14] sm:$0xf]
    %v1237 = vld [vmem:[%s1230 + $0x18] sm:$0xf]
    %v1238 = vld [vmem:[%s1230 + $0x1c] sm:$0xf]
    %v1239 = vld [vmem:[%s1230 + $0x20] sm:$0xf]
    %v1240 = vld [vmem:[%s1230 + $0x24] sm:$0xf]
    %v1241 = vld [vmem:[%s1230 + $0x28] sm:$0xf]
    %v1242 = vld [vmem:[%s1230 + $0x2c] sm:$0xf]
    %v1243 = vpack.c.bf16 %v1228, %v1226
    %v1248 = vunpack.c.l.b16 %v1235
    %v1249 = vunpack.c.l.b16 %v1236
    %v1250 = vunpack.c.l.b16 %v1237
    %v1251 = vunpack.c.l.b16 %v1238
    %v1252 = vpack.c.b16 %v1249, %v1248
    %v1253 = vpack.c.b16 %v1251, %v1250
    %v1257 = vsel %vm256, %v1243, 0
    %1259 = vmatpush.bf16.msra.mxu0 0
    %1260 = vmatpush.bf16.msra.mxu0 0
    %1261 = vmatpush.bf16.msra.mxu0 0
    %1262 = vmatpush.bf16.msra.mxu0 0
    %1263 = vmatpush.bf16.msra.mxu0 0
    %1264 = vmatpush.bf16.msra.mxu0 0
    %1265 = vmatpush.bf16.msra.mxu0 %v1253
    %1266 = vmatpush.bf16.msra.mxu0 %v1252
    %1267 = vmatmul.bf16.gmra.mxu0 %v1257
    %v1268 = vpop.f32.mrf.mxu0
    %v1269 = vadd.f32 0.0, %v1268
    %v1270 = vpop.f32.mrf.mxu0
    %v1271 = vadd.f32 0.0, %v1270
    %1272 = vdwg.mxu0
    %v1277 = vunpack.c.l.b16 %v1231
    %v1278 = vunpack.c.l.b16 %v1232
    %v1279 = vunpack.c.l.b16 %v1233
    %v1280 = vunpack.c.l.b16 %v1234
    %v1281 = vpack.c.b16 %v1278, %v1277
    %v1282 = vpack.c.b16 %v1280, %v1279
    %1285 = vmatpush.bf16.msra.mxu0 0
    %1286 = vmatpush.bf16.msra.mxu0 0
    %1287 = vmatpush.bf16.msra.mxu0 0
    %1288 = vmatpush.bf16.msra.mxu0 0
    %1289 = vmatpush.bf16.msra.mxu0 0
    %1290 = vmatpush.bf16.msra.mxu0 0
    %1291 = vmatpush.bf16.msra.mxu0 %v1282
    %1292 = vmatpush.bf16.msra.mxu0 %v1281
    %1293 = vmatmul.bf16.gmra.mxu0 %v739
    %v1294 = vpop.f32.mrf.mxu0
    %v1295 = vadd.f32 %v1269, %v1294
    %v1296 = vpop.f32.mrf.mxu0
    %v1297 = vadd.f32 %v1271, %v1296
    %1298 = vdwg.mxu0
    %v1299 = vpack.c.bf16 %v273, %v273
    %v1304 = vunpack.c.l.b16 %v1239
    %v1305 = vunpack.c.l.b16 %v1240
    %v1306 = vunpack.c.l.b16 %v1241
    %v1307 = vunpack.c.l.b16 %v1242
    %v1308 = vpack.c.b16 %v1305, %v1304
    %v1309 = vpack.c.b16 %v1307, %v1306
    %v1313 = vsel %vm256, %v1299, 0
    %1315 = vmatpush.bf16.msra.mxu0 0
    %1316 = vmatpush.bf16.msra.mxu0 0
    %1317 = vmatpush.bf16.msra.mxu0 0
    %1318 = vmatpush.bf16.msra.mxu0 0
    %1319 = vmatpush.bf16.msra.mxu0 0
    %1320 = vmatpush.bf16.msra.mxu0 0
    %1321 = vmatpush.bf16.msra.mxu0 %v1309
    %1322 = vmatpush.bf16.msra.mxu0 %v1308
    %1323 = vmatmul.bf16.gmra.mxu0 %v1313
    %v1324 = vpop.f32.mrf.mxu0
    %v1325 = vadd.f32 0.0, %v1324
    %v1326 = vpop.f32.mrf.mxu0
    %1327 = vdwg.mxu0
    %v1328 = vperm.slane %v1325, 0
    %v1329 = vadd.f32 %v1295, %v1328
    %v1330 = vadd.f32 %v1297, %v1328
    %s1331 = scalar_lea.vmem %s6, 9
    %v1332 = vld [vmem:[%s1331] sm:$0x1]
    %v1334 = vperm.slane %v1332, 0
    %v1336 = vadd.f32 %v1329, %v1334
    %v1337 = vadd.f32 %v1330, %v1334
    %v1338 = vxor.u32 %v1336, 2147483648
    %v1339 = vxor.u32 %v1337, 2147483648
    %v1340 = vmul.f32 %v1338, 1.442695
    %v1341 = vpow.pop %v1340
    %v1342 = vmul.f32 %v1339, 1.442695
    %v1343 = vpow.pop %v1342
    %v1344 = vadd.f32 %v1341, 1.0
    %v1345 = vadd.f32 %v1343, 1.0
    %v1346 = vrcp.pop %v1344
    %v1347 = vmul.f32 %v1344, %v1346
    %v1348 = vsub.f32 1.0, %v1347
    %v1349 = vmul.f32 %v1346, %v1348
    %v1350 = vadd.f32 %v1346, %v1349
    %vm1351 = vweird.f32 %v1344
    %vm1352 = vweird.f32 %v1346
    %vm1353 = vmor %vm1351, %vm1352
    %v1354 = vsel %vm1353, %v1346, %v1350
    %v1355 = vand.u32 2147483647, %v1344
    %vm1356 = vcmp.eq.f32.partialorder %v1355, 8.507059e+37
    %v1357 = vand.u32 %v1344, 2147483648
    %v1358 = vor.u32 1.1754944e-38, %v1357
    %v1359 = vsel %vm1356, %v1358, %v1354
    %v1360 = vmul.f32 1.0, %v1359
    %v1361 = vrcp.pop %v1345
    %v1362 = vmul.f32 %v1345, %v1361
    %v1363 = vsub.f32 1.0, %v1362
    %v1364 = vmul.f32 %v1361, %v1363
    %v1365 = vadd.f32 %v1361, %v1364
    %vm1366 = vweird.f32 %v1345
    %vm1367 = vweird.f32 %v1361
    %vm1368 = vmor %vm1366, %vm1367
    %v1369 = vsel %vm1368, %v1361, %v1365
    %v1370 = vand.u32 2147483647, %v1345
    %vm1371 = vcmp.eq.f32.partialorder %v1370, 8.507059e+37
    %v1372 = vand.u32 %v1345, 2147483648
    %v1373 = vor.u32 1.1754944e-38, %v1372
    %v1374 = vsel %vm1371, %v1373, %v1369
    %v1375 = vmul.f32 1.0, %v1374
    %v1376 = vmul.f32 %v1336, %v1360
    %v1377 = vmul.f32 %v1337, %v1375
    %s1378 = scalar_lea.vmem %s5, 528
    %v1379 = vld [vmem:[%s1378] sm:$0xf]
    %v1380 = vld [vmem:[%s1378 + $0x4] sm:$0xf]
    %v1381 = vld [vmem:[%s1378 + $0x8] sm:$0xf]
    %v1382 = vld [vmem:[%s1378 + $0xc] sm:$0xf]
    %v1383 = vpack.c.bf16 %v1377, %v1376
    %s1384 = scalar_lea.vmem %s6, 10
    %v1385 = vld [vmem:[%s1384] sm:$0x1]
    %v1387 = vperm.slane %v1385, 0
    %v1393 = vunpack.c.l.b16 %v1379
    %v1394 = vunpack.c.l.b16 %v1380
    %v1395 = vunpack.c.l.b16 %v1381
    %v1396 = vunpack.c.l.b16 %v1382
    %v1397 = vpack.c.b16 %v1394, %v1393
    %v1398 = vpack.c.b16 %v1396, %v1395
    %v1402 = vsel %vm256, %v1383, 0
    %1404 = vmatpush.bf16.msra.mxu0 0
    %1405 = vmatpush.bf16.msra.mxu0 0
    %1406 = vmatpush.bf16.msra.mxu0 0
    %1407 = vmatpush.bf16.msra.mxu0 0
    %1408 = vmatpush.bf16.msra.mxu0 0
    %1409 = vmatpush.bf16.msra.mxu0 0
    %1410 = vmatpush.bf16.msra.mxu0 %v1398
    %1411 = vmatpush.bf16.msra.mxu0 %v1397
    %1412 = vmatmul.bf16.gmra.mxu0 %v1402
    %v1413 = vpop.f32.mrf.mxu0
    %v1414 = vadd.f32 %v1387, %v1413
    %v1415 = vpop.f32.mrf.mxu0
    %v1416 = vadd.f32 %v1387, %v1415
    %1417 = vdwg.mxu0
    %v1418 = vxor.u32 %v1414, 2147483648
    %v1419 = vxor.u32 %v1416, 2147483648
    %v1420 = vmul.f32 %v1418, 1.442695
    %v1421 = vpow.pop %v1420
    %v1422 = vmul.f32 %v1419, 1.442695
    %v1423 = vpow.pop %v1422
    %v1424 = vadd.f32 %v1421, 1.0
    %v1425 = vadd.f32 %v1423, 1.0
    %v1426 = vrcp.pop %v1424
    %v1427 = vmul.f32 %v1424, %v1426
    %v1428 = vsub.f32 1.0, %v1427
    %v1429 = vmul.f32 %v1426, %v1428
    %v1430 = vadd.f32 %v1426, %v1429
    %vm1431 = vweird.f32 %v1424
    %vm1432 = vweird.f32 %v1426
    %vm1433 = vmor %vm1431, %vm1432
    %v1434 = vsel %vm1433, %v1426, %v1430
    %v1435 = vand.u32 2147483647, %v1424
    %vm1436 = vcmp.eq.f32.partialorder %v1435, 8.507059e+37
    %v1437 = vand.u32 %v1424, 2147483648
    %v1438 = vor.u32 1.1754944e-38, %v1437
    %v1439 = vsel %vm1436, %v1438, %v1434
    %v1440 = vmul.f32 1.0, %v1439
    %v1441 = vrcp.pop %v1425
    %v1442 = vmul.f32 %v1425, %v1441
    %v1443 = vsub.f32 1.0, %v1442
    %v1444 = vmul.f32 %v1441, %v1443
    %v1445 = vadd.f32 %v1441, %v1444
    %vm1446 = vweird.f32 %v1425
    %vm1447 = vweird.f32 %v1441
    %vm1448 = vmor %vm1446, %vm1447
    %v1449 = vsel %vm1448, %v1441, %v1445
    %v1450 = vand.u32 2147483647, %v1425
    %vm1451 = vcmp.eq.f32.partialorder %v1450, 8.507059e+37
    %v1452 = vand.u32 %v1425, 2147483648
    %v1453 = vor.u32 1.1754944e-38, %v1452
    %v1454 = vsel %vm1451, %v1453, %v1449
    %v1455 = vmul.f32 1.0, %v1454
    %v1456 = vmul.f32 %v1414, %v1440
    %v1457 = vmul.f32 %v1416, %v1455
    %s1458 = scalar_lea.vmem %s5, 576
    %v1459 = vld [vmem:[%s1458] sm:$0xf]
    %v1460 = vld [vmem:[%s1458 + $0x4] sm:$0xf]
    %v1461 = vld [vmem:[%s1458 + $0x8] sm:$0xf]
    %v1462 = vld [vmem:[%s1458 + $0xc] sm:$0xf]
    %v1463 = vpack.c.bf16 %v1457, %v1456
    %s1464 = scalar_lea.vmem %s6, 11
    %v1465 = vld [vmem:[%s1464] sm:$0x1]
    %v1467 = vperm.slane %v1465, 0
    %v1473 = vunpack.c.l.b16 %v1459
    %v1474 = vunpack.c.l.b16 %v1460
    %v1475 = vunpack.c.l.b16 %v1461
    %v1476 = vunpack.c.l.b16 %v1462
    %v1477 = vpack.c.b16 %v1474, %v1473
    %v1478 = vpack.c.b16 %v1476, %v1475
    %v1482 = vsel %vm256, %v1463, 0
    %1484 = vmatpush.bf16.msra.mxu0 0
    %1485 = vmatpush.bf16.msra.mxu0 0
    %1486 = vmatpush.bf16.msra.mxu0 0
    %1487 = vmatpush.bf16.msra.mxu0 0
    %1488 = vmatpush.bf16.msra.mxu0 0
    %1489 = vmatpush.bf16.msra.mxu0 0
    %1490 = vmatpush.bf16.msra.mxu0 %v1478
    %1491 = vmatpush.bf16.msra.mxu0 %v1477
    %1492 = vmatmul.bf16.gmra.mxu0 %v1482
    %v1493 = vpop.f32.mrf.mxu0
    %v1494 = vadd.f32 %v1467, %v1493
    %v1495 = vpop.f32.mrf.mxu0
    %v1496 = vadd.f32 %v1467, %v1495
    %1497 = vdwg.mxu0
    %1500 = vrot.lane.b32.xlu0 %v1494, 32
    %v1501 = vpop.permute.xlu0 %1500
    %1502 = vrot.lane.b32.xlu0 %v1496, 32
    %v1503 = vpop.permute.xlu0 %1502
    %v1506 = vadd.f32 %v252, %v1501
    %v1507 = vadd.f32 %v254, %v1503
    %v1508 = vadd.f32 %v620, %v1193
    %v1509 = vadd.f32 %v622, %v1195
    %v1510 = vadd.f32 %v625, %v1198
    %v1511 = vadd.f32 %v627, %v1200
    %v1512 = vadd.f32 %v630, %v1203
    %s1513 = scalar_lea.vmem %s5, 672
    %v1514 = vld [vmem:[%s1513] sm:$0xf]
    %v1515 = vld [vmem:[%s1513 + $0x4] sm:$0xf]
    %v1516 = vld [vmem:[%s1513 + $0x8] sm:$0xf]
    %v1517 = vld [vmem:[%s1513 + $0xc] sm:$0xf]
    %v1518 = vpack.c.bf16 %v1507, %v1506
    %1520 = vrot.lane.b32.xlu0 %v1518, 96
    %v1521 = vpop.permute.xlu0 %1520
    %v1526 = vunpack.c.l.b16 %v1514
    %v1527 = vunpack.c.l.b16 %v1515
    %v1528 = vunpack.c.l.b16 %v1516
    %v1529 = vunpack.c.l.b16 %v1517
    %v1530 = vpack.c.b16 %v1527, %v1526
    %v1531 = vpack.c.b16 %v1529, %v1528
    %v1535 = vsel %vm256, %v1521, 0
    %1537 = vmatpush.bf16.msra.mxu0 0
    %1538 = vmatpush.bf16.msra.mxu0 0
    %1539 = vmatpush.bf16.msra.mxu0 0
    %1540 = vmatpush.bf16.msra.mxu0 0
    %1541 = vmatpush.bf16.msra.mxu0 0
    %1542 = vmatpush.bf16.msra.mxu0 0
    %1543 = vmatpush.bf16.msra.mxu0 %v1531
    %1544 = vmatpush.bf16.msra.mxu0 %v1530
    %1545 = vmatmul.bf16.gmra.mxu0 %v1535
    %v1546 = vpop.f32.mrf.mxu0
    %v1547 = vadd.f32 0.0, %v1546
    %v1548 = vpop.f32.mrf.mxu0
    %v1549 = vadd.f32 0.0, %v1548
    %1550 = vdwg.mxu0
    %s1551 = scalar_lea.vmem %s5, 624
    %v1552 = vld [vmem:[%s1551] sm:$0xf]
    %v1553 = vld [vmem:[%s1551 + $0x4] sm:$0xf]
    %v1554 = vld [vmem:[%s1551 + $0x8] sm:$0xf]
    %v1555 = vld [vmem:[%s1551 + $0xc] sm:$0xf]
    %v1556 = vpack.c.bf16 %v1509, %v1508
    %v1557 = vpack.c.bf16 %v1511, %v1510
    %v1558 = vpack.c.bf16 %v1512, %v1512
    %v1559 = vpack.c.bf16 %v1549, %v1547
    %1560 = vmatpush.bf16.msra.mxu0 0
    %1561 = vmatpush.bf16.msra.mxu0 0
    %1562 = vmatpush.bf16.msra.mxu0 0
    %1563 = vmatpush.bf16.msra.mxu0 0
    %1564 = vmatpush.bf16.msra.mxu0 0
    %1565 = vmatpush.bf16.msra.mxu0 0
    %1566 = vmatpush.bf16.msra.mxu0 0
    %1567 = vmatpush.bf16.msra.mxu0 %v1559
    %1568 = vmatmul.bf16.gmra.mxu0 %v766
    %v1569 = vpop.f32.mrf.mxu0
    %v1570 = vadd.f32 0.0, %v1569
    %v1571 = vpop.f32.mrf.mxu0
    %v1572 = vadd.f32 0.0, %v1571
    %1573 = vmatmul.bf16.gmra.mxu0 %v769
    %v1574 = vpop.f32.mrf.mxu0
    %v1575 = vadd.f32 0.0, %v1574
    %v1576 = vpop.f32.mrf.mxu0
    %v1577 = vadd.f32 0.0, %v1576
    %1578 = vmatmul.bf16.gmra.mxu0 %v772
    %v1579 = vpop.f32.mrf.mxu0
    %v1580 = vadd.f32 0.0, %v1579
    %v1581 = vpop.f32.mrf.mxu0
    %1582 = vdwg.mxu0
    %v1587 = vunpack.c.l.b16 %v1552
    %v1588 = vunpack.c.l.b16 %v1553
    %v1589 = vunpack.c.l.b16 %v1554
    %v1590 = vunpack.c.l.b16 %v1555
    %v1591 = vpack.c.b16 %v1588, %v1587
    %v1592 = vpack.c.b16 %v1590, %v1589
    %v1596 = vsel %vm256, %v1556, 0
    %v1599 = vsel %vm256, %v1557, 0
    %v1602 = vsel %vm256, %v1558, 0
    %1604 = vmatpush.bf16.msra.mxu0 0
    %1605 = vmatpush.bf16.msra.mxu0 0
    %1606 = vmatpush.bf16.msra.mxu0 0
    %1607 = vmatpush.bf16.msra.mxu0 0
    %1608 = vmatpush.bf16.msra.mxu0 0
    %1609 = vmatpush.bf16.msra.mxu0 0
    %1610 = vmatpush.bf16.msra.mxu0 %v1592
    %1611 = vmatpush.bf16.msra.mxu0 %v1591
    %1612 = vmatmul.bf16.gmra.mxu0 %v1596
    %v1613 = vpop.f32.mrf.mxu0
    %v1614 = vadd.f32 %v1570, %v1613
    %v1615 = vpop.f32.mrf.mxu0
    %v1616 = vadd.f32 %v1572, %v1615
    %1617 = vmatmul.bf16.gmra.mxu0 %v1599
    %v1618 = vpop.f32.mrf.mxu0
    %v1619 = vadd.f32 %v1575, %v1618
    %v1620 = vpop.f32.mrf.mxu0
    %v1621 = vadd.f32 %v1577, %v1620
    %1622 = vmatmul.bf16.gmra.mxu0 %v1602
    %v1623 = vpop.f32.mrf.mxu0
    %v1624 = vadd.f32 %v1580, %v1623
    %v1625 = vpop.f32.mrf.mxu0
    %1626 = vdwg.mxu0
    %1628 = vrot.lane.b32.xlu0 %v1559, 96
    %v1629 = vpop.permute.xlu0 %1628
    %1631 = vmatpush.bf16.msra.mxu0 0
    %1632 = vmatpush.bf16.msra.mxu0 0
    %1633 = vmatpush.bf16.msra.mxu0 0
    %1634 = vmatpush.bf16.msra.mxu0 0
    %1635 = vmatpush.bf16.msra.mxu0 0
    %1636 = vmatpush.bf16.msra.mxu0 0
    %1637 = vmatpush.bf16.msra.mxu0 0
    %1638 = vmatpush.bf16.msra.mxu0 %v1629
    %1639 = vmatmul.bf16.gmra.mxu0 %v846
    %v1640 = vpop.f32.mrf.mxu0
    %v1641 = vadd.f32 0.0, %v1640
    %v1642 = vpop.f32.mrf.mxu0
    %v1643 = vadd.f32 0.0, %v1642
    %1644 = vmatmul.bf16.gmra.mxu0 %v849
    %v1645 = vpop.f32.mrf.mxu0
    %v1646 = vadd.f32 0.0, %v1645
    %v1647 = vpop.f32.mrf.mxu0
    %v1648 = vadd.f32 0.0, %v1647
    %1649 = vmatmul.bf16.gmra.mxu0 %v852
    %v1650 = vpop.f32.mrf.mxu0
    %v1651 = vadd.f32 0.0, %v1650
    %v1652 = vpop.f32.mrf.mxu0
    %1653 = vdwg.mxu0
    %v1654 = vadd.f32 %v1614, %v1641
    %v1655 = vadd.f32 %v1616, %v1643
    %v1656 = vadd.f32 %v1619, %v1646
    %v1657 = vadd.f32 %v1621, %v1648
    %v1658 = vadd.f32 %v1624, %v1651
    %s1659 = scalar_lea.vmem %s6, 12
    %v1660 = vld [vmem:[%s1659] sm:$0x1]
    %v1662 = vperm.slane %v1660, 0
    %v1664 = vadd.f32 %v1654, %v1662
    %v1665 = vadd.f32 %v1655, %v1662
    %v1666 = vadd.f32 %v1656, %v1662
    %v1667 = vadd.f32 %v1657, %v1662
    %v1668 = vadd.f32 %v1658, %v1662
    %v1669 = vxor.u32 %v1664, 2147483648
    %v1670 = vxor.u32 %v1665, 2147483648
    %v1671 = vxor.u32 %v1666, 2147483648
    %v1672 = vxor.u32 %v1667, 2147483648
    %v1673 = vxor.u32 %v1668, 2147483648
    %v1674 = vmul.f32 %v1669, 1.442695
    %v1675 = vpow.pop %v1674
    %v1676 = vmul.f32 %v1670, 1.442695
    %v1677 = vpow.pop %v1676
    %v1678 = vmul.f32 %v1671, 1.442695
    %v1679 = vpow.pop %v1678
    %v1680 = vmul.f32 %v1672, 1.442695
    %v1681 = vpow.pop %v1680
    %v1682 = vmul.f32 %v1673, 1.442695
    %v1683 = vpow.pop %v1682
    %v1684 = vadd.f32 %v1675, 1.0
    %v1685 = vadd.f32 %v1677, 1.0
    %v1686 = vadd.f32 %v1679, 1.0
    %v1687 = vadd.f32 %v1681, 1.0
    %v1688 = vadd.f32 %v1683, 1.0
    %v1689 = vrcp.pop %v1684
    %v1690 = vmul.f32 %v1684, %v1689
    %v1691 = vsub.f32 1.0, %v1690
    %v1692 = vmul.f32 %v1689, %v1691
    %v1693 = vadd.f32 %v1689, %v1692
    %vm1694 = vweird.f32 %v1684
    %vm1695 = vweird.f32 %v1689
    %vm1696 = vmor %vm1694, %vm1695
    %v1697 = vsel %vm1696, %v1689, %v1693
    %v1698 = vand.u32 2147483647, %v1684
    %vm1699 = vcmp.eq.f32.partialorder %v1698, 8.507059e+37
    %v1700 = vand.u32 %v1684, 2147483648
    %v1701 = vor.u32 1.1754944e-38, %v1700
    %v1702 = vsel %vm1699, %v1701, %v1697
    %v1703 = vmul.f32 1.0, %v1702
    %v1704 = vrcp.pop %v1685
    %v1705 = vmul.f32 %v1685, %v1704
    %v1706 = vsub.f32 1.0, %v1705
    %v1707 = vmul.f32 %v1704, %v1706
    %v1708 = vadd.f32 %v1704, %v1707
    %vm1709 = vweird.f32 %v1685
    %vm1710 = vweird.f32 %v1704
    %vm1711 = vmor %vm1709, %vm1710
    %v1712 = vsel %vm1711, %v1704, %v1708
    %v1713 = vand.u32 2147483647, %v1685
    %vm1714 = vcmp.eq.f32.partialorder %v1713, 8.507059e+37
    %v1715 = vand.u32 %v1685, 2147483648
    %v1716 = vor.u32 1.1754944e-38, %v1715
    %v1717 = vsel %vm1714, %v1716, %v1712
    %v1718 = vmul.f32 1.0, %v1717
    %v1719 = vrcp.pop %v1686
    %v1720 = vmul.f32 %v1686, %v1719
    %v1721 = vsub.f32 1.0, %v1720
    %v1722 = vmul.f32 %v1719, %v1721
    %v1723 = vadd.f32 %v1719, %v1722
    %vm1724 = vweird.f32 %v1686
    %vm1725 = vweird.f32 %v1719
    %vm1726 = vmor %vm1724, %vm1725
    %v1727 = vsel %vm1726, %v1719, %v1723
    %v1728 = vand.u32 2147483647, %v1686
    %vm1729 = vcmp.eq.f32.partialorder %v1728, 8.507059e+37
    %v1730 = vand.u32 %v1686, 2147483648
    %v1731 = vor.u32 1.1754944e-38, %v1730
    %v1732 = vsel %vm1729, %v1731, %v1727
    %v1733 = vmul.f32 1.0, %v1732
    %v1734 = vrcp.pop %v1687
    %v1735 = vmul.f32 %v1687, %v1734
    %v1736 = vsub.f32 1.0, %v1735
    %v1737 = vmul.f32 %v1734, %v1736
    %v1738 = vadd.f32 %v1734, %v1737
    %vm1739 = vweird.f32 %v1687
    %vm1740 = vweird.f32 %v1734
    %vm1741 = vmor %vm1739, %vm1740
    %v1742 = vsel %vm1741, %v1734, %v1738
    %v1743 = vand.u32 2147483647, %v1687
    %vm1744 = vcmp.eq.f32.partialorder %v1743, 8.507059e+37
    %v1745 = vand.u32 %v1687, 2147483648
    %v1746 = vor.u32 1.1754944e-38, %v1745
    %v1747 = vsel %vm1744, %v1746, %v1742
    %v1748 = vmul.f32 1.0, %v1747
    %v1749 = vrcp.pop %v1688
    %v1750 = vmul.f32 %v1688, %v1749
    %v1751 = vsub.f32 1.0, %v1750
    %v1752 = vmul.f32 %v1749, %v1751
    %v1753 = vadd.f32 %v1749, %v1752
    %vm1754 = vweird.f32 %v1688
    %vm1755 = vweird.f32 %v1749
    %vm1756 = vmor %vm1754, %vm1755
    %v1757 = vsel %vm1756, %v1749, %v1753
    %v1758 = vand.u32 2147483647, %v1688
    %vm1759 = vcmp.eq.f32.partialorder %v1758, 8.507059e+37
    %v1760 = vand.u32 %v1688, 2147483648
    %v1761 = vor.u32 1.1754944e-38, %v1760
    %v1762 = vsel %vm1759, %v1761, %v1757
    %v1763 = vmul.f32 1.0, %v1762
    %v1764 = vmul.f32 %v1664, %v1703
    %v1765 = vmul.f32 %v1665, %v1718
    %v1766 = vmul.f32 %v1666, %v1733
    %v1767 = vmul.f32 %v1667, %v1748
    %v1768 = vmul.f32 %v1668, %v1763
    %s1769 = scalar_lea.vmem %s5, 720
    %v1770 = vld [vmem:[%s1769] sm:$0xf]
    %v1771 = vld [vmem:[%s1769 + $0x4] sm:$0xf]
    %v1772 = vld [vmem:[%s1769 + $0x8] sm:$0xf]
    %v1773 = vld [vmem:[%s1769 + $0xc] sm:$0xf]
    %v1774 = vpack.c.bf16 %v1765, %v1764
    %v1775 = vpack.c.bf16 %v1767, %v1766
    %v1776 = vpack.c.bf16 %v1768, %v1768
    %s1777 = scalar_lea.vmem %s6, 13
    %v1778 = vld [vmem:[%s1777] sm:$0x1]
    %v1780 = vperm.slane %v1778, 0
    %v1786 = vunpack.c.l.b16 %v1770
    %v1787 = vunpack.c.l.b16 %v1771
    %v1788 = vunpack.c.l.b16 %v1772
    %v1789 = vunpack.c.l.b16 %v1773
    %v1790 = vpack.c.b16 %v1787, %v1786
    %v1791 = vpack.c.b16 %v1789, %v1788
    %v1795 = vsel %vm256, %v1774, 0
    %v1798 = vsel %vm256, %v1775, 0
    %v1801 = vsel %vm256, %v1776, 0
    %1803 = vmatpush.bf16.msra.mxu0 0
    %1804 = vmatpush.bf16.msra.mxu0 0
    %1805 = vmatpush.bf16.msra.mxu0 0
    %1806 = vmatpush.bf16.msra.mxu0 0
    %1807 = vmatpush.bf16.msra.mxu0 0
    %1808 = vmatpush.bf16.msra.mxu0 0
    %1809 = vmatpush.bf16.msra.mxu0 %v1791
    %1810 = vmatpush.bf16.msra.mxu0 %v1790
    %1811 = vmatmul.bf16.gmra.mxu0 %v1795
    %v1812 = vpop.f32.mrf.mxu0
    %v1813 = vadd.f32 %v1780, %v1812
    %v1814 = vpop.f32.mrf.mxu0
    %v1815 = vadd.f32 %v1780, %v1814
    %1816 = vmatmul.bf16.gmra.mxu0 %v1798
    %v1817 = vpop.f32.mrf.mxu0
    %v1818 = vadd.f32 %v1780, %v1817
    %v1819 = vpop.f32.mrf.mxu0
    %v1820 = vadd.f32 %v1780, %v1819
    %1821 = vmatmul.bf16.gmra.mxu0 %v1801
    %v1822 = vpop.f32.mrf.mxu0
    %v1823 = vadd.f32 %v1780, %v1822
    %v1824 = vpop.f32.mrf.mxu0
    %1825 = vdwg.mxu0
    %v1826 = vxor.u32 %v1813, 2147483648
    %v1827 = vxor.u32 %v1815, 2147483648
    %v1828 = vxor.u32 %v1818, 2147483648
    %v1829 = vxor.u32 %v1820, 2147483648
    %v1830 = vxor.u32 %v1823, 2147483648
    %v1831 = vmul.f32 %v1826, 1.442695
    %v1832 = vpow.pop %v1831
    %v1833 = vmul.f32 %v1827, 1.442695
    %v1834 = vpow.pop %v1833
    %v1835 = vmul.f32 %v1828, 1.442695
    %v1836 = vpow.pop %v1835
    %v1837 = vmul.f32 %v1829, 1.442695
    %v1838 = vpow.pop %v1837
    %v1839 = vmul.f32 %v1830, 1.442695
    %v1840 = vpow.pop %v1839
    %v1841 = vadd.f32 %v1832, 1.0
    %v1842 = vadd.f32 %v1834, 1.0
    %v1843 = vadd.f32 %v1836, 1.0
    %v1844 = vadd.f32 %v1838, 1.0
    %v1845 = vadd.f32 %v1840, 1.0
    %v1846 = vrcp.pop %v1841
    %v1847 = vmul.f32 %v1841, %v1846
    %v1848 = vsub.f32 1.0, %v1847
    %v1849 = vmul.f32 %v1846, %v1848
    %v1850 = vadd.f32 %v1846, %v1849
    %vm1851 = vweird.f32 %v1841
    %vm1852 = vweird.f32 %v1846
    %vm1853 = vmor %vm1851, %vm1852
    %v1854 = vsel %vm1853, %v1846, %v1850
    %v1855 = vand.u32 2147483647, %v1841
    %vm1856 = vcmp.eq.f32.partialorder %v1855, 8.507059e+37
    %v1857 = vand.u32 %v1841, 2147483648
    %v1858 = vor.u32 1.1754944e-38, %v1857
    %v1859 = vsel %vm1856, %v1858, %v1854
    %v1860 = vmul.f32 1.0, %v1859
    %v1861 = vrcp.pop %v1842
    %v1862 = vmul.f32 %v1842, %v1861
    %v1863 = vsub.f32 1.0, %v1862
    %v1864 = vmul.f32 %v1861, %v1863
    %v1865 = vadd.f32 %v1861, %v1864
    %vm1866 = vweird.f32 %v1842
    %vm1867 = vweird.f32 %v1861
    %vm1868 = vmor %vm1866, %vm1867
    %v1869 = vsel %vm1868, %v1861, %v1865
    %v1870 = vand.u32 2147483647, %v1842
    %vm1871 = vcmp.eq.f32.partialorder %v1870, 8.507059e+37
    %v1872 = vand.u32 %v1842, 2147483648
    %v1873 = vor.u32 1.1754944e-38, %v1872
    %v1874 = vsel %vm1871, %v1873, %v1869
    %v1875 = vmul.f32 1.0, %v1874
    %v1876 = vrcp.pop %v1843
    %v1877 = vmul.f32 %v1843, %v1876
    %v1878 = vsub.f32 1.0, %v1877
    %v1879 = vmul.f32 %v1876, %v1878
    %v1880 = vadd.f32 %v1876, %v1879
    %vm1881 = vweird.f32 %v1843
    %vm1882 = vweird.f32 %v1876
    %vm1883 = vmor %vm1881, %vm1882
    %v1884 = vsel %vm1883, %v1876, %v1880
    %v1885 = vand.u32 2147483647, %v1843
    %vm1886 = vcmp.eq.f32.partialorder %v1885, 8.507059e+37
    %v1887 = vand.u32 %v1843, 2147483648
    %v1888 = vor.u32 1.1754944e-38, %v1887
    %v1889 = vsel %vm1886, %v1888, %v1884
    %v1890 = vmul.f32 1.0, %v1889
    %v1891 = vrcp.pop %v1844
    %v1892 = vmul.f32 %v1844, %v1891
    %v1893 = vsub.f32 1.0, %v1892
    %v1894 = vmul.f32 %v1891, %v1893
    %v1895 = vadd.f32 %v1891, %v1894
    %vm1896 = vweird.f32 %v1844
    %vm1897 = vweird.f32 %v1891
    %vm1898 = vmor %vm1896, %vm1897
    %v1899 = vsel %vm1898, %v1891, %v1895
    %v1900 = vand.u32 2147483647, %v1844
    %vm1901 = vcmp.eq.f32.partialorder %v1900, 8.507059e+37
    %v1902 = vand.u32 %v1844, 2147483648
    %v1903 = vor.u32 1.1754944e-38, %v1902
    %v1904 = vsel %vm1901, %v1903, %v1899
    %v1905 = vmul.f32 1.0, %v1904
    %v1906 = vrcp.pop %v1845
    %v1907 = vmul.f32 %v1845, %v1906
    %v1908 = vsub.f32 1.0, %v1907
    %v1909 = vmul.f32 %v1906, %v1908
    %v1910 = vadd.f32 %v1906, %v1909
    %vm1911 = vweird.f32 %v1845
    %vm1912 = vweird.f32 %v1906
    %vm1913 = vmor %vm1911, %vm1912
    %v1914 = vsel %vm1913, %v1906, %v1910
    %v1915 = vand.u32 2147483647, %v1845
    %vm1916 = vcmp.eq.f32.partialorder %v1915, 8.507059e+37
    %v1917 = vand.u32 %v1845, 2147483648
    %v1918 = vor.u32 1.1754944e-38, %v1917
    %v1919 = vsel %vm1916, %v1918, %v1914
    %v1920 = vmul.f32 1.0, %v1919
    %v1921 = vmul.f32 %v1813, %v1860
    %v1922 = vmul.f32 %v1815, %v1875
    %v1923 = vmul.f32 %v1818, %v1890
    %v1924 = vmul.f32 %v1820, %v1905
    %v1925 = vmul.f32 %v1823, %v1920
    %s1926 = scalar_lea.vmem %s5, 768
    %v1927 = vld [vmem:[%s1926] sm:$0xf]
    %v1928 = vld [vmem:[%s1926 + $0x4] sm:$0xf]
    %v1929 = vld [vmem:[%s1926 + $0x8] sm:$0xf]
    %v1930 = vld [vmem:[%s1926 + $0xc] sm:$0xf]
    %v1931 = vpack.c.bf16 %v1922, %v1921
    %v1932 = vpack.c.bf16 %v1924, %v1923
    %v1933 = vpack.c.bf16 %v1925, %v1925
    %s1934 = scalar_lea.vmem %s6, 14
    %v1935 = vld [vmem:[%s1934] sm:$0x1]
    %v1937 = vperm.slane %v1935, 0
    %v1943 = vunpack.c.l.b16 %v1927
    %v1944 = vunpack.c.l.b16 %v1928
    %v1945 = vunpack.c.l.b16 %v1929
    %v1946 = vunpack.c.l.b16 %v1930
    %v1947 = vpack.c.b16 %v1944, %v1943
    %v1948 = vpack.c.b16 %v1946, %v1945
    %v1952 = vsel %vm256, %v1931, 0
    %v1955 = vsel %vm256, %v1932, 0
    %v1958 = vsel %vm256, %v1933, 0
    %1960 = vmatpush.bf16.msra.mxu0 0
    %1961 = vmatpush.bf16.msra.mxu0 0
    %1962 = vmatpush.bf16.msra.mxu0 0
    %1963 = vmatpush.bf16.msra.mxu0 0
    %1964 = vmatpush.bf16.msra.mxu0 0
    %1965 = vmatpush.bf16.msra.mxu0 0
    %1966 = vmatpush.bf16.msra.mxu0 %v1948
    %1967 = vmatpush.bf16.msra.mxu0 %v1947
    %1968 = vmatmul.bf16.gmra.mxu0 %v1952
    %v1969 = vpop.f32.mrf.mxu0
    %v1970 = vadd.f32 %v1937, %v1969
    %v1971 = vpop.f32.mrf.mxu0
    %v1972 = vadd.f32 %v1937, %v1971
    %1973 = vmatmul.bf16.gmra.mxu0 %v1955
    %v1974 = vpop.f32.mrf.mxu0
    %v1975 = vadd.f32 %v1937, %v1974
    %v1976 = vpop.f32.mrf.mxu0
    %v1977 = vadd.f32 %v1937, %v1976
    %1978 = vmatmul.bf16.gmra.mxu0 %v1958
    %v1979 = vpop.f32.mrf.mxu0
    %v1980 = vadd.f32 %v1937, %v1979
    %v1981 = vpop.f32.mrf.mxu0
    %1982 = vdwg.mxu0
    %v1983 = vpack.c.bf16 %v1972, %v1970
    %v1984 = vpack.c.bf16 %v1977, %v1975
    %v1985 = vpack.c.bf16 %v1980, %v1980
    %v1987 = vsel %vm45, %v1985, 0
    %1989 = vmatpush.bf16.msra.mxu0 0
    %1990 = vmatpush.bf16.msra.mxu0 0
    %1991 = vmatpush.bf16.msra.mxu0 0
    %1992 = vmatpush.bf16.msra.mxu0 0
    %1993 = vmatpush.bf16.msra.mxu0 0
    %1994 = vmatpush.bf16.msra.mxu0 %v1987
    %1995 = vmatpush.bf16.msra.mxu0 %v1984
    %1996 = vmatpush.bf16.msra.mxu0 %v1983
    %1997 = vmatmul.bf16.gmra.mxu0 %v1211
    %v1998 = vpop.f32.mrf.mxu0
    %v1999 = vadd.f32 0.0, %v1998
    %v2000 = vpop.f32.mrf.mxu0
    %v2001 = vadd.f32 0.0, %v2000
    %2002 = vdwg.mxu0
    %s2003 = scalar_lea.vmem %s5, 816
    %v2004 = vld [vmem:[%s2003] sm:$0xf]
    %v2005 = vld [vmem:[%s2003 + $0x4] sm:$0xf]
    %v2006 = vld [vmem:[%s2003 + $0x8] sm:$0xf]
    %v2007 = vld [vmem:[%s2003 + $0xc] sm:$0xf]
    %v2008 = vld [vmem:[%s2003 + $0x10] sm:$0xf]
    %v2009 = vld [vmem:[%s2003 + $0x14] sm:$0xf]
    %v2010 = vld [vmem:[%s2003 + $0x18] sm:$0xf]
    %v2011 = vld [vmem:[%s2003 + $0x1c] sm:$0xf]
    %v2012 = vld [vmem:[%s2003 + $0x20] sm:$0xf]
    %v2013 = vld [vmem:[%s2003 + $0x24] sm:$0xf]
    %v2014 = vld [vmem:[%s2003 + $0x28] sm:$0xf]
    %v2015 = vld [vmem:[%s2003 + $0x2c] sm:$0xf]
    %v2016 = vpack.c.bf16 %v2001, %v1999
    %v2021 = vunpack.c.l.b16 %v2008
    %v2022 = vunpack.c.l.b16 %v2009
    %v2023 = vunpack.c.l.b16 %v2010
    %v2024 = vunpack.c.l.b16 %v2011
    %v2025 = vpack.c.b16 %v2022, %v2021
    %v2026 = vpack.c.b16 %v2024, %v2023
    %v2030 = vsel %vm256, %v2016, 0
    %2032 = vmatpush.bf16.msra.mxu0 0
    %2033 = vmatpush.bf16.msra.mxu0 0
    %2034 = vmatpush.bf16.msra.mxu0 0
    %2035 = vmatpush.bf16.msra.mxu0 0
    %2036 = vmatpush.bf16.msra.mxu0 0
    %2037 = vmatpush.bf16.msra.mxu0 0
    %2038 = vmatpush.bf16.msra.mxu0 %v2026
    %2039 = vmatpush.bf16.msra.mxu0 %v2025
    %2040 = vmatmul.bf16.gmra.mxu0 %v2030
    %v2041 = vpop.f32.mrf.mxu0
    %v2042 = vadd.f32 0.0, %v2041
    %v2043 = vpop.f32.mrf.mxu0
    %v2044 = vadd.f32 0.0, %v2043
    %2045 = vdwg.mxu0
    %v2050 = vunpack.c.l.b16 %v2004
    %v2051 = vunpack.c.l.b16 %v2005
    %v2052 = vunpack.c.l.b16 %v2006
    %v2053 = vunpack.c.l.b16 %v2007
    %v2054 = vpack.c.b16 %v2051, %v2050
    %v2055 = vpack.c.b16 %v2053, %v2052
    %2058 = vmatpush.bf16.msra.mxu0 0
    %2059 = vmatpush.bf16.msra.mxu0 0
    %2060 = vmatpush.bf16.msra.mxu0 0
    %2061 = vmatpush.bf16.msra.mxu0 0
    %2062 = vmatpush.bf16.msra.mxu0 0
    %2063 = vmatpush.bf16.msra.mxu0 0
    %2064 = vmatpush.bf16.msra.mxu0 %v2055
    %2065 = vmatpush.bf16.msra.mxu0 %v2054
    %2066 = vmatmul.bf16.gmra.mxu0 %v1535
    %v2067 = vpop.f32.mrf.mxu0
    %v2068 = vadd.f32 %v2042, %v2067
    %v2069 = vpop.f32.mrf.mxu0
    %v2070 = vadd.f32 %v2044, %v2069
    %2071 = vdwg.mxu0
    %v2076 = vunpack.c.l.b16 %v2012
    %v2077 = vunpack.c.l.b16 %v2013
    %v2078 = vunpack.c.l.b16 %v2014
    %v2079 = vunpack.c.l.b16 %v2015
    %v2080 = vpack.c.b16 %v2077, %v2076
    %v2081 = vpack.c.b16 %v2079, %v2078
    %2084 = vmatpush.bf16.msra.mxu0 0
    %2085 = vmatpush.bf16.msra.mxu0 0
    %2086 = vmatpush.bf16.msra.mxu0 0
    %2087 = vmatpush.bf16.msra.mxu0 0
    %2088 = vmatpush.bf16.msra.mxu0 0
    %2089 = vmatpush.bf16.msra.mxu0 0
    %2090 = vmatpush.bf16.msra.mxu0 %v2081
    %2091 = vmatpush.bf16.msra.mxu0 %v2080
    %2092 = vmatmul.bf16.gmra.mxu0 %v1313
    %v2093 = vpop.f32.mrf.mxu0
    %v2094 = vadd.f32 0.0, %v2093
    %v2095 = vpop.f32.mrf.mxu0
    %2096 = vdwg.mxu0
    %v2097 = vperm.slane %v2094, 0
    %v2098 = vadd.f32 %v2068, %v2097
    %v2099 = vadd.f32 %v2070, %v2097
    %s2100 = scalar_lea.vmem %s6, 15
    %v2101 = vld [vmem:[%s2100] sm:$0x1]
    %v2103 = vperm.slane %v2101, 0
    %v2105 = vadd.f32 %v2098, %v2103
    %v2106 = vadd.f32 %v2099, %v2103
    %v2107 = vxor.u32 %v2105, 2147483648
    %v2108 = vxor.u32 %v2106, 2147483648
    %v2109 = vmul.f32 %v2107, 1.442695
    %v2110 = vpow.pop %v2109
    %v2111 = vmul.f32 %v2108, 1.442695
    %v2112 = vpow.pop %v2111
    %v2113 = vadd.f32 %v2110, 1.0
    %v2114 = vadd.f32 %v2112, 1.0
    %v2115 = vrcp.pop %v2113
    %v2116 = vmul.f32 %v2113, %v2115
    %v2117 = vsub.f32 1.0, %v2116
    %v2118 = vmul.f32 %v2115, %v2117
    %v2119 = vadd.f32 %v2115, %v2118
    %vm2120 = vweird.f32 %v2113
    %vm2121 = vweird.f32 %v2115
    %vm2122 = vmor %vm2120, %vm2121
    %v2123 = vsel %vm2122, %v2115, %v2119
    %v2124 = vand.u32 2147483647, %v2113
    %vm2125 = vcmp.eq.f32.partialorder %v2124, 8.507059e+37
    %v2126 = vand.u32 %v2113, 2147483648
    %v2127 = vor.u32 1.1754944e-38, %v2126
    %v2128 = vsel %vm2125, %v2127, %v2123
    %v2129 = vmul.f32 1.0, %v2128
    %v2130 = vrcp.pop %v2114
    %v2131 = vmul.f32 %v2114, %v2130
    %v2132 = vsub.f32 1.0, %v2131
    %v2133 = vmul.f32 %v2130, %v2132
    %v2134 = vadd.f32 %v2130, %v2133
    %vm2135 = vweird.f32 %v2114
    %vm2136 = vweird.f32 %v2130
    %vm2137 = vmor %vm2135, %vm2136
    %v2138 = vsel %vm2137, %v2130, %v2134
    %v2139 = vand.u32 2147483647, %v2114
    %vm2140 = vcmp.eq.f32.partialorder %v2139, 8.507059e+37
    %v2141 = vand.u32 %v2114, 2147483648
    %v2142 = vor.u32 1.1754944e-38, %v2141
    %v2143 = vsel %vm2140, %v2142, %v2138
    %v2144 = vmul.f32 1.0, %v2143
    %v2145 = vmul.f32 %v2105, %v2129
    %v2146 = vmul.f32 %v2106, %v2144
    %s2147 = scalar_lea.vmem %s5, 864
    %v2148 = vld [vmem:[%s2147] sm:$0xf]
    %v2149 = vld [vmem:[%s2147 + $0x4] sm:$0xf]
    %v2150 = vld [vmem:[%s2147 + $0x8] sm:$0xf]
    %v2151 = vld [vmem:[%s2147 + $0xc] sm:$0xf]
    %v2152 = vpack.c.bf16 %v2146, %v2145
    %s2153 = scalar_lea.vmem %s6, 16
    %v2154 = vld [vmem:[%s2153] sm:$0x1]
    %v2156 = vperm.slane %v2154, 0
    %v2162 = vunpack.c.l.b16 %v2148
    %v2163 = vunpack.c.l.b16 %v2149
    %v2164 = vunpack.c.l.b16 %v2150
    %v2165 = vunpack.c.l.b16 %v2151
    %v2166 = vpack.c.b16 %v2163, %v2162
    %v2167 = vpack.c.b16 %v2165, %v2164
    %v2171 = vsel %vm256, %v2152, 0
    %2173 = vmatpush.bf16.msra.mxu0 0
    %2174 = vmatpush.bf16.msra.mxu0 0
    %2175 = vmatpush.bf16.msra.mxu0 0
    %2176 = vmatpush.bf16.msra.mxu0 0
    %2177 = vmatpush.bf16.msra.mxu0 0
    %2178 = vmatpush.bf16.msra.mxu0 0
    %2179 = vmatpush.bf16.msra.mxu0 %v2167
    %2180 = vmatpush.bf16.msra.mxu0 %v2166
    %2181 = vmatmul.bf16.gmra.mxu0 %v2171
    %v2182 = vpop.f32.mrf.mxu0
    %v2183 = vadd.f32 %v2156, %v2182
    %v2184 = vpop.f32.mrf.mxu0
    %v2185 = vadd.f32 %v2156, %v2184
    %2186 = vdwg.mxu0
    %v2187 = vxor.u32 %v2183, 2147483648
    %v2188 = vxor.u32 %v2185, 2147483648
    %v2189 = vmul.f32 %v2187, 1.442695
    %v2190 = vpow.pop %v2189
    %v2191 = vmul.f32 %v2188, 1.442695
    %v2192 = vpow.pop %v2191
    %v2193 = vadd.f32 %v2190, 1.0
    %v2194 = vadd.f32 %v2192, 1.0
    %v2195 = vrcp.pop %v2193
    %v2196 = vmul.f32 %v2193, %v2195
    %v2197 = vsub.f32 1.0, %v2196
    %v2198 = vmul.f32 %v2195, %v2197
    %v2199 = vadd.f32 %v2195, %v2198
    %vm2200 = vweird.f32 %v2193
    %vm2201 = vweird.f32 %v2195
    %vm2202 = vmor %vm2200, %vm2201
    %v2203 = vsel %vm2202, %v2195, %v2199
    %v2204 = vand.u32 2147483647, %v2193
    %vm2205 = vcmp.eq.f32.partialorder %v2204, 8.507059e+37
    %v2206 = vand.u32 %v2193, 2147483648
    %v2207 = vor.u32 1.1754944e-38, %v2206
    %v2208 = vsel %vm2205, %v2207, %v2203
    %v2209 = vmul.f32 1.0, %v2208
    %v2210 = vrcp.pop %v2194
    %v2211 = vmul.f32 %v2194, %v2210
    %v2212 = vsub.f32 1.0, %v2211
    %v2213 = vmul.f32 %v2210, %v2212
    %v2214 = vadd.f32 %v2210, %v2213
    %vm2215 = vweird.f32 %v2194
    %vm2216 = vweird.f32 %v2210
    %vm2217 = vmor %vm2215, %vm2216
    %v2218 = vsel %vm2217, %v2210, %v2214
    %v2219 = vand.u32 2147483647, %v2194
    %vm2220 = vcmp.eq.f32.partialorder %v2219, 8.507059e+37
    %v2221 = vand.u32 %v2194, 2147483648
    %v2222 = vor.u32 1.1754944e-38, %v2221
    %v2223 = vsel %vm2220, %v2222, %v2218
    %v2224 = vmul.f32 1.0, %v2223
    %v2225 = vmul.f32 %v2183, %v2209
    %v2226 = vmul.f32 %v2185, %v2224
    %s2227 = scalar_lea.vmem %s5, 912
    %v2228 = vld [vmem:[%s2227] sm:$0xf]
    %v2229 = vld [vmem:[%s2227 + $0x4] sm:$0xf]
    %v2230 = vld [vmem:[%s2227 + $0x8] sm:$0xf]
    %v2231 = vld [vmem:[%s2227 + $0xc] sm:$0xf]
    %v2232 = vpack.c.bf16 %v2226, %v2225
    %s2233 = scalar_lea.vmem %s6, 17
    %v2234 = vld [vmem:[%s2233] sm:$0x1]
    %v2236 = vperm.slane %v2234, 0
    %v2242 = vunpack.c.l.b16 %v2228
    %v2243 = vunpack.c.l.b16 %v2229
    %v2244 = vunpack.c.l.b16 %v2230
    %v2245 = vunpack.c.l.b16 %v2231
    %v2246 = vpack.c.b16 %v2243, %v2242
    %v2247 = vpack.c.b16 %v2245, %v2244
    %v2251 = vsel %vm256, %v2232, 0
    %2253 = vmatpush.bf16.msra.mxu0 0
    %2254 = vmatpush.bf16.msra.mxu0 0
    %2255 = vmatpush.bf16.msra.mxu0 0
    %2256 = vmatpush.bf16.msra.mxu0 0
    %2257 = vmatpush.bf16.msra.mxu0 0
    %2258 = vmatpush.bf16.msra.mxu0 0
    %2259 = vmatpush.bf16.msra.mxu0 %v2247
    %2260 = vmatpush.bf16.msra.mxu0 %v2246
    %2261 = vmatmul.bf16.gmra.mxu0 %v2251
    %v2262 = vpop.f32.mrf.mxu0
    %v2263 = vadd.f32 %v2236, %v2262
    %v2264 = vpop.f32.mrf.mxu0
    %v2265 = vadd.f32 %v2236, %v2264
    %2266 = vdwg.mxu0
    %2269 = vrot.lane.b32.xlu0 %v2263, 32
    %v2270 = vpop.permute.xlu0 %2269
    %2271 = vrot.lane.b32.xlu0 %v2265, 32
    %v2272 = vpop.permute.xlu0 %2271
    %v2275 = vadd.f32 %v1506, %v2270
    %v2276 = vadd.f32 %v1507, %v2272
    %s2277 = scalar_lea.vmem %s5, 960
    %v2278 = vld [vmem:[%s2277] sm:$0xf]
    %v2279 = vld [vmem:[%s2277 + $0x4] sm:$0xf]
    %v2280 = vld [vmem:[%s2277 + $0x8] sm:$0xf]
    %v2281 = vld [vmem:[%s2277 + $0xc] sm:$0xf]
    %v2282 = vpack.c.bf16 %v2276, %v2275
    %s2283 = scalar_lea.vmem %s6, 18
    %v2284 = vld [vmem:[%s2283] sm:$0x1]
    %v2286 = vperm.slane %v2284, 0
    %2289 = vrot.lane.b32.xlu0 %v2282, 96
    %v2290 = vpop.permute.xlu0 %2289
    %v2295 = vunpack.c.l.b16 %v2278
    %v2296 = vunpack.c.l.b16 %v2279
    %v2297 = vunpack.c.l.b16 %v2280
    %v2298 = vunpack.c.l.b16 %v2281
    %v2299 = vpack.c.b16 %v2296, %v2295
    %v2300 = vpack.c.b16 %v2298, %v2297
    %v2304 = vsel %vm256, %v2290, 0
    %2306 = vmatpush.bf16.msra.mxu0 0
    %2307 = vmatpush.bf16.msra.mxu0 0
    %2308 = vmatpush.bf16.msra.mxu0 0
    %2309 = vmatpush.bf16.msra.mxu0 0
    %2310 = vmatpush.bf16.msra.mxu0 0
    %2311 = vmatpush.bf16.msra.mxu0 0
    %2312 = vmatpush.bf16.msra.mxu0 %v2300
    %2313 = vmatpush.bf16.msra.mxu0 %v2299
    %2314 = vmatmul.bf16.gmra.mxu0 %v2304
    %v2315 = vpop.f32.mrf.mxu0
    %v2316 = vadd.f32 %v2286, %v2315
    %v2317 = vpop.f32.mrf.mxu0
    %v2318 = vadd.f32 %v2286, %v2317
    %2319 = vdwg.mxu0
    %v2320 = vxor.u32 %v2316, 2147483648
    %v2321 = vxor.u32 %v2318, 2147483648
    %v2322 = vmul.f32 %v2320, 1.442695
    %v2323 = vpow.pop %v2322
    %v2324 = vmul.f32 %v2321, 1.442695
    %v2325 = vpow.pop %v2324
    %v2326 = vadd.f32 %v2323, 1.0
    %v2327 = vadd.f32 %v2325, 1.0
    %v2328 = vrcp.pop %v2326
    %v2329 = vmul.f32 %v2326, %v2328
    %v2330 = vsub.f32 1.0, %v2329
    %v2331 = vmul.f32 %v2328, %v2330
    %v2332 = vadd.f32 %v2328, %v2331
    %vm2333 = vweird.f32 %v2326
    %vm2334 = vweird.f32 %v2328
    %vm2335 = vmor %vm2333, %vm2334
    %v2336 = vsel %vm2335, %v2328, %v2332
    %v2337 = vand.u32 2147483647, %v2326
    %vm2338 = vcmp.eq.f32.partialorder %v2337, 8.507059e+37
    %v2339 = vand.u32 %v2326, 2147483648
    %v2340 = vor.u32 1.1754944e-38, %v2339
    %v2341 = vsel %vm2338, %v2340, %v2336
    %v2342 = vmul.f32 1.0, %v2341
    %v2343 = vrcp.pop %v2327
    %v2344 = vmul.f32 %v2327, %v2343
    %v2345 = vsub.f32 1.0, %v2344
    %v2346 = vmul.f32 %v2343, %v2345
    %v2347 = vadd.f32 %v2343, %v2346
    %vm2348 = vweird.f32 %v2327
    %vm2349 = vweird.f32 %v2343
    %vm2350 = vmor %vm2348, %vm2349
    %v2351 = vsel %vm2350, %v2343, %v2347
    %v2352 = vand.u32 2147483647, %v2327
    %vm2353 = vcmp.eq.f32.partialorder %v2352, 8.507059e+37
    %v2354 = vand.u32 %v2327, 2147483648
    %v2355 = vor.u32 1.1754944e-38, %v2354
    %v2356 = vsel %vm2353, %v2355, %v2351
    %v2357 = vmul.f32 1.0, %v2356
    %v2358 = vmul.f32 %v2316, %v2342
    %v2359 = vmul.f32 %v2318, %v2357
    %s2360 = scalar_lea.vmem %s5, 1008
    %v2361 = vld [vmem:[%s2360] sm:$0xf]
    %v2362 = vld [vmem:[%s2360 + $0x4] sm:$0xf]
    %v2363 = vld [vmem:[%s2360 + $0x8] sm:$0xf]
    %v2364 = vld [vmem:[%s2360 + $0xc] sm:$0xf]
    %v2365 = vpack.c.bf16 %v2359, %v2358
    %s2366 = scalar_lea.vmem %s6, 19
    %v2367 = vld [vmem:[%s2366] sm:$0x1]
    %v2369 = vperm.slane %v2367, 0
    %v2375 = vunpack.c.l.b16 %v2361
    %v2376 = vunpack.c.l.b16 %v2362
    %v2377 = vunpack.c.l.b16 %v2363
    %v2378 = vunpack.c.l.b16 %v2364
    %v2379 = vpack.c.b16 %v2376, %v2375
    %v2380 = vpack.c.b16 %v2378, %v2377
    %v2384 = vsel %vm256, %v2365, 0
    %2386 = vmatpush.bf16.msra.mxu0 0
    %2387 = vmatpush.bf16.msra.mxu0 0
    %2388 = vmatpush.bf16.msra.mxu0 0
    %2389 = vmatpush.bf16.msra.mxu0 0
    %2390 = vmatpush.bf16.msra.mxu0 0
    %2391 = vmatpush.bf16.msra.mxu0 0
    %2392 = vmatpush.bf16.msra.mxu0 %v2380
    %2393 = vmatpush.bf16.msra.mxu0 %v2379
    %2394 = vmatmul.bf16.gmra.mxu0 %v2384
    %v2395 = vpop.f32.mrf.mxu0
    %v2396 = vadd.f32 %v2369, %v2395
    %v2397 = vpop.f32.mrf.mxu0
    %v2398 = vadd.f32 %v2369, %v2397
    %2399 = vdwg.mxu0
    %v2400 = vxor.u32 %v2396, 2147483648
    %v2401 = vxor.u32 %v2398, 2147483648
    %v2402 = vmul.f32 %v2400, 1.442695
    %v2403 = vpow.pop %v2402
    %v2404 = vmul.f32 %v2401, 1.442695
    %v2405 = vpow.pop %v2404
    %v2406 = vadd.f32 %v2403, 1.0
    %v2407 = vadd.f32 %v2405, 1.0
    %v2408 = vrcp.pop %v2406
    %v2409 = vmul.f32 %v2406, %v2408
    %v2410 = vsub.f32 1.0, %v2409
    %v2411 = vmul.f32 %v2408, %v2410
    %v2412 = vadd.f32 %v2408, %v2411
    %vm2413 = vweird.f32 %v2406
    %vm2414 = vweird.f32 %v2408
    %vm2415 = vmor %vm2413, %vm2414
    %v2416 = vsel %vm2415, %v2408, %v2412
    %v2417 = vand.u32 2147483647, %v2406
    %vm2418 = vcmp.eq.f32.partialorder %v2417, 8.507059e+37
    %v2419 = vand.u32 %v2406, 2147483648
    %v2420 = vor.u32 1.1754944e-38, %v2419
    %v2421 = vsel %vm2418, %v2420, %v2416
    %v2422 = vmul.f32 1.0, %v2421
    %v2423 = vrcp.pop %v2407
    %v2424 = vmul.f32 %v2407, %v2423
    %v2425 = vsub.f32 1.0, %v2424
    %v2426 = vmul.f32 %v2423, %v2425
    %v2427 = vadd.f32 %v2423, %v2426
    %vm2428 = vweird.f32 %v2407
    %vm2429 = vweird.f32 %v2423
    %vm2430 = vmor %vm2428, %vm2429
    %v2431 = vsel %vm2430, %v2423, %v2427
    %v2432 = vand.u32 2147483647, %v2407
    %vm2433 = vcmp.eq.f32.partialorder %v2432, 8.507059e+37
    %v2434 = vand.u32 %v2407, 2147483648
    %v2435 = vor.u32 1.1754944e-38, %v2434
    %v2436 = vsel %vm2433, %v2435, %v2431
    %v2437 = vmul.f32 1.0, %v2436
    %v2438 = vmul.f32 %v2396, %v2422
    %v2439 = vmul.f32 %v2398, %v2437
    %s2440 = scalar_lea.vmem %s5, 1056
    %v2441 = vld [vmem:[%s2440] sm:$0xf]
    %v2442 = vld [vmem:[%s2440 + $0x4] sm:$0xf]
    %v2443 = vld [vmem:[%s2440 + $0x8] sm:$0xf]
    %v2444 = vld [vmem:[%s2440 + $0xc] sm:$0xf]
    %v2445 = vpack.c.bf16 %v2439, %v2438
    %s2446 = scalar_lea.vmem %s6, 20
    %v2447 = vld [vmem:[%s2446] sm:$0x1]
    %v2449 = vperm.slane %v2447, 0
    %v2455 = vunpack.c.l.b16 %v2441
    %v2456 = vunpack.c.l.b16 %v2442
    %v2457 = vunpack.c.l.b16 %v2443
    %v2458 = vunpack.c.l.b16 %v2444
    %v2459 = vpack.c.b16 %v2456, %v2455
    %v2460 = vpack.c.b16 %v2458, %v2457
    %v2464 = vsel %vm256, %v2445, 0
    %2466 = vmatpush.bf16.msra.mxu0 0
    %2467 = vmatpush.bf16.msra.mxu0 0
    %2468 = vmatpush.bf16.msra.mxu0 0
    %2469 = vmatpush.bf16.msra.mxu0 0
    %2470 = vmatpush.bf16.msra.mxu0 0
    %2471 = vmatpush.bf16.msra.mxu0 0
    %2472 = vmatpush.bf16.msra.mxu0 %v2460
    %2473 = vmatpush.bf16.msra.mxu0 %v2459
    %2474 = vmatmul.bf16.gmra.mxu0 %v2464
    %v2475 = vpop.f32.mrf.mxu0
    %v2476 = vadd.f32 %v2449, %v2475
    %v2477 = vpop.f32.mrf.mxu0
    %v2478 = vadd.f32 %v2449, %v2477
    %2479 = vdwg.mxu0
    %2480 = vst.msk [vmem:[#allocation2] sm:$0xff] %vm256, %v2476
    %2481 = vst.msk [vmem:[#allocation2 + $0x8] sm:$0xff] %vm256, %v2478
    // Predicated region
    $region30: #{tpu_custom_call.1} parent=1 // pred_check
      _
    $region31: #{tpu_custom_call.1} parent=1 // pred_check_branch
      %2483 = sbr.rel (0) target = $region33
    $region32: #{tpu_custom_call.1} parent=1 // pred_region
      %2485 = vsyncadd [#allocation3], 0
      %s2486 = sshll.u32 [#allocation2], 4
      %s2487 = int_to_ptr.vmem [resolvable:$true] %s2486
      %s2488 = sshll.u32 %s7, 4
      %s2489 = int_to_ptr.hbm [resolvable:$true] %s2488
      %2494 = dma.vmem_to_hbm [thread:$0]  %s2487, 256, %s2489, [#allocation3], 128, 128, 8
    $region33: #{tpu_custom_call.1} parent=1 // pred_fallthru
      _
    // Predicated region
    $region34: #{tpu_custom_call.1} parent=1 // pred_check
      _
    $region35: #{tpu_custom_call.1} parent=1 // pred_check_branch
      %2496 = sbr.rel (0) target = $region37
    $region36: #{tpu_custom_call.1} parent=1 // pred_region
      %2498 = dma.done [#allocation3], 256
    $region37: #{tpu_custom_call.1} parent=1 // pred_fallthru
      _
    %2499 = vsyncpa [#allocation3], 1

</llo_original>
